<compile_context>
chip_gen: v6e
topology: v6e:2x2x1
jax: 0.10.0
libtpu: 0.0.40
codegen_flags: <defaults>
</compile_context>

<pallas_src>
import math
from functools import partial

import jax
import jax.numpy as jnp
import numpy as np
from jax import lax
from jax.experimental import pallas as pl
from jax.experimental.pallas import tpu as pltpu

EPS = 1e-5  # nn.GroupNorm default eps


# ---------------------------------------------------------------------------
# Fused kernel
# ---------------------------------------------------------------------------
def _make_fused_kernel(*, H, W, cin, cout, groups, n_head, with_attn,
                       res_identity, mxu_dtype):
    P = H * W
    inv_cnt_in = 1.0 / float(P * (cin // groups))
    inv_cnt_out = 1.0 / float(P * (cout // groups))
    head_dim = cout // n_head

    def group_norm(v, gmap, gamma, beta, inv_cnt):
        # v: (C,P) f32.  Lane-axis reduce first (XLU), then a tiny (C,C)@(C,1) dot does
        # the per-group combine AND the broadcast back to channels.  Centered two-pass
        # variance (no E[x^2]-mean^2 cancellation).
        csum = jnp.sum(v, axis=-1, keepdims=True)                            # (C,1)
        mean = jnp.dot(gmap, csum, preferred_element_type=jnp.float32) * inv_cnt
        vc = v - mean
        css = jnp.sum(vc * vc, axis=-1, keepdims=True)                       # (C,1)
        var = jnp.dot(gmap, css, preferred_element_type=jnp.float32) * inv_cnt
        return vc * lax.rsqrt(var + EPS) * gamma + beta

    def swish(v):
        # x * sigmoid(x); sigmoid = 0.5*(1+tanh(x/2)): one exact EUP op, no exp overflow,
        # no approximate reciprocal.
        return v * (0.5 * jnp.tanh(0.5 * v) + 0.5)

    def conv3x3(a, w_ref, bias_col, masks, scr_ref, C):
        # a: (C,P) f32; w_ref: (3, Cout, 3*C) mxu-dtype im2col weights (one chunk per
        # kernel row); masks: (9,P) f32 precomputed border masks; scr_ref: (3*C,P) VMEM.
        # 3x3 "same" conv = 3 accumulated (Cout,3C)@(3C,P) MXU dots.  Taps are lane rolls
        # (XLU) * precomputed masks, staged through scratch so at most one tap is live.
        acc = None
        for dy in range(3):
            for dx in range(3):
                k = dy * 3 + dx
                off = (dy - 1) * W + (dx - 1)
                t = pltpu.roll(a, shift=(-off) % P, axis=1) if off != 0 else a
                if k != 4:                       # center tap never crosses a border
                    t = t * masks[k:k + 1, :]
                scr_ref[dx * C:(dx + 1) * C, :] = t.astype(mxu_dtype)
            part = jnp.dot(w_ref[dy], scr_ref[...],
                           preferred_element_type=jnp.float32)               # (Cout,P)
            acc = part if acc is None else acc + part
        return acc + bias_col

    def kernel(*refs):
        x_ref, noise_ref, masks_ref = refs[0:3]
        gn1_g, gn1_b, gmap_in, w1_ref, cb1_ref = refs[3:8]
        gn2_g, gn2_b, gmap_out, w2_ref, cb2_ref = refs[8:13]
        i = 13
        if not res_identity:
            wr_ref, br_ref = refs[i:i + 2]
            i += 2
        if with_attn:
            gna_g, gna_b, wqkv_ref, wo_ref, bo_ref = refs[i:i + 5]
            i += 5
        out_ref, scr1_ref, scr2_ref = refs[i:i + 3]

        masks = masks_ref[...]                                               # (9,P) f32
        x = x_ref[0].astype(jnp.float32)                                     # (Cin,P)

        # ---- Block1: GroupNorm -> Swish -> Conv3x3 ----
        h = swish(group_norm(x, gmap_in[...], gn1_g[...], gn1_b[...], inv_cnt_in))
        h = conv3x3(h, w1_ref, cb1_ref[...], masks, scr1_ref, cin)           # (Cout,P)

        # ---- FeatureWiseAffine (use_affine_level=False): + Linear(time_emb) ----
        h = h + noise_ref[0]                                                 # (Cout,1) bcast

        # ---- Block2: GroupNorm -> Swish -> Identity -> Conv3x3 ----
        # TODO(synk): dropout>0 (training mode) not implemented; module uses dropout=0 -> Identity.
        h2 = swish(group_norm(h, gmap_out[...], gn2_g[...], gn2_b[...], inv_cnt_out))
        h2 = conv3x3(h2, w2_ref, cb2_ref[...], masks, scr2_ref, cout)        # (Cout,P)

        # ---- residual: Identity or 1x1 conv ----
        if res_identity:
            res = x
        else:
            res = jnp.dot(wr_ref[...], x.astype(mxu_dtype),
                          preferred_element_type=jnp.float32) + br_ref[...]
        y = h2 + res                                                         # (Cout,P)

        # ---- SelfAttention (optional) ----
        if with_attn:
            nrm = group_norm(y, gmap_out[...], gna_g[...], gna_b[...], inv_cnt_out)
            # 1/sqrt(Cout) is pre-folded into the q rows of wqkv.
            qkv = jnp.dot(wqkv_ref[...], nrm.astype(mxu_dtype),
                          preferred_element_type=jnp.float32)                # (3*Cout,P)
            head_outs = []
            for hh in range(n_head):
                base = hh * 3 * head_dim
                q = qkv[base:base + head_dim].astype(mxu_dtype)              # (hd,P)
                kk = qkv[base + head_dim:base + 2 * head_dim].astype(mxu_dtype)
                vv = qkv[base + 2 * head_dim:base + 3 * head_dim].astype(mxu_dtype)
                # s[p,p'] = sum_c q[c,p] k[c,p']   (contract dim 0: no transposes)
                s = lax.dot_general(q, kk, (((0,), (0,)), ((), ())),
                                    preferred_element_type=jnp.float32)      # (P,P)
                s = s - jnp.max(s, axis=-1, keepdims=True)
                e = jnp.exp(s)
                a = e / jnp.sum(e, axis=-1, keepdims=True)   # exact softmax denominator
                # out[c,p] = sum_p' v[c,p'] a[p,p']  (contract dim 1: no transposes;
                # result stays in the (C,P) layout used by the rest of the kernel)
                head_outs.append(
                    lax.dot_general(vv, a.astype(mxu_dtype), (((1,), (1,)), ((), ())),
                                    preferred_element_type=jnp.float32))     # (hd,P)
            o = head_outs[0] if n_head == 1 else jnp.concatenate(head_outs, axis=0)
            y = jnp.dot(wo_ref[...], o.astype(mxu_dtype),
                        preferred_element_type=jnp.float32) + bo_ref[...] + y

        out_ref[0] = y.astype(out_ref.dtype)

    return kernel


# ---------------------------------------------------------------------------
# Parameter preparation (one-time, outside the hot path)
# ---------------------------------------------------------------------------
def make_group_bcast_matrix(channels, groups):
    idx = np.arange(channels) // (channels // groups)
    return jnp.asarray((idx[:, None] == idx[None, :]).astype(np.float32))


def make_border_masks(H, W):
    """(9, H*W) f32 validity masks for the 9 taps of a 3x3 'same' convolution."""
    ys, xs = np.meshgrid(np.arange(H), np.arange(W), indexing="ij")
    ys, xs = ys.reshape(-1), xs.reshape(-1)
    m = np.ones((9, H * W), np.float32)
    for k in range(9):
        dy, dx = k // 3 - 1, k % 3 - 1
        m[k] = ((ys + dy >= 0) & (ys + dy < H) & (xs + dx >= 0) & (xs + dx < W))
    return jnp.asarray(m)


def _conv_w_chunks(w, mxu_dtype):
    # (O,I,3,3) -> (KH, O, KW*I): one (O,3I) im2col weight chunk per kernel row so the
    # kernel indexes the leading axis and never slices the lane axis of the weights.
    o, i, _, _ = w.shape
    return jnp.transpose(w, (2, 0, 3, 1)).reshape(3, o, 3 * i).astype(mxu_dtype)


def prepare_kernel_params(p, *, groups, n_head=1, mxu_dtype=jnp.bfloat16):
    """Convert PyTorch-layout params to kernel layout (matmul weights in mxu_dtype)."""
    cout, cin = p["conv1_w"].shape[0], p["conv1_w"].shape[1]
    f32 = jnp.float32
    kp = dict(
        gn1_w=p["gn1_w"].reshape(cin, 1).astype(f32),
        gn1_b=p["gn1_b"].reshape(cin, 1).astype(f32),
        gmap_in=make_group_bcast_matrix(cin, groups),
        conv1_w=_conv_w_chunks(p["conv1_w"], mxu_dtype),
        conv1_b=p["conv1_b"].reshape(cout, 1).astype(f32),
        noise_w=p["noise_w"].astype(f32),
        noise_b=p["noise_b"].astype(f32),
        gn2_w=p["gn2_w"].reshape(cout, 1).astype(f32),
        gn2_b=p["gn2_b"].reshape(cout, 1).astype(f32),
        gmap_out=make_group_bcast_matrix(cout, groups),
        conv2_w=_conv_w_chunks(p["conv2_w"], mxu_dtype),
        conv2_b=p["conv2_b"].reshape(cout, 1).astype(f32),
    )
    if cin != cout:
        kp["res_w"] = p["res_w"].astype(mxu_dtype)
        kp["res_b"] = p["res_b"].reshape(cout, 1).astype(f32)
    if "qkv_w" in p:
        hd = cout // n_head
        # Fold the attention scale 1/sqrt(Cout) into the q rows of the qkv projection.
        row_scale = np.tile(np.concatenate([np.full(hd, 1.0 / math.sqrt(cout), np.float32),
                                            np.ones(2 * hd, np.float32)]), n_head)
        kp["gna_w"] = p["gna_w"].reshape(cout, 1).astype(f32)
        kp["gna_b"] = p["gna_b"].reshape(cout, 1).astype(f32)
        kp["qkv_w"] = (p["qkv_w"].astype(f32) * jnp.asarray(row_scale)[:, None]).astype(mxu_dtype)
        kp["out_w"] = p["out_w"].astype(mxu_dtype)
        kp["out_b"] = p["out_b"].reshape(cout, 1).astype(f32)
    return kp


# ---------------------------------------------------------------------------
# Wrapper
# ---------------------------------------------------------------------------
@partial(jax.jit, static_argnames=("groups", "n_head", "with_attn"))
def resnet_block_with_attn_forward(x_nchw, time_emb, kp, *, groups, n_head=1, with_attn=False):
    N, cin, H, W = x_nchw.shape
    P = H * W
    cout = kp["conv1_b"].shape[0]
    mxu_dtype = kp["conv1_w"].dtype
    res_identity = "res_w" not in kp
    assert with_attn == ("qkv_w" in kp)
    assert cin % groups == 0 and cout % groups == 0 and cout % n_head == 0
    assert cin % 8 == 0 and cout % 8 == 0, "channel counts must be sublane-aligned"

    # VMEM footprint guard + explicit scoped-VMEM budget (v5e default is only 16 MiB;
    # v7x physical VMEM is 64 MiB, so keep the request well below that).
    bpe = np.dtype(mxu_dtype).itemsize
    weights_b = ((9 * cin + 9 * cout + (0 if res_identity else cin)
                  + (4 * cout if with_attn else 0)) * cout * bpe
                 + (cin * cin + cout * cout) * 4)
    act_b = (cin + 3 * cout) * P * 4                      # x, h, h2/y f32 working set
    scratch_b = 3 * (cin + cout) * P * bpe                # im2col scratch (both convs)
    attn_b = (2 * P * P + 3 * cout * P) * 4 if with_attn else 0
    est = 2 * (weights_b + act_b) + scratch_b + attn_b + (2 << 20)
    assert est <= (40 << 20), f"fused per-image kernel would need ~{est >> 20} MiB VMEM"
    vmem_limit = int(max(32 << 20, min(2 * est, 48 << 20)))

    x2 = x_nchw.reshape(N, cin, P).astype(jnp.float32)    # free reshape, no transpose
    # FeatureWiseAffine linear (tiny (N,emb)@(emb,Cout)); enters the kernel as a bias column.
    noise = (time_emb.astype(jnp.float32) @ kp["noise_w"].T + kp["noise_b"]).reshape(N, cout, 1)
    masks = make_border_masks(H, W)                       # host-precomputed border masks

    weights = [kp["gn1_w"], kp["gn1_b"], kp["gmap_in"], kp["conv1_w"], kp["conv1_b"],
               kp["gn2_w"], kp["gn2_b"], kp["gmap_out"], kp["conv2_w"], kp["conv2_b"]]
    if not res_identity:
        weights += [kp["res_w"], kp["res_b"]]
    if with_attn:
        weights += [kp["gna_w"], kp["gna_b"], kp["qkv_w"], kp["out_w"], kp["out_b"]]

    def full_spec(a):
        nd = a.ndim
        return pl.BlockSpec(a.shape, lambda n, _nd=nd: (0,) * _nd)

    kernel = _make_fused_kernel(H=H, W=W, cin=cin, cout=cout, groups=groups,
                                n_head=n_head, with_attn=with_attn,
                                res_identity=res_identity, mxu_dtype=mxu_dtype)

    out = pl.pallas_call(
        kernel,
        out_shape=jax.ShapeDtypeStruct((N, cout, P), jnp.float32),
        grid=(N,),
        in_specs=[pl.BlockSpec((1, cin, P), lambda n: (n, 0, 0)),
                  pl.BlockSpec((1, cout, 1), lambda n: (n, 0, 0)),
                  full_spec(masks)] + [full_spec(a) for a in weights],
        out_specs=pl.BlockSpec((1, cout, P), lambda n: (n, 0, 0)),
        scratch_shapes=[pltpu.VMEM((3 * cin, P), mxu_dtype),
                        pltpu.VMEM((3 * cout, P), mxu_dtype)],
        compiler_params=pltpu.CompilerParams(
            dimension_semantics=("parallel",),
            vmem_limit_bytes=vmem_limit),
    )(x2, noise, masks, *weights)

    return out.reshape(N, cout, H, W)


# ---------------------------------------------------------------------------
# Pure-JAX reference (matches the PyTorch ResnetBlocWithAttn forward, f32)
# ---------------------------------------------------------------------------
def reference_forward(x, time_emb, p, *, groups, n_head, with_attn):
    def gn(v, w, b):
        N, C, H, W = v.shape
        vg = v.reshape(N, groups, C // groups, H, W)
        m = vg.mean(axis=(2, 3, 4), keepdims=True)
        var = ((vg - m) ** 2).mean(axis=(2, 3, 4), keepdims=True)
        vn = (vg - m) / jnp.sqrt(var + EPS)
        return vn.reshape(N, C, H, W) * w.reshape(1, C, 1, 1) + b.reshape(1, C, 1, 1)

    def swish(v):
        return v * jax.nn.sigmoid(v)

    def conv3(v, w, b):
        y = lax.conv_general_dilated(v, w, (1, 1), ((1, 1), (1, 1)),
                                     dimension_numbers=("NCHW", "OIHW", "NCHW"))
        return y + b.reshape(1, -1, 1, 1)

    N, cin, H, W = x.shape
    cout = p["conv1_w"].shape[0]

    h = conv3(swish(gn(x, p["gn1_w"], p["gn1_b"])), p["conv1_w"], p["conv1_b"])
    noise = time_emb @ p["noise_w"].T + p["noise_b"]
    h = h + noise[:, :, None, None]
    h = conv3(swish(gn(h, p["gn2_w"], p["gn2_b"])), p["conv2_w"], p["conv2_b"])
    if cin != cout:
        res = jnp.einsum("oc,nchw->nohw", p["res_w"], x) + p["res_b"].reshape(1, -1, 1, 1)
    else:
        res = x
    y = h + res

    if with_attn:
        hd = cout // n_head
        nrm = gn(y, p["gna_w"], p["gna_b"])
        qkv = jnp.einsum("oc,nchw->nohw", p["qkv_w"], nrm).reshape(N, n_head, 3 * hd, H, W)
        q, k, v = jnp.split(qkv, 3, axis=2)
        attn = jnp.einsum("bnchw,bncyx->bnhwyx", q, k) / jnp.sqrt(jnp.float32(cout))
        attn = jax.nn.softmax(attn.reshape(N, n_head, H, W, H * W), axis=-1)
        attn = attn.reshape(N, n_head, H, W, H, W)
        o = jnp.einsum("bnhwyx,bncyx->bnchw", attn, v).reshape(N, cout, H, W)
        o = jnp.einsum("oc,nchw->nohw", p["out_w"], o) + p["out_b"].reshape(1, -1, 1, 1)
        y = o + y
    return y


# ---------------------------------------------------------------------------
# Self-test
# ---------------------------------------------------------------------------
def _run_case(*, N, dim, dim_out, H, W, groups, emb, n_head, with_attn, seed):
    keys = iter(jax.random.split(jax.random.PRNGKey(seed), 24))

    def rnd(shape, scale=0.1, shift=0.0):
        return shift + scale * jax.random.normal(next(keys), shape, jnp.float32)

    x = jax.random.normal(next(keys), (N, dim, H, W), jnp.float32)
    time_emb = jax.random.normal(next(keys), (N, emb), jnp.float32)

    p = dict(
        gn1_w=rnd((dim,), shift=1.0), gn1_b=rnd((dim,)),
        conv1_w=rnd((dim_out, dim, 3, 3)), conv1_b=rnd((dim_out,)),
        noise_w=rnd((dim_out, emb)), noise_b=rnd((dim_out,)),
        gn2_w=rnd((dim_out,), shift=1.0), gn2_b=rnd((dim_out,)),
        conv2_w=rnd((dim_out, dim_out, 3, 3)), conv2_b=rnd((dim_out,)),
    )
    if dim != dim_out:
        p["res_w"] = rnd((dim_out, dim))
        p["res_b"] = rnd((dim_out,))
    if with_attn:
        p["gna_w"] = rnd((dim_out,), shift=1.0)
        p["gna_b"] = rnd((dim_out,))
        p["qkv_w"] = rnd((3 * dim_out, dim_out))
        p["out_w"] = rnd((dim_out, dim_out))
        p["out_b"] = rnd((dim_out,))

    y_ref = reference_forward(x, time_emb, p, groups=groups, n_head=n_head,
                              with_attn=with_attn)

    # f32 MXU operands: tight parity with the reference.  bf16 MXU operands (the fast path,
    # f32 accumulation): 2-4x MXU throughput; tolerance reflects bf16 operand rounding.
    for mxu_dtype, tol in ((jnp.float32, 1e-2), (jnp.bfloat16, 5e-2)):
        kp = prepare_kernel_params(p, groups=groups, n_head=n_head, mxu_dtype=mxu_dtype)
        y = resnet_block_with_attn_forward(x, time_emb, kp, groups=groups,
                                           n_head=n_head, with_attn=with_attn)
        y = jax.block_until_ready(y)
        np.testing.assert_allclose(np.asarray(y), np.asarray(y_ref), atol=tol, rtol=tol)


if __name__ == "__main__":
    # ResnetBlocWithAttn(dim=32, dim_out=32, noise_level_emb_dim=32, norm_groups=8,
    #                    dropout=0, with_attn=True) on x: (2, 32, 16, 16), time_emb: (2, 32).
    _run_case(N=2, dim=32, dim_out=32, H=16, W=16, groups=8, emb=32,
              n_head=1, with_attn=True, seed=0)
    # dim != dim_out exercises the 1x1 res_conv path (with_attn=False).
    _run_case(N=2, dim=16, dim_out=32, H=16, W=16, groups=8, emb=32,
              n_head=1, with_attn=False, seed=1)
    print("KERNEL_OK")
</pallas_src>

<mosaic_0001>
module attributes {stable_mosaic.version = 11 : i64} {
  func.func @kernel(%arg0: i32, %arg1: memref<1x32x256xf32, #tpu.memory_space<vmem>>, %arg2: memref<1x32x1xf32, #tpu.memory_space<vmem>>, %arg3: memref<9x256xf32, #tpu.memory_space<vmem>>, %arg4: memref<32x1xf32, #tpu.memory_space<vmem>>, %arg5: memref<32x1xf32, #tpu.memory_space<vmem>>, %arg6: memref<32x32xf32, #tpu.memory_space<vmem>>, %arg7: memref<3x32x96xf32, #tpu.memory_space<vmem>>, %arg8: memref<32x1xf32, #tpu.memory_space<vmem>>, %arg9: memref<32x1xf32, #tpu.memory_space<vmem>>, %arg10: memref<32x1xf32, #tpu.memory_space<vmem>>, %arg11: memref<32x32xf32, #tpu.memory_space<vmem>>, %arg12: memref<3x32x96xf32, #tpu.memory_space<vmem>>, %arg13: memref<32x1xf32, #tpu.memory_space<vmem>>, %arg14: memref<32x1xf32, #tpu.memory_space<vmem>>, %arg15: memref<32x1xf32, #tpu.memory_space<vmem>>, %arg16: memref<96x32xf32, #tpu.memory_space<vmem>>, %arg17: memref<32x32xf32, #tpu.memory_space<vmem>>, %arg18: memref<32x1xf32, #tpu.memory_space<vmem>>, %arg19: memref<1x32x256xf32, #tpu.memory_space<vmem>>, %arg20: memref<96x256xf32, #tpu.memory_space<vmem>>, %arg21: memref<96x256xf32, #tpu.memory_space<vmem>>) attributes {dimension_semantics = [#tpu.dimension_semantics<parallel>], iteration_bounds = array<i64: 2>, scalar_prefetch = 0 : i64, scratch_operands = 2 : i64, tpu.core_type = #tpu.core_type<tc>, window_params = [{transform_indices = @transform_0, window_bounds = array<i64: 1, 32, 256>}, {transform_indices = @transform_1, window_bounds = array<i64: 1, 32, 1>}, {pipeline_mode = #tpu.pipeline_mode<synchronous>, transform_indices = @transform_2, window_bounds = array<i64: 9, 256>}, {pipeline_mode = #tpu.pipeline_mode<synchronous>, transform_indices = @transform_3, window_bounds = array<i64: 32, 1>}, {pipeline_mode = #tpu.pipeline_mode<synchronous>, transform_indices = @transform_4, window_bounds = array<i64: 32, 1>}, {pipeline_mode = #tpu.pipeline_mode<synchronous>, transform_indices = @transform_5, window_bounds = array<i64: 32, 32>}, {pipeline_mode = #tpu.pipeline_mode<synchronous>, transform_indices = @transform_6, window_bounds = array<i64: 3, 32, 96>}, {pipeline_mode = #tpu.pipeline_mode<synchronous>, transform_indices = @transform_7, window_bounds = array<i64: 32, 1>}, {pipeline_mode = #tpu.pipeline_mode<synchronous>, transform_indices = @transform_8, window_bounds = array<i64: 32, 1>}, {pipeline_mode = #tpu.pipeline_mode<synchronous>, transform_indices = @transform_9, window_bounds = array<i64: 32, 1>}, {pipeline_mode = #tpu.pipeline_mode<synchronous>, transform_indices = @transform_10, window_bounds = array<i64: 32, 32>}, {pipeline_mode = #tpu.pipeline_mode<synchronous>, transform_indices = @transform_11, window_bounds = array<i64: 3, 32, 96>}, {pipeline_mode = #tpu.pipeline_mode<synchronous>, transform_indices = @transform_12, window_bounds = array<i64: 32, 1>}, {pipeline_mode = #tpu.pipeline_mode<synchronous>, transform_indices = @transform_13, window_bounds = array<i64: 32, 1>}, {pipeline_mode = #tpu.pipeline_mode<synchronous>, transform_indices = @transform_14, window_bounds = array<i64: 32, 1>}, {pipeline_mode = #tpu.pipeline_mode<synchronous>, transform_indices = @transform_15, window_bounds = array<i64: 96, 32>}, {pipeline_mode = #tpu.pipeline_mode<synchronous>, transform_indices = @transform_16, window_bounds = array<i64: 32, 32>}, {pipeline_mode = #tpu.pipeline_mode<synchronous>, transform_indices = @transform_17, window_bounds = array<i64: 32, 1>}, {transform_indices = @transform_18, window_bounds = array<i64: 1, 32, 256>}]} {
    %c0 = arith.constant 0 : index
    %c0_0 = arith.constant 0 : index
    %0 = vector.load %arg3[%c0, %c0_0] : memref<9x256xf32, #tpu.memory_space<vmem>>, vector<9x256xf32>
    %c0_1 = arith.constant 0 : index
    %c0_2 = arith.constant 0 : index
    %c0_3 = arith.constant 0 : index
    %1 = vector.load %arg1[%c0_1, %c0_2, %c0_3] : memref<1x32x256xf32, #tpu.memory_space<vmem>>, vector<1x32x256xf32>
    %2 = vector.shape_cast %1 : vector<1x32x256xf32> to vector<32x256xf32>
    %c0_4 = arith.constant 0 : index
    %c0_5 = arith.constant 0 : index
    %3 = vector.load %arg6[%c0_4, %c0_5] : memref<32x32xf32, #tpu.memory_space<vmem>>, vector<32x32xf32>
    %c0_6 = arith.constant 0 : index
    %c0_7 = arith.constant 0 : index
    %4 = vector.load %arg4[%c0_6, %c0_7] : memref<32x1xf32, #tpu.memory_space<vmem>>, vector<32x1xf32>
    %c0_8 = arith.constant 0 : index
    %c0_9 = arith.constant 0 : index
    %5 = vector.load %arg5[%c0_8, %c0_9] : memref<32x1xf32, #tpu.memory_space<vmem>>, vector<32x1xf32>
    %cst = arith.constant dense<0.000000e+00> : vector<32xf32>
    %6 = vector.multi_reduction <add>, %2, %cst [1] : vector<32x256xf32> to vector<32xf32>
    %7 = vector.shape_cast %6 : vector<32xf32> to vector<32x1xf32>
    %cst_10 = arith.constant dense<0.000000e+00> : vector<32x1xf32>
    %8 = tpu.matmul %3, %7, %cst_10 {dimension_numbers = #tpu.dot_dimension_numbers<[1], [0], [0], [1], [0, 0, 1, 1], [], []>} : vector<32x32xf32>, vector<32x1xf32>, vector<32x1xf32> -> vector<32x1xf32>
    %cst_11 = arith.constant 9.765625E-4 : f32
    %9 = vector.broadcast %cst_11 : f32 to vector<32x1xf32>
    %10 = arith.mulf %8, %9 : vector<32x1xf32>
    %11 = vector.broadcast %10 : vector<32x1xf32> to vector<32x256xf32>
    %12 = arith.subf %2, %11 : vector<32x256xf32>
    %13 = arith.mulf %12, %12 : vector<32x256xf32>
    %cst_12 = arith.constant dense<0.000000e+00> : vector<32xf32>
    %14 = vector.multi_reduction <add>, %13, %cst_12 [1] : vector<32x256xf32> to vector<32xf32>
    %15 = vector.shape_cast %14 : vector<32xf32> to vector<32x1xf32>
    %cst_13 = arith.constant dense<0.000000e+00> : vector<32x1xf32>
    %16 = tpu.matmul %3, %15, %cst_13 {dimension_numbers = #tpu.dot_dimension_numbers<[1], [0], [0], [1], [0, 0, 1, 1], [], []>} : vector<32x32xf32>, vector<32x1xf32>, vector<32x1xf32> -> vector<32x1xf32>
    %cst_14 = arith.constant 9.765625E-4 : f32
    %17 = vector.broadcast %cst_14 : f32 to vector<32x1xf32>
    %18 = arith.mulf %16, %17 : vector<32x1xf32>
    %cst_15 = arith.constant 9.99999974E-6 : f32
    %19 = vector.broadcast %cst_15 : f32 to vector<32x1xf32>
    %20 = arith.addf %18, %19 : vector<32x1xf32>
    %21 = math.rsqrt %20 : vector<32x1xf32>
    %22 = vector.broadcast %21 : vector<32x1xf32> to vector<32x256xf32>
    %23 = arith.mulf %12, %22 : vector<32x256xf32>
    %24 = vector.broadcast %4 : vector<32x1xf32> to vector<32x256xf32>
    %25 = arith.mulf %23, %24 : vector<32x256xf32>
    %26 = vector.broadcast %5 : vector<32x1xf32> to vector<32x256xf32>
    %27 = arith.addf %25, %26 : vector<32x256xf32>
    %cst_16 = arith.constant 5.000000e-01 : f32
    %28 = vector.broadcast %cst_16 : f32 to vector<32x256xf32>
    %29 = arith.mulf %28, %27 : vector<32x256xf32>
    %30 = math.tanh %29 : vector<32x256xf32>
    %cst_17 = arith.constant 5.000000e-01 : f32
    %31 = vector.broadcast %cst_17 : f32 to vector<32x256xf32>
    %32 = arith.mulf %31, %30 : vector<32x256xf32>
    %cst_18 = arith.constant 5.000000e-01 : f32
    %33 = vector.broadcast %cst_18 : f32 to vector<32x256xf32>
    %34 = arith.addf %32, %33 : vector<32x256xf32>
    %35 = arith.mulf %27, %34 : vector<32x256xf32>
    %c0_19 = arith.constant 0 : index
    %c0_20 = arith.constant 0 : index
    %36 = vector.load %arg8[%c0_19, %c0_20] : memref<32x1xf32, #tpu.memory_space<vmem>>, vector<32x1xf32>
    %c17_i32 = arith.constant 17 : i32
    %37 = tpu.dynamic_rotate %35 by %c17_i32 dim 1 : vector<32x256xf32>, i32 -> vector<32x256xf32>
    %38 = vector.extract_strided_slice %0 {offsets = [0, 0], sizes = [1, 256], strides = [1, 1]} : vector<9x256xf32> to vector<1x256xf32>
    %39 = vector.broadcast %38 : vector<1x256xf32> to vector<32x256xf32>
    %40 = arith.mulf %37, %39 : vector<32x256xf32>
    %c0_21 = arith.constant 0 : index
    %c0_22 = arith.constant 0 : index
    %41 = vector.load %arg20[%c0_21, %c0_22] : memref<96x256xf32, #tpu.memory_space<vmem>>, vector<32x256xf32>
    tpu.vector_store %arg20[%c0_21, %c0_22], %40 {strides = array<i32>} : memref<96x256xf32, #tpu.memory_space<vmem>>, vector<32x256xf32>,
    %c16_i32 = arith.constant 16 : i32
    %42 = tpu.dynamic_rotate %35 by %c16_i32 dim 1 : vector<32x256xf32>, i32 -> vector<32x256xf32>
    %43 = vector.extract_strided_slice %0 {offsets = [1, 0], sizes = [1, 256], strides = [1, 1]} : vector<9x256xf32> to vector<1x256xf32>
    %44 = vector.broadcast %43 : vector<1x256xf32> to vector<32x256xf32>
    %45 = arith.mulf %42, %44 : vector<32x256xf32>
    %c32 = arith.constant 32 : index
    %c0_23 = arith.constant 0 : index
    %46 = vector.load %arg20[%c32, %c0_23] : memref<96x256xf32, #tpu.memory_space<vmem>>, vector<32x256xf32>
    tpu.vector_store %arg20[%c32, %c0_23], %45 {strides = array<i32>} : memref<96x256xf32, #tpu.memory_space<vmem>>, vector<32x256xf32>,
    %c15_i32 = arith.constant 15 : i32
    %47 = tpu.dynamic_rotate %35 by %c15_i32 dim 1 : vector<32x256xf32>, i32 -> vector<32x256xf32>
    %48 = vector.extract_strided_slice %0 {offsets = [2, 0], sizes = [1, 256], strides = [1, 1]} : vector<9x256xf32> to vector<1x256xf32>
    %49 = vector.broadcast %48 : vector<1x256xf32> to vector<32x256xf32>
    %50 = arith.mulf %47, %49 : vector<32x256xf32>
    %c64 = arith.constant 64 : index
    %c0_24 = arith.constant 0 : index
    %51 = vector.load %arg20[%c64, %c0_24] : memref<96x256xf32, #tpu.memory_space<vmem>>, vector<32x256xf32>
    tpu.vector_store %arg20[%c64, %c0_24], %50 {strides = array<i32>} : memref<96x256xf32, #tpu.memory_space<vmem>>, vector<32x256xf32>,
    %c0_25 = arith.constant 0 : index
    %c0_26 = arith.constant 0 : index
    %c0_27 = arith.constant 0 : index
    %52 = vector.load %arg7[%c0_25, %c0_26, %c0_27] : memref<3x32x96xf32, #tpu.memory_space<vmem>>, vector<1x32x96xf32>
    %53 = vector.shape_cast %52 : vector<1x32x96xf32> to vector<32x96xf32>
    %c0_28 = arith.constant 0 : index
    %c0_29 = arith.constant 0 : index
    %54 = vector.load %arg20[%c0_28, %c0_29] : memref<96x256xf32, #tpu.memory_space<vmem>>, vector<96x256xf32>
    %cst_30 = arith.constant dense<0.000000e+00> : vector<32x256xf32>
    %55 = tpu.matmul %53, %54, %cst_30 {dimension_numbers = #tpu.dot_dimension_numbers<[1], [0], [0], [1], [0, 0, 1, 1], [], []>} : vector<32x96xf32>, vector<96x256xf32>, vector<32x256xf32> -> vector<32x256xf32>
    %c1_i32 = arith.constant 1 : i32
    %56 = tpu.dynamic_rotate %35 by %c1_i32 dim 1 : vector<32x256xf32>, i32 -> vector<32x256xf32>
    %57 = vector.extract_strided_slice %0 {offsets = [3, 0], sizes = [1, 256], strides = [1, 1]} : vector<9x256xf32> to vector<1x256xf32>
    %58 = vector.broadcast %57 : vector<1x256xf32> to vector<32x256xf32>
    %59 = arith.mulf %56, %58 : vector<32x256xf32>
    %c0_31 = arith.constant 0 : index
    %c0_32 = arith.constant 0 : index
    %60 = vector.load %arg20[%c0_31, %c0_32] : memref<96x256xf32, #tpu.memory_space<vmem>>, vector<32x256xf32>
    tpu.vector_store %arg20[%c0_31, %c0_32], %59 {strides = array<i32>} : memref<96x256xf32, #tpu.memory_space<vmem>>, vector<32x256xf32>,
    %c32_33 = arith.constant 32 : index
    %c0_34 = arith.constant 0 : index
    %61 = vector.load %arg20[%c32_33, %c0_34] : memref<96x256xf32, #tpu.memory_space<vmem>>, vector<32x256xf32>
    tpu.vector_store %arg20[%c32_33, %c0_34], %35 {strides = array<i32>} : memref<96x256xf32, #tpu.memory_space<vmem>>, vector<32x256xf32>,
    %c255_i32 = arith.constant 255 : i32
    %62 = tpu.dynamic_rotate %35 by %c255_i32 dim 1 : vector<32x256xf32>, i32 -> vector<32x256xf32>
    %63 = vector.extract_strided_slice %0 {offsets = [5, 0], sizes = [1, 256], strides = [1, 1]} : vector<9x256xf32> to vector<1x256xf32>
    %64 = vector.broadcast %63 : vector<1x256xf32> to vector<32x256xf32>
    %65 = arith.mulf %62, %64 : vector<32x256xf32>
    %c64_35 = arith.constant 64 : index
    %c0_36 = arith.constant 0 : index
    %66 = vector.load %arg20[%c64_35, %c0_36] : memref<96x256xf32, #tpu.memory_space<vmem>>, vector<32x256xf32>
    tpu.vector_store %arg20[%c64_35, %c0_36], %65 {strides = array<i32>} : memref<96x256xf32, #tpu.memory_space<vmem>>, vector<32x256xf32>,
    %c1 = arith.constant 1 : index
    %c0_37 = arith.constant 0 : index
    %c0_38 = arith.constant 0 : index
    %67 = vector.load %arg7[%c1, %c0_37, %c0_38] : memref<3x32x96xf32, #tpu.memory_space<vmem>>, vector<1x32x96xf32>
    %68 = vector.shape_cast %67 : vector<1x32x96xf32> to vector<32x96xf32>
    %c0_39 = arith.constant 0 : index
    %c0_40 = arith.constant 0 : index
    %69 = vector.load %arg20[%c0_39, %c0_40] : memref<96x256xf32, #tpu.memory_space<vmem>>, vector<96x256xf32>
    %cst_41 = arith.constant dense<0.000000e+00> : vector<32x256xf32>
    %70 = tpu.matmul %68, %69, %cst_41 {dimension_numbers = #tpu.dot_dimension_numbers<[1], [0], [0], [1], [0, 0, 1, 1], [], []>} : vector<32x96xf32>, vector<96x256xf32>, vector<32x256xf32> -> vector<32x256xf32>
    %71 = arith.addf %55, %70 : vector<32x256xf32>
    %c241_i32 = arith.constant 241 : i32
    %72 = tpu.dynamic_rotate %35 by %c241_i32 dim 1 : vector<32x256xf32>, i32 -> vector<32x256xf32>
    %73 = vector.extract_strided_slice %0 {offsets = [6, 0], sizes = [1, 256], strides = [1, 1]} : vector<9x256xf32> to vector<1x256xf32>
    %74 = vector.broadcast %73 : vector<1x256xf32> to vector<32x256xf32>
    %75 = arith.mulf %72, %74 : vector<32x256xf32>
    %c0_42 = arith.constant 0 : index
    %c0_43 = arith.constant 0 : index
    %76 = vector.load %arg20[%c0_42, %c0_43] : memref<96x256xf32, #tpu.memory_space<vmem>>, vector<32x256xf32>
    tpu.vector_store %arg20[%c0_42, %c0_43], %75 {strides = array<i32>} : memref<96x256xf32, #tpu.memory_space<vmem>>, vector<32x256xf32>,
    %c240_i32 = arith.constant 240 : i32
    %77 = tpu.dynamic_rotate %35 by %c240_i32 dim 1 : vector<32x256xf32>, i32 -> vector<32x256xf32>
    %78 = vector.extract_strided_slice %0 {offsets = [7, 0], sizes = [1, 256], strides = [1, 1]} : vector<9x256xf32> to vector<1x256xf32>
    %79 = vector.broadcast %78 : vector<1x256xf32> to vector<32x256xf32>
    %80 = arith.mulf %77, %79 : vector<32x256xf32>
    %c32_44 = arith.constant 32 : index
    %c0_45 = arith.constant 0 : index
    %81 = vector.load %arg20[%c32_44, %c0_45] : memref<96x256xf32, #tpu.memory_space<vmem>>, vector<32x256xf32>
    tpu.vector_store %arg20[%c32_44, %c0_45], %80 {strides = array<i32>} : memref<96x256xf32, #tpu.memory_space<vmem>>, vector<32x256xf32>,
    %c239_i32 = arith.constant 239 : i32
    %82 = tpu.dynamic_rotate %35 by %c239_i32 dim 1 : vector<32x256xf32>, i32 -> vector<32x256xf32>
    %83 = vector.extract_strided_slice %0 {offsets = [8, 0], sizes = [1, 256], strides = [1, 1]} : vector<9x256xf32> to vector<1x256xf32>
    %84 = vector.broadcast %83 : vector<1x256xf32> to vector<32x256xf32>
    %85 = arith.mulf %82, %84 : vector<32x256xf32>
    %c64_46 = arith.constant 64 : index
    %c0_47 = arith.constant 0 : index
    %86 = vector.load %arg20[%c64_46, %c0_47] : memref<96x256xf32, #tpu.memory_space<vmem>>, vector<32x256xf32>
    tpu.vector_store %arg20[%c64_46, %c0_47], %85 {strides = array<i32>} : memref<96x256xf32, #tpu.memory_space<vmem>>, vector<32x256xf32>,
    %c2 = arith.constant 2 : index
    %c0_48 = arith.constant 0 : index
    %c0_49 = arith.constant 0 : index
    %87 = vector.load %arg7[%c2, %c0_48, %c0_49] : memref<3x32x96xf32, #tpu.memory_space<vmem>>, vector<1x32x96xf32>
    %88 = vector.shape_cast %87 : vector<1x32x96xf32> to vector<32x96xf32>
    %c0_50 = arith.constant 0 : index
    %c0_51 = arith.constant 0 : index
    %89 = vector.load %arg20[%c0_50, %c0_51] : memref<96x256xf32, #tpu.memory_space<vmem>>, vector<96x256xf32>
    %cst_52 = arith.constant dense<0.000000e+00> : vector<32x256xf32>
    %90 = tpu.matmul %88, %89, %cst_52 {dimension_numbers = #tpu.dot_dimension_numbers<[1], [0], [0], [1], [0, 0, 1, 1], [], []>} : vector<32x96xf32>, vector<96x256xf32>, vector<32x256xf32> -> vector<32x256xf32>
    %91 = arith.addf %71, %90 : vector<32x256xf32>
    %92 = vector.broadcast %36 : vector<32x1xf32> to vector<32x256xf32>
    %93 = arith.addf %91, %92 : vector<32x256xf32>
    %c0_53 = arith.constant 0 : index
    %c0_54 = arith.constant 0 : index
    %c0_55 = arith.constant 0 : index
    %94 = vector.load %arg2[%c0_53, %c0_54, %c0_55] : memref<1x32x1xf32, #tpu.memory_space<vmem>>, vector<1x32x1xf32>
    %95 = vector.shape_cast %94 : vector<1x32x1xf32> to vector<32x1xf32>
    %96 = vector.broadcast %95 : vector<32x1xf32> to vector<32x256xf32>
    %97 = arith.addf %93, %96 : vector<32x256xf32>
    %c0_56 = arith.constant 0 : index
    %c0_57 = arith.constant 0 : index
    %98 = vector.load %arg11[%c0_56, %c0_57] : memref<32x32xf32, #tpu.memory_space<vmem>>, vector<32x32xf32>
    %c0_58 = arith.constant 0 : index
    %c0_59 = arith.constant 0 : index
    %99 = vector.load %arg9[%c0_58, %c0_59] : memref<32x1xf32, #tpu.memory_space<vmem>>, vector<32x1xf32>
    %c0_60 = arith.constant 0 : index
    %c0_61 = arith.constant 0 : index
    %100 = vector.load %arg10[%c0_60, %c0_61] : memref<32x1xf32, #tpu.memory_space<vmem>>, vector<32x1xf32>
    %cst_62 = arith.constant dense<0.000000e+00> : vector<32xf32>
    %101 = vector.multi_reduction <add>, %97, %cst_62 [1] : vector<32x256xf32> to vector<32xf32>
    %102 = vector.shape_cast %101 : vector<32xf32> to vector<32x1xf32>
    %cst_63 = arith.constant dense<0.000000e+00> : vector<32x1xf32>
    %103 = tpu.matmul %98, %102, %cst_63 {dimension_numbers = #tpu.dot_dimension_numbers<[1], [0], [0], [1], [0, 0, 1, 1], [], []>} : vector<32x32xf32>, vector<32x1xf32>, vector<32x1xf32> -> vector<32x1xf32>
    %cst_64 = arith.constant 9.765625E-4 : f32
    %104 = vector.broadcast %cst_64 : f32 to vector<32x1xf32>
    %105 = arith.mulf %103, %104 : vector<32x1xf32>
    %106 = vector.broadcast %105 : vector<32x1xf32> to vector<32x256xf32>
    %107 = arith.subf %97, %106 : vector<32x256xf32>
    %108 = arith.mulf %107, %107 : vector<32x256xf32>
    %cst_65 = arith.constant dense<0.000000e+00> : vector<32xf32>
    %109 = vector.multi_reduction <add>, %108, %cst_65 [1] : vector<32x256xf32> to vector<32xf32>
    %110 = vector.shape_cast %109 : vector<32xf32> to vector<32x1xf32>
    %cst_66 = arith.constant dense<0.000000e+00> : vector<32x1xf32>
    %111 = tpu.matmul %98, %110, %cst_66 {dimension_numbers = #tpu.dot_dimension_numbers<[1], [0], [0], [1], [0, 0, 1, 1], [], []>} : vector<32x32xf32>, vector<32x1xf32>, vector<32x1xf32> -> vector<32x1xf32>
    %cst_67 = arith.constant 9.765625E-4 : f32
    %112 = vector.broadcast %cst_67 : f32 to vector<32x1xf32>
    %113 = arith.mulf %111, %112 : vector<32x1xf32>
    %cst_68 = arith.constant 9.99999974E-6 : f32
    %114 = vector.broadcast %cst_68 : f32 to vector<32x1xf32>
    %115 = arith.addf %113, %114 : vector<32x1xf32>
    %116 = math.rsqrt %115 : vector<32x1xf32>
    %117 = vector.broadcast %116 : vector<32x1xf32> to vector<32x256xf32>
    %118 = arith.mulf %107, %117 : vector<32x256xf32>
    %119 = vector.broadcast %99 : vector<32x1xf32> to vector<32x256xf32>
    %120 = arith.mulf %118, %119 : vector<32x256xf32>
    %121 = vector.broadcast %100 : vector<32x1xf32> to vector<32x256xf32>
    %122 = arith.addf %120, %121 : vector<32x256xf32>
    %cst_69 = arith.constant 5.000000e-01 : f32
    %123 = vector.broadcast %cst_69 : f32 to vector<32x256xf32>
    %124 = arith.mulf %123, %122 : vector<32x256xf32>
    %125 = math.tanh %124 : vector<32x256xf32>
    %cst_70 = arith.constant 5.000000e-01 : f32
    %126 = vector.broadcast %cst_70 : f32 to vector<32x256xf32>
    %127 = arith.mulf %126, %125 : vector<32x256xf32>
    %cst_71 = arith.constant 5.000000e-01 : f32
    %128 = vector.broadcast %cst_71 : f32 to vector<32x256xf32>
    %129 = arith.addf %127, %128 : vector<32x256xf32>
    %130 = arith.mulf %122, %129 : vector<32x256xf32>
    %c0_72 = arith.constant 0 : index
    %c0_73 = arith.constant 0 : index
    %131 = vector.load %arg13[%c0_72, %c0_73] : memref<32x1xf32, #tpu.memory_space<vmem>>, vector<32x1xf32>
    %c17_i32_74 = arith.constant 17 : i32
    %132 = tpu.dynamic_rotate %130 by %c17_i32_74 dim 1 : vector<32x256xf32>, i32 -> vector<32x256xf32>
    %133 = vector.extract_strided_slice %0 {offsets = [0, 0], sizes = [1, 256], strides = [1, 1]} : vector<9x256xf32> to vector<1x256xf32>
    %134 = vector.broadcast %133 : vector<1x256xf32> to vector<32x256xf32>
    %135 = arith.mulf %132, %134 : vector<32x256xf32>
    %c0_75 = arith.constant 0 : index
    %c0_76 = arith.constant 0 : index
    %136 = vector.load %arg21[%c0_75, %c0_76] : memref<96x256xf32, #tpu.memory_space<vmem>>, vector<32x256xf32>
    tpu.vector_store %arg21[%c0_75, %c0_76], %135 {strides = array<i32>} : memref<96x256xf32, #tpu.memory_space<vmem>>, vector<32x256xf32>,
    %c16_i32_77 = arith.constant 16 : i32
    %137 = tpu.dynamic_rotate %130 by %c16_i32_77 dim 1 : vector<32x256xf32>, i32 -> vector<32x256xf32>
    %138 = vector.extract_strided_slice %0 {offsets = [1, 0], sizes = [1, 256], strides = [1, 1]} : vector<9x256xf32> to vector<1x256xf32>
    %139 = vector.broadcast %138 : vector<1x256xf32> to vector<32x256xf32>
    %140 = arith.mulf %137, %139 : vector<32x256xf32>
    %c32_78 = arith.constant 32 : index
    %c0_79 = arith.constant 0 : index
    %141 = vector.load %arg21[%c32_78, %c0_79] : memref<96x256xf32, #tpu.memory_space<vmem>>, vector<32x256xf32>
    tpu.vector_store %arg21[%c32_78, %c0_79], %140 {strides = array<i32>} : memref<96x256xf32, #tpu.memory_space<vmem>>, vector<32x256xf32>,
    %c15_i32_80 = arith.constant 15 : i32
    %142 = tpu.dynamic_rotate %130 by %c15_i32_80 dim 1 : vector<32x256xf32>, i32 -> vector<32x256xf32>
    %143 = vector.extract_strided_slice %0 {offsets = [2, 0], sizes = [1, 256], strides = [1, 1]} : vector<9x256xf32> to vector<1x256xf32>
    %144 = vector.broadcast %143 : vector<1x256xf32> to vector<32x256xf32>
    %145 = arith.mulf %142, %144 : vector<32x256xf32>
    %c64_81 = arith.constant 64 : index
    %c0_82 = arith.constant 0 : index
    %146 = vector.load %arg21[%c64_81, %c0_82] : memref<96x256xf32, #tpu.memory_space<vmem>>, vector<32x256xf32>
    tpu.vector_store %arg21[%c64_81, %c0_82], %145 {strides = array<i32>} : memref<96x256xf32, #tpu.memory_space<vmem>>, vector<32x256xf32>,
    %c0_83 = arith.constant 0 : index
    %c0_84 = arith.constant 0 : index
    %c0_85 = arith.constant 0 : index
    %147 = vector.load %arg12[%c0_83, %c0_84, %c0_85] : memref<3x32x96xf32, #tpu.memory_space<vmem>>, vector<1x32x96xf32>
    %148 = vector.shape_cast %147 : vector<1x32x96xf32> to vector<32x96xf32>
    %c0_86 = arith.constant 0 : index
    %c0_87 = arith.constant 0 : index
    %149 = vector.load %arg21[%c0_86, %c0_87] : memref<96x256xf32, #tpu.memory_space<vmem>>, vector<96x256xf32>
    %cst_88 = arith.constant dense<0.000000e+00> : vector<32x256xf32>
    %150 = tpu.matmul %148, %149, %cst_88 {dimension_numbers = #tpu.dot_dimension_numbers<[1], [0], [0], [1], [0, 0, 1, 1], [], []>} : vector<32x96xf32>, vector<96x256xf32>, vector<32x256xf32> -> vector<32x256xf32>
    %c1_i32_89 = arith.constant 1 : i32
    %151 = tpu.dynamic_rotate %130 by %c1_i32_89 dim 1 : vector<32x256xf32>, i32 -> vector<32x256xf32>
    %152 = vector.extract_strided_slice %0 {offsets = [3, 0], sizes = [1, 256], strides = [1, 1]} : vector<9x256xf32> to vector<1x256xf32>
    %153 = vector.broadcast %152 : vector<1x256xf32> to vector<32x256xf32>
    %154 = arith.mulf %151, %153 : vector<32x256xf32>
    %c0_90 = arith.constant 0 : index
    %c0_91 = arith.constant 0 : index
    %155 = vector.load %arg21[%c0_90, %c0_91] : memref<96x256xf32, #tpu.memory_space<vmem>>, vector<32x256xf32>
    tpu.vector_store %arg21[%c0_90, %c0_91], %154 {strides = array<i32>} : memref<96x256xf32, #tpu.memory_space<vmem>>, vector<32x256xf32>,
    %c32_92 = arith.constant 32 : index
    %c0_93 = arith.constant 0 : index
    %156 = vector.load %arg21[%c32_92, %c0_93] : memref<96x256xf32, #tpu.memory_space<vmem>>, vector<32x256xf32>
    tpu.vector_store %arg21[%c32_92, %c0_93], %130 {strides = array<i32>} : memref<96x256xf32, #tpu.memory_space<vmem>>, vector<32x256xf32>,
    %c255_i32_94 = arith.constant 255 : i32
    %157 = tpu.dynamic_rotate %130 by %c255_i32_94 dim 1 : vector<32x256xf32>, i32 -> vector<32x256xf32>
    %158 = vector.extract_strided_slice %0 {offsets = [5, 0], sizes = [1, 256], strides = [1, 1]} : vector<9x256xf32> to vector<1x256xf32>
    %159 = vector.broadcast %158 : vector<1x256xf32> to vector<32x256xf32>
    %160 = arith.mulf %157, %159 : vector<32x256xf32>
    %c64_95 = arith.constant 64 : index
    %c0_96 = arith.constant 0 : index
    %161 = vector.load %arg21[%c64_95, %c0_96] : memref<96x256xf32, #tpu.memory_space<vmem>>, vector<32x256xf32>
    tpu.vector_store %arg21[%c64_95, %c0_96], %160 {strides = array<i32>} : memref<96x256xf32, #tpu.memory_space<vmem>>, vector<32x256xf32>,
    %c1_97 = arith.constant 1 : index
    %c0_98 = arith.constant 0 : index
    %c0_99 = arith.constant 0 : index
    %162 = vector.load %arg12[%c1_97, %c0_98, %c0_99] : memref<3x32x96xf32, #tpu.memory_space<vmem>>, vector<1x32x96xf32>
    %163 = vector.shape_cast %162 : vector<1x32x96xf32> to vector<32x96xf32>
    %c0_100 = arith.constant 0 : index
    %c0_101 = arith.constant 0 : index
    %164 = vector.load %arg21[%c0_100, %c0_101] : memref<96x256xf32, #tpu.memory_space<vmem>>, vector<96x256xf32>
    %cst_102 = arith.constant dense<0.000000e+00> : vector<32x256xf32>
    %165 = tpu.matmul %163, %164, %cst_102 {dimension_numbers = #tpu.dot_dimension_numbers<[1], [0], [0], [1], [0, 0, 1, 1], [], []>} : vector<32x96xf32>, vector<96x256xf32>, vector<32x256xf32> -> vector<32x256xf32>
    %166 = arith.addf %150, %165 : vector<32x256xf32>
    %c241_i32_103 = arith.constant 241 : i32
    %167 = tpu.dynamic_rotate %130 by %c241_i32_103 dim 1 : vector<32x256xf32>, i32 -> vector<32x256xf32>
    %168 = vector.extract_strided_slice %0 {offsets = [6, 0], sizes = [1, 256], strides = [1, 1]} : vector<9x256xf32> to vector<1x256xf32>
    %169 = vector.broadcast %168 : vector<1x256xf32> to vector<32x256xf32>
    %170 = arith.mulf %167, %169 : vector<32x256xf32>
    %c0_104 = arith.constant 0 : index
    %c0_105 = arith.constant 0 : index
    %171 = vector.load %arg21[%c0_104, %c0_105] : memref<96x256xf32, #tpu.memory_space<vmem>>, vector<32x256xf32>
    tpu.vector_store %arg21[%c0_104, %c0_105], %170 {strides = array<i32>} : memref<96x256xf32, #tpu.memory_space<vmem>>, vector<32x256xf32>,
    %c240_i32_106 = arith.constant 240 : i32
    %172 = tpu.dynamic_rotate %130 by %c240_i32_106 dim 1 : vector<32x256xf32>, i32 -> vector<32x256xf32>
    %173 = vector.extract_strided_slice %0 {offsets = [7, 0], sizes = [1, 256], strides = [1, 1]} : vector<9x256xf32> to vector<1x256xf32>
    %174 = vector.broadcast %173 : vector<1x256xf32> to vector<32x256xf32>
    %175 = arith.mulf %172, %174 : vector<32x256xf32>
    %c32_107 = arith.constant 32 : index
    %c0_108 = arith.constant 0 : index
    %176 = vector.load %arg21[%c32_107, %c0_108] : memref<96x256xf32, #tpu.memory_space<vmem>>, vector<32x256xf32>
    tpu.vector_store %arg21[%c32_107, %c0_108], %175 {strides = array<i32>} : memref<96x256xf32, #tpu.memory_space<vmem>>, vector<32x256xf32>,
    %c239_i32_109 = arith.constant 239 : i32
    %177 = tpu.dynamic_rotate %130 by %c239_i32_109 dim 1 : vector<32x256xf32>, i32 -> vector<32x256xf32>
    %178 = vector.extract_strided_slice %0 {offsets = [8, 0], sizes = [1, 256], strides = [1, 1]} : vector<9x256xf32> to vector<1x256xf32>
    %179 = vector.broadcast %178 : vector<1x256xf32> to vector<32x256xf32>
    %180 = arith.mulf %177, %179 : vector<32x256xf32>
    %c64_110 = arith.constant 64 : index
    %c0_111 = arith.constant 0 : index
    %181 = vector.load %arg21[%c64_110, %c0_111] : memref<96x256xf32, #tpu.memory_space<vmem>>, vector<32x256xf32>
    tpu.vector_store %arg21[%c64_110, %c0_111], %180 {strides = array<i32>} : memref<96x256xf32, #tpu.memory_space<vmem>>, vector<32x256xf32>,
    %c2_112 = arith.constant 2 : index
    %c0_113 = arith.constant 0 : index
    %c0_114 = arith.constant 0 : index
    %182 = vector.load %arg12[%c2_112, %c0_113, %c0_114] : memref<3x32x96xf32, #tpu.memory_space<vmem>>, vector<1x32x96xf32>
    %183 = vector.shape_cast %182 : vector<1x32x96xf32> to vector<32x96xf32>
    %c0_115 = arith.constant 0 : index
    %c0_116 = arith.constant 0 : index
    %184 = vector.load %arg21[%c0_115, %c0_116] : memref<96x256xf32, #tpu.memory_space<vmem>>, vector<96x256xf32>
    %cst_117 = arith.constant dense<0.000000e+00> : vector<32x256xf32>
    %185 = tpu.matmul %183, %184, %cst_117 {dimension_numbers = #tpu.dot_dimension_numbers<[1], [0], [0], [1], [0, 0, 1, 1], [], []>} : vector<32x96xf32>, vector<96x256xf32>, vector<32x256xf32> -> vector<32x256xf32>
    %186 = arith.addf %166, %185 : vector<32x256xf32>
    %187 = vector.broadcast %131 : vector<32x1xf32> to vector<32x256xf32>
    %188 = arith.addf %186, %187 : vector<32x256xf32>
    %189 = arith.addf %188, %2 : vector<32x256xf32>
    %c0_118 = arith.constant 0 : index
    %c0_119 = arith.constant 0 : index
    %190 = vector.load %arg11[%c0_118, %c0_119] : memref<32x32xf32, #tpu.memory_space<vmem>>, vector<32x32xf32>
    %c0_120 = arith.constant 0 : index
    %c0_121 = arith.constant 0 : index
    %191 = vector.load %arg14[%c0_120, %c0_121] : memref<32x1xf32, #tpu.memory_space<vmem>>, vector<32x1xf32>
    %c0_122 = arith.constant 0 : index
    %c0_123 = arith.constant 0 : index
    %192 = vector.load %arg15[%c0_122, %c0_123] : memref<32x1xf32, #tpu.memory_space<vmem>>, vector<32x1xf32>
    %cst_124 = arith.constant dense<0.000000e+00> : vector<32xf32>
    %193 = vector.multi_reduction <add>, %189, %cst_124 [1] : vector<32x256xf32> to vector<32xf32>
    %194 = vector.shape_cast %193 : vector<32xf32> to vector<32x1xf32>
    %cst_125 = arith.constant dense<0.000000e+00> : vector<32x1xf32>
    %195 = tpu.matmul %190, %194, %cst_125 {dimension_numbers = #tpu.dot_dimension_numbers<[1], [0], [0], [1], [0, 0, 1, 1], [], []>} : vector<32x32xf32>, vector<32x1xf32>, vector<32x1xf32> -> vector<32x1xf32>
    %cst_126 = arith.constant 9.765625E-4 : f32
    %196 = vector.broadcast %cst_126 : f32 to vector<32x1xf32>
    %197 = arith.mulf %195, %196 : vector<32x1xf32>
    %198 = vector.broadcast %197 : vector<32x1xf32> to vector<32x256xf32>
    %199 = arith.subf %189, %198 : vector<32x256xf32>
    %200 = arith.mulf %199, %199 : vector<32x256xf32>
    %cst_127 = arith.constant dense<0.000000e+00> : vector<32xf32>
    %201 = vector.multi_reduction <add>, %200, %cst_127 [1] : vector<32x256xf32> to vector<32xf32>
    %202 = vector.shape_cast %201 : vector<32xf32> to vector<32x1xf32>
    %cst_128 = arith.constant dense<0.000000e+00> : vector<32x1xf32>
    %203 = tpu.matmul %190, %202, %cst_128 {dimension_numbers = #tpu.dot_dimension_numbers<[1], [0], [0], [1], [0, 0, 1, 1], [], []>} : vector<32x32xf32>, vector<32x1xf32>, vector<32x1xf32> -> vector<32x1xf32>
    %cst_129 = arith.constant 9.765625E-4 : f32
    %204 = vector.broadcast %cst_129 : f32 to vector<32x1xf32>
    %205 = arith.mulf %203, %204 : vector<32x1xf32>
    %cst_130 = arith.constant 9.99999974E-6 : f32
    %206 = vector.broadcast %cst_130 : f32 to vector<32x1xf32>
    %207 = arith.addf %205, %206 : vector<32x1xf32>
    %208 = math.rsqrt %207 : vector<32x1xf32>
    %209 = vector.broadcast %208 : vector<32x1xf32> to vector<32x256xf32>
    %210 = arith.mulf %199, %209 : vector<32x256xf32>
    %211 = vector.broadcast %191 : vector<32x1xf32> to vector<32x256xf32>
    %212 = arith.mulf %210, %211 : vector<32x256xf32>
    %213 = vector.broadcast %192 : vector<32x1xf32> to vector<32x256xf32>
    %214 = arith.addf %212, %213 : vector<32x256xf32>
    %c0_131 = arith.constant 0 : index
    %c0_132 = arith.constant 0 : index
    %215 = vector.load %arg16[%c0_131, %c0_132] : memref<96x32xf32, #tpu.memory_space<vmem>>, vector<96x32xf32>
    %cst_133 = arith.constant dense<0.000000e+00> : vector<96x256xf32>
    %216 = tpu.matmul %215, %214, %cst_133 {dimension_numbers = #tpu.dot_dimension_numbers<[1], [0], [0], [1], [0, 0, 1, 1], [], []>} : vector<96x32xf32>, vector<32x256xf32>, vector<96x256xf32> -> vector<96x256xf32>
    %217 = vector.extract_strided_slice %216 {offsets = [0, 0], sizes = [32, 256], strides = [1, 1]} : vector<96x256xf32> to vector<32x256xf32>
    %218 = vector.extract_strided_slice %216 {offsets = [32, 0], sizes = [32, 256], strides = [1, 1]} : vector<96x256xf32> to vector<32x256xf32>
    %219 = vector.extract_strided_slice %216 {offsets = [64, 0], sizes = [32, 256], strides = [1, 1]} : vector<96x256xf32> to vector<32x256xf32>
    %cst_134 = arith.constant dense<0.000000e+00> : vector<256x256xf32>
    %220 = tpu.matmul %217, %218, %cst_134 {dimension_numbers = #tpu.dot_dimension_numbers<[0], [0], [1], [1], [0, 1, 1, 1], [], []>} : vector<32x256xf32>, vector<32x256xf32>, vector<256x256xf32> -> vector<256x256xf32>
    %cst_135 = arith.constant dense<0xFF800000> : vector<256xf32>
    %221 = vector.multi_reduction <maximumf>, %220, %cst_135 [1] : vector<256x256xf32> to vector<256xf32>
    %222 = vector.shape_cast %221 : vector<256xf32> to vector<256x1xf32>
    %223 = vector.broadcast %222 : vector<256x1xf32> to vector<256x256xf32>
    %224 = arith.subf %220, %223 : vector<256x256xf32>
    %225 = math.exp %224 : vector<256x256xf32>
    %cst_136 = arith.constant dense<0.000000e+00> : vector<256xf32>
    %226 = vector.multi_reduction <add>, %225, %cst_136 [1] : vector<256x256xf32> to vector<256xf32>
    %227 = vector.shape_cast %226 : vector<256xf32> to vector<256x1xf32>
    %228 = vector.broadcast %227 : vector<256x1xf32> to vector<256x256xf32>
    %229 = arith.divf %225, %228 : vector<256x256xf32>
    %cst_137 = arith.constant dense<0.000000e+00> : vector<32x256xf32>
    %230 = tpu.matmul %219, %229, %cst_137 {dimension_numbers = #tpu.dot_dimension_numbers<[1], [1], [0], [0], [0, 0, 1, 0], [], []>} : vector<32x256xf32>, vector<256x256xf32>, vector<32x256xf32> -> vector<32x256xf32>
    %c0_138 = arith.constant 0 : index
    %c0_139 = arith.constant 0 : index
    %231 = vector.load %arg17[%c0_138, %c0_139] : memref<32x32xf32, #tpu.memory_space<vmem>>, vector<32x32xf32>
    %cst_140 = arith.constant dense<0.000000e+00> : vector<32x256xf32>
    %232 = tpu.matmul %231, %230, %cst_140 {dimension_numbers = #tpu.dot_dimension_numbers<[1], [0], [0], [1], [0, 0, 1, 1], [], []>} : vector<32x32xf32>, vector<32x256xf32>, vector<32x256xf32> -> vector<32x256xf32>
    %c0_141 = arith.constant 0 : index
    %c0_142 = arith.constant 0 : index
    %233 = vector.load %arg18[%c0_141, %c0_142] : memref<32x1xf32, #tpu.memory_space<vmem>>, vector<32x1xf32>
    %234 = vector.broadcast %233 : vector<32x1xf32> to vector<32x256xf32>
    %235 = arith.addf %232, %234 : vector<32x256xf32>
    %236 = arith.addf %235, %189 : vector<32x256xf32>
    %c0_143 = arith.constant 0 : index
    %c0_144 = arith.constant 0 : index
    %c0_145 = arith.constant 0 : index
    %237 = vector.load %arg19[%c0_143, %c0_144, %c0_145] : memref<1x32x256xf32, #tpu.memory_space<vmem>>, vector<1x32x256xf32>
    %238 = vector.shape_cast %237 : vector<1x32x256xf32> to vector<32x256xf32>
    %239 = vector.shape_cast %236 : vector<32x256xf32> to vector<1x32x256xf32>
    tpu.vector_store %arg19[%c0_143, %c0_144, %c0_145], %239 {strides = array<i32>} : memref<1x32x256xf32, #tpu.memory_space<vmem>>, vector<1x32x256xf32>,
    return
  }
  func.func @transform_0(%arg0: i32) -> (i32, i32, i32) {
    %c0_i32 = arith.constant 0 : i32
    %c0_i32_0 = arith.constant 0 : i32
    %c0_i32_1 = arith.constant 0 : i32
    return %arg0, %c0_i32, %c0_i32_0 : i32, i32, i32
  }
  func.func @transform_1(%arg0: i32) -> (i32, i32, i32) {
    %c0_i32 = arith.constant 0 : i32
    %c0_i32_0 = arith.constant 0 : i32
    %c0_i32_1 = arith.constant 0 : i32
    return %arg0, %c0_i32, %c0_i32_0 : i32, i32, i32
  }
  func.func @transform_2(%arg0: i32) -> (i32, i32) {
    %c0_i32 = arith.constant 0 : i32
    %c0_i32_0 = arith.constant 0 : i32
    %c0_i32_1 = arith.constant 0 : i32
    return %c0_i32, %c0_i32_0 : i32, i32
  }
  func.func @transform_3(%arg0: i32) -> (i32, i32) {
    %c0_i32 = arith.constant 0 : i32
    %c0_i32_0 = arith.constant 0 : i32
    %c0_i32_1 = arith.constant 0 : i32
    return %c0_i32, %c0_i32_0 : i32, i32
  }
  func.func @transform_4(%arg0: i32) -> (i32, i32) {
    %c0_i32 = arith.constant 0 : i32
    %c0_i32_0 = arith.constant 0 : i32
    %c0_i32_1 = arith.constant 0 : i32
    return %c0_i32, %c0_i32_0 : i32, i32
  }
  func.func @transform_5(%arg0: i32) -> (i32, i32) {
    %c0_i32 = arith.constant 0 : i32
    %c0_i32_0 = arith.constant 0 : i32
    %c0_i32_1 = arith.constant 0 : i32
    return %c0_i32, %c0_i32_0 : i32, i32
  }
  func.func @transform_6(%arg0: i32) -> (i32, i32, i32) {
    %c0_i32 = arith.constant 0 : i32
    %c0_i32_0 = arith.constant 0 : i32
    %c0_i32_1 = arith.constant 0 : i32
    %c0_i32_2 = arith.constant 0 : i32
    return %c0_i32, %c0_i32_0, %c0_i32_1 : i32, i32, i32
  }
  func.func @transform_7(%arg0: i32) -> (i32, i32) {
    %c0_i32 = arith.constant 0 : i32
    %c0_i32_0 = arith.constant 0 : i32
    %c0_i32_1 = arith.constant 0 : i32
    return %c0_i32, %c0_i32_0 : i32, i32
  }
  func.func @transform_8(%arg0: i32) -> (i32, i32) {
    %c0_i32 = arith.constant 0 : i32
    %c0_i32_0 = arith.constant 0 : i32
    %c0_i32_1 = arith.constant 0 : i32
    return %c0_i32, %c0_i32_0 : i32, i32
  }
  func.func @transform_9(%arg0: i32) -> (i32, i32) {
    %c0_i32 = arith.constant 0 : i32
    %c0_i32_0 = arith.constant 0 : i32
    %c0_i32_1 = arith.constant 0 : i32
    return %c0_i32, %c0_i32_0 : i32, i32
  }
  func.func @transform_10(%arg0: i32) -> (i32, i32) {
    %c0_i32 = arith.constant 0 : i32
    %c0_i32_0 = arith.constant 0 : i32
    %c0_i32_1 = arith.constant 0 : i32
    return %c0_i32, %c0_i32_0 : i32, i32
  }
  func.func @transform_11(%arg0: i32) -> (i32, i32, i32) {
    %c0_i32 = arith.constant 0 : i32
    %c0_i32_0 = arith.constant 0 : i32
    %c0_i32_1 = arith.constant 0 : i32
    %c0_i32_2 = arith.constant 0 : i32
    return %c0_i32, %c0_i32_0, %c0_i32_1 : i32, i32, i32
  }
  func.func @transform_12(%arg0: i32) -> (i32, i32) {
    %c0_i32 = arith.constant 0 : i32
    %c0_i32_0 = arith.constant 0 : i32
    %c0_i32_1 = arith.constant 0 : i32
    return %c0_i32, %c0_i32_0 : i32, i32
  }
  func.func @transform_13(%arg0: i32) -> (i32, i32) {
    %c0_i32 = arith.constant 0 : i32
    %c0_i32_0 = arith.constant 0 : i32
    %c0_i32_1 = arith.constant 0 : i32
    return %c0_i32, %c0_i32_0 : i32, i32
  }
  func.func @transform_14(%arg0: i32) -> (i32, i32) {
    %c0_i32 = arith.constant 0 : i32
    %c0_i32_0 = arith.constant 0 : i32
    %c0_i32_1 = arith.constant 0 : i32
    return %c0_i32, %c0_i32_0 : i32, i32
  }
  func.func @transform_15(%arg0: i32) -> (i32, i32) {
    %c0_i32 = arith.constant 0 : i32
    %c0_i32_0 = arith.constant 0 : i32
    %c0_i32_1 = arith.constant 0 : i32
    return %c0_i32, %c0_i32_0 : i32, i32
  }
  func.func @transform_16(%arg0: i32) -> (i32, i32) {
    %c0_i32 = arith.constant 0 : i32
    %c0_i32_0 = arith.constant 0 : i32
    %c0_i32_1 = arith.constant 0 : i32
    return %c0_i32, %c0_i32_0 : i32, i32
  }
  func.func @transform_17(%arg0: i32) -> (i32, i32) {
    %c0_i32 = arith.constant 0 : i32
    %c0_i32_0 = arith.constant 0 : i32
    %c0_i32_1 = arith.constant 0 : i32
    return %c0_i32, %c0_i32_0 : i32, i32
  }
  func.func @transform_18(%arg0: i32) -> (i32, i32, i32) {
    %c0_i32 = arith.constant 0 : i32
    %c0_i32_0 = arith.constant 0 : i32
    %c0_i32_1 = arith.constant 0 : i32
    return %arg0, %c0_i32, %c0_i32_0 : i32, i32, i32
  }
}

</mosaic_0001>

<llo_original>
// kernel: resnet_block_with_attn_forward.1
$region0: #{resnet_block_with_attn_forward.1}
  #allocation0 [shape = 'u32[]', space=smem, size = 0x4, offset = 0x4, fixed_abs, tag = 'smem constant byte address 0x4 - core index']
  #allocation1 [shape = 'u32[144,128]{1,0:T(1,128)}', space=vmem, size = 0x12000, scoped, tag = 'internal scratch']
  #allocation2 [shape = 'f32[96,256]{1,0:T(8,128)}', space=vmem, size = 0x18000, scoped, tag = 'scratch operand']
  #allocation3 [shape = 'f32[96,256]{1,0:T(8,128)}', space=vmem, size = 0x18000, scoped, tag = 'scratch operand']
  %s0 = inlined_call_operand.vmem [shape: f32[2,32,256], index: 0, kind: input, shape index: {}]
  %s1 = inlined_call_operand.vmem [shape: f32[2,32,1], index: 1, kind: input, shape index: {}]
  %s2 = inlined_call_operand.vmem [shape: f32[9,256], index: 2, kind: input, shape index: {}]
  %s3 = inlined_call_operand.vmem [shape: f32[32,1], index: 3, kind: input, shape index: {}]
  %s4 = inlined_call_operand.vmem [shape: f32[32,1], index: 4, kind: input, shape index: {}]
  %s5 = inlined_call_operand.vmem [shape: f32[32,32], index: 5, kind: input, shape index: {}]
  %s6 = inlined_call_operand.vmem [shape: f32[3,32,96], index: 6, kind: input, shape index: {}]
  %s7 = inlined_call_operand.vmem [shape: f32[32,1], index: 7, kind: input, shape index: {}]
  %s8 = inlined_call_operand.vmem [shape: f32[32,1], index: 8, kind: input, shape index: {}]
  %s9 = inlined_call_operand.vmem [shape: f32[32,1], index: 9, kind: input, shape index: {}]
  %s10 = inlined_call_operand.vmem [shape: f32[32,32], index: 10, kind: input, shape index: {}]
  %s11 = inlined_call_operand.vmem [shape: f32[3,32,96], index: 11, kind: input, shape index: {}]
  %s12 = inlined_call_operand.vmem [shape: f32[32,1], index: 12, kind: input, shape index: {}]
  %s13 = inlined_call_operand.vmem [shape: f32[32,1], index: 13, kind: input, shape index: {}]
  %s14 = inlined_call_operand.vmem [shape: f32[32,1], index: 14, kind: input, shape index: {}]
  %s15 = inlined_call_operand.vmem [shape: f32[96,32], index: 15, kind: input, shape index: {}]
  %s16 = inlined_call_operand.vmem [shape: f32[32,32], index: 16, kind: input, shape index: {}]
  %s17 = inlined_call_operand.vmem [shape: f32[32,1], index: 17, kind: input, shape index: {}]
  %s18 = inlined_call_operand.vmem [shape: f32[2,32,256], index: 18, kind: output, shape index: {}]
  %s19 = sld [smem:[#allocation0]]
  $region105: #{resnet_block_with_attn_forward.1} parent=0
    _
  %s21 = ssub.s32 1, %s19
  %s22 = scalar_select 0, %s21, %s19
  loop: start=0, step=1, limit=4
  $region2: #{resnet_block_with_attn_forward.1} parent=0 // loop_pre_header
    _
  $region3: #{resnet_block_with_attn_forward.1} parent=0 // loop_header
    %s24 = sphi 0, %s28
    %p25 = scmp.ge.s32.totalorder %s24, 4
    %s34 = sphi 0, %s36
    %s37 = sphi 0, %s34
    %s38 = sphi 0, %s37
    %s54 = sphi 0, %s38
    %s60 = sphi 0, %s62
    %s63 = sphi 0, %s60
    %s64 = sphi 0, %s63
    %s80 = sphi 0, %s64
    %s84 = sphi 0, %s84
    %s86 = sphi 0, %s84
    %s87 = sphi 0, %s86
    %s101 = sphi 0, %s87
    %s105 = sphi 0, %s105
    %s107 = sphi 0, %s105
    %s108 = sphi 0, %s107
    %s122 = sphi 0, %s108
    %s126 = sphi 0, %s126
    %s128 = sphi 0, %s126
    %s129 = sphi 0, %s128
    %s143 = sphi 0, %s129
    %s147 = sphi 0, %s147
    %s149 = sphi 0, %s147
    %s150 = sphi 0, %s149
    %s164 = sphi 0, %s150
    %s168 = sphi 0, %s168
    %s170 = sphi 0, %s168
    %s171 = sphi 0, %s170
    %s185 = sphi 0, %s171
    %s189 = sphi 0, %s189
    %s191 = sphi 0, %s189
    %s192 = sphi 0, %s191
    %s206 = sphi 0, %s192
    %s210 = sphi 0, %s210
    %s212 = sphi 0, %s210
    %s213 = sphi 0, %s212
    %s227 = sphi 0, %s213
    %s231 = sphi 0, %s231
    %s233 = sphi 0, %s231
    %s234 = sphi 0, %s233
    %s248 = sphi 0, %s234
    %s252 = sphi 0, %s252
    %s254 = sphi 0, %s252
    %s255 = sphi 0, %s254
    %s269 = sphi 0, %s255
    %s273 = sphi 0, %s273
    %s275 = sphi 0, %s273
    %s276 = sphi 0, %s275
    %s290 = sphi 0, %s276
    %s294 = sphi 0, %s294
    %s296 = sphi 0, %s294
    %s297 = sphi 0, %s296
    %s311 = sphi 0, %s297
    %s315 = sphi 0, %s315
    %s317 = sphi 0, %s315
    %s318 = sphi 0, %s317
    %s332 = sphi 0, %s318
    %s336 = sphi 0, %s336
    %s338 = sphi 0, %s336
    %s339 = sphi 0, %s338
    %s353 = sphi 0, %s339
    %s357 = sphi 0, %s357
    %s359 = sphi 0, %s357
    %s360 = sphi 0, %s359
    %s374 = sphi 0, %s360
    %s378 = sphi 0, %s378
    %s380 = sphi 0, %s378
    %s381 = sphi 0, %s380
    %s395 = sphi 0, %s381
    %s399 = sphi 0, %s399
    %s401 = sphi 0, %s399
    %s402 = sphi 0, %s401
    %s416 = sphi 0, %s402
    %s422 = sphi 0, %s424
    %s425 = sphi 0, %s422
    %s426 = sphi 0, %s425
    %s442 = sphi 0, %s426
  $region4: #{resnet_block_with_attn_forward.1} parent=0 // loop_header_branch
    %27 = sbr.rel (%p25) target = $region8
  $region5: #{resnet_block_with_attn_forward.1} parent=0 // loop_body
    %s29 = ssub.s32 %s24, 1
    %s30 = ssub.s32 %s24, 2
    %s31 = sadd.s32 %s24, 1
    %s32 = ssub.s32 %s24, %s31
    %p33 = scmp.eq.s32.totalorder %s32, 0
    %s35 = sadd.s32 %s34, 1
    %s36 = scalar_select %p33, %s34, %s35
    %p39 = pneg %p33
    %p40 = scmp.eq.s32.totalorder %s24, 1
    %p41 = por %p39, %p40
    %p42 = scmp.ne.s32.totalorder %s34, %s37
    %p43 = scmp.eq.s32.totalorder %s24, 0
    %p44 = por %p42, %p43
    %p45 = scmp.ne.s32.totalorder %s34, %s37
    %p46 = scmp.eq.s32.totalorder %s29, 1
    %p47 = por %p45, %p46
    %p48 = scmp.ne.s32.totalorder %s37, %s38
    %p49 = scmp.eq.s32.totalorder %s29, 0
    %p50 = por %p48, %p49
    %p51 = scmp.ne.s32.totalorder %s37, %s38
    %p52 = scmp.eq.s32.totalorder %s30, 1
    %p53 = por %p51, %p52
    %p55 = scmp.ne.s32.totalorder %s38, %s54
    %p56 = scmp.eq.s32.totalorder %s30, 0
    %p57 = por %p55, %p56
    %s58 = ssub.s32 %s24, %s31
    %p59 = scmp.eq.s32.totalorder %s58, 0
    %s61 = sadd.s32 %s60, 1
    %s62 = scalar_select %p59, %s60, %s61
    %p65 = pneg %p59
    %p66 = scmp.eq.s32.totalorder %s24, 1
    %p67 = por %p65, %p66
    %p68 = scmp.ne.s32.totalorder %s60, %s63
    %p69 = scmp.eq.s32.totalorder %s24, 0
    %p70 = por %p68, %p69
    %p71 = scmp.ne.s32.totalorder %s60, %s63
    %p72 = scmp.eq.s32.totalorder %s29, 1
    %p73 = por %p71, %p72
    %p74 = scmp.ne.s32.totalorder %s63, %s64
    %p75 = scmp.eq.s32.totalorder %s29, 0
    %p76 = por %p74, %p75
    %p77 = scmp.ne.s32.totalorder %s63, %s64
    %p78 = scmp.eq.s32.totalorder %s30, 1
    %p79 = por %p77, %p78
    %p81 = scmp.ne.s32.totalorder %s64, %s80
    %p82 = scmp.eq.s32.totalorder %s30, 0
    %p83 = por %p81, %p82
    %s85 = sadd.s32 %s84, 1
    %p88 = scmp.eq.s32.totalorder %s24, 1
    %p89 = scmp.ne.s32.totalorder %s84, %s86
    %p90 = scmp.eq.s32.totalorder %s24, 0
    %p91 = por %p89, %p90
    %p92 = scmp.ne.s32.totalorder %s84, %s86
    %p93 = scmp.eq.s32.totalorder %s29, 1
    %p94 = por %p92, %p93
    %p95 = scmp.ne.s32.totalorder %s86, %s87
    %p96 = scmp.eq.s32.totalorder %s29, 0
    %p97 = por %p95, %p96
    %p98 = scmp.ne.s32.totalorder %s86, %s87
    %p99 = scmp.eq.s32.totalorder %s30, 1
    %p100 = por %p98, %p99
    %p102 = scmp.ne.s32.totalorder %s87, %s101
    %p103 = scmp.eq.s32.totalorder %s30, 0
    %p104 = por %p102, %p103
    %s106 = sadd.s32 %s105, 1
    %p109 = scmp.eq.s32.totalorder %s24, 1
    %p110 = scmp.ne.s32.totalorder %s105, %s107
    %p111 = scmp.eq.s32.totalorder %s24, 0
    %p112 = por %p110, %p111
    %p113 = scmp.ne.s32.totalorder %s105, %s107
    %p114 = scmp.eq.s32.totalorder %s29, 1
    %p115 = por %p113, %p114
    %p116 = scmp.ne.s32.totalorder %s107, %s108
    %p117 = scmp.eq.s32.totalorder %s29, 0
    %p118 = por %p116, %p117
    %p119 = scmp.ne.s32.totalorder %s107, %s108
    %p120 = scmp.eq.s32.totalorder %s30, 1
    %p121 = por %p119, %p120
    %p123 = scmp.ne.s32.totalorder %s108, %s122
    %p124 = scmp.eq.s32.totalorder %s30, 0
    %p125 = por %p123, %p124
    %s127 = sadd.s32 %s126, 1
    %p130 = scmp.eq.s32.totalorder %s24, 1
    %p131 = scmp.ne.s32.totalorder %s126, %s128
    %p132 = scmp.eq.s32.totalorder %s24, 0
    %p133 = por %p131, %p132
    %p134 = scmp.ne.s32.totalorder %s126, %s128
    %p135 = scmp.eq.s32.totalorder %s29, 1
    %p136 = por %p134, %p135
    %p137 = scmp.ne.s32.totalorder %s128, %s129
    %p138 = scmp.eq.s32.totalorder %s29, 0
    %p139 = por %p137, %p138
    %p140 = scmp.ne.s32.totalorder %s128, %s129
    %p141 = scmp.eq.s32.totalorder %s30, 1
    %p142 = por %p140, %p141
    %p144 = scmp.ne.s32.totalorder %s129, %s143
    %p145 = scmp.eq.s32.totalorder %s30, 0
    %p146 = por %p144, %p145
    %s148 = sadd.s32 %s147, 1
    %p151 = scmp.eq.s32.totalorder %s24, 1
    %p152 = scmp.ne.s32.totalorder %s147, %s149
    %p153 = scmp.eq.s32.totalorder %s24, 0
    %p154 = por %p152, %p153
    %p155 = scmp.ne.s32.totalorder %s147, %s149
    %p156 = scmp.eq.s32.totalorder %s29, 1
    %p157 = por %p155, %p156
    %p158 = scmp.ne.s32.totalorder %s149, %s150
    %p159 = scmp.eq.s32.totalorder %s29, 0
    %p160 = por %p158, %p159
    %p161 = scmp.ne.s32.totalorder %s149, %s150
    %p162 = scmp.eq.s32.totalorder %s30, 1
    %p163 = por %p161, %p162
    %p165 = scmp.ne.s32.totalorder %s150, %s164
    %p166 = scmp.eq.s32.totalorder %s30, 0
    %p167 = por %p165, %p166
    %s169 = sadd.s32 %s168, 1
    %p172 = scmp.eq.s32.totalorder %s24, 1
    %p173 = scmp.ne.s32.totalorder %s168, %s170
    %p174 = scmp.eq.s32.totalorder %s24, 0
    %p175 = por %p173, %p174
    %p176 = scmp.ne.s32.totalorder %s168, %s170
    %p177 = scmp.eq.s32.totalorder %s29, 1
    %p178 = por %p176, %p177
    %p179 = scmp.ne.s32.totalorder %s170, %s171
    %p180 = scmp.eq.s32.totalorder %s29, 0
    %p181 = por %p179, %p180
    %p182 = scmp.ne.s32.totalorder %s170, %s171
    %p183 = scmp.eq.s32.totalorder %s30, 1
    %p184 = por %p182, %p183
    %p186 = scmp.ne.s32.totalorder %s171, %s185
    %p187 = scmp.eq.s32.totalorder %s30, 0
    %p188 = por %p186, %p187
    %s190 = sadd.s32 %s189, 1
    %p193 = scmp.eq.s32.totalorder %s24, 1
    %p194 = scmp.ne.s32.totalorder %s189, %s191
    %p195 = scmp.eq.s32.totalorder %s24, 0
    %p196 = por %p194, %p195
    %p197 = scmp.ne.s32.totalorder %s189, %s191
    %p198 = scmp.eq.s32.totalorder %s29, 1
    %p199 = por %p197, %p198
    %p200 = scmp.ne.s32.totalorder %s191, %s192
    %p201 = scmp.eq.s32.totalorder %s29, 0
    %p202 = por %p200, %p201
    %p203 = scmp.ne.s32.totalorder %s191, %s192
    %p204 = scmp.eq.s32.totalorder %s30, 1
    %p205 = por %p203, %p204
    %p207 = scmp.ne.s32.totalorder %s192, %s206
    %p208 = scmp.eq.s32.totalorder %s30, 0
    %p209 = por %p207, %p208
    %s211 = sadd.s32 %s210, 1
    %p214 = scmp.eq.s32.totalorder %s24, 1
    %p215 = scmp.ne.s32.totalorder %s210, %s212
    %p216 = scmp.eq.s32.totalorder %s24, 0
    %p217 = por %p215, %p216
    %p218 = scmp.ne.s32.totalorder %s210, %s212
    %p219 = scmp.eq.s32.totalorder %s29, 1
    %p220 = por %p218, %p219
    %p221 = scmp.ne.s32.totalorder %s212, %s213
    %p222 = scmp.eq.s32.totalorder %s29, 0
    %p223 = por %p221, %p222
    %p224 = scmp.ne.s32.totalorder %s212, %s213
    %p225 = scmp.eq.s32.totalorder %s30, 1
    %p226 = por %p224, %p225
    %p228 = scmp.ne.s32.totalorder %s213, %s227
    %p229 = scmp.eq.s32.totalorder %s30, 0
    %p230 = por %p228, %p229
    %s232 = sadd.s32 %s231, 1
    %p235 = scmp.eq.s32.totalorder %s24, 1
    %p236 = scmp.ne.s32.totalorder %s231, %s233
    %p237 = scmp.eq.s32.totalorder %s24, 0
    %p238 = por %p236, %p237
    %p239 = scmp.ne.s32.totalorder %s231, %s233
    %p240 = scmp.eq.s32.totalorder %s29, 1
    %p241 = por %p239, %p240
    %p242 = scmp.ne.s32.totalorder %s233, %s234
    %p243 = scmp.eq.s32.totalorder %s29, 0
    %p244 = por %p242, %p243
    %p245 = scmp.ne.s32.totalorder %s233, %s234
    %p246 = scmp.eq.s32.totalorder %s30, 1
    %p247 = por %p245, %p246
    %p249 = scmp.ne.s32.totalorder %s234, %s248
    %p250 = scmp.eq.s32.totalorder %s30, 0
    %p251 = por %p249, %p250
    %s253 = sadd.s32 %s252, 1
    %p256 = scmp.eq.s32.totalorder %s24, 1
    %p257 = scmp.ne.s32.totalorder %s252, %s254
    %p258 = scmp.eq.s32.totalorder %s24, 0
    %p259 = por %p257, %p258
    %p260 = scmp.ne.s32.totalorder %s252, %s254
    %p261 = scmp.eq.s32.totalorder %s29, 1
    %p262 = por %p260, %p261
    %p263 = scmp.ne.s32.totalorder %s254, %s255
    %p264 = scmp.eq.s32.totalorder %s29, 0
    %p265 = por %p263, %p264
    %p266 = scmp.ne.s32.totalorder %s254, %s255
    %p267 = scmp.eq.s32.totalorder %s30, 1
    %p268 = por %p266, %p267
    %p270 = scmp.ne.s32.totalorder %s255, %s269
    %p271 = scmp.eq.s32.totalorder %s30, 0
    %p272 = por %p270, %p271
    %s274 = sadd.s32 %s273, 1
    %p277 = scmp.eq.s32.totalorder %s24, 1
    %p278 = scmp.ne.s32.totalorder %s273, %s275
    %p279 = scmp.eq.s32.totalorder %s24, 0
    %p280 = por %p278, %p279
    %p281 = scmp.ne.s32.totalorder %s273, %s275
    %p282 = scmp.eq.s32.totalorder %s29, 1
    %p283 = por %p281, %p282
    %p284 = scmp.ne.s32.totalorder %s275, %s276
    %p285 = scmp.eq.s32.totalorder %s29, 0
    %p286 = por %p284, %p285
    %p287 = scmp.ne.s32.totalorder %s275, %s276
    %p288 = scmp.eq.s32.totalorder %s30, 1
    %p289 = por %p287, %p288
    %p291 = scmp.ne.s32.totalorder %s276, %s290
    %p292 = scmp.eq.s32.totalorder %s30, 0
    %p293 = por %p291, %p292
    %s295 = sadd.s32 %s294, 1
    %p298 = scmp.eq.s32.totalorder %s24, 1
    %p299 = scmp.ne.s32.totalorder %s294, %s296
    %p300 = scmp.eq.s32.totalorder %s24, 0
    %p301 = por %p299, %p300
    %p302 = scmp.ne.s32.totalorder %s294, %s296
    %p303 = scmp.eq.s32.totalorder %s29, 1
    %p304 = por %p302, %p303
    %p305 = scmp.ne.s32.totalorder %s296, %s297
    %p306 = scmp.eq.s32.totalorder %s29, 0
    %p307 = por %p305, %p306
    %p308 = scmp.ne.s32.totalorder %s296, %s297
    %p309 = scmp.eq.s32.totalorder %s30, 1
    %p310 = por %p308, %p309
    %p312 = scmp.ne.s32.totalorder %s297, %s311
    %p313 = scmp.eq.s32.totalorder %s30, 0
    %p314 = por %p312, %p313
    %s316 = sadd.s32 %s315, 1
    %p319 = scmp.eq.s32.totalorder %s24, 1
    %p320 = scmp.ne.s32.totalorder %s315, %s317
    %p321 = scmp.eq.s32.totalorder %s24, 0
    %p322 = por %p320, %p321
    %p323 = scmp.ne.s32.totalorder %s315, %s317
    %p324 = scmp.eq.s32.totalorder %s29, 1
    %p325 = por %p323, %p324
    %p326 = scmp.ne.s32.totalorder %s317, %s318
    %p327 = scmp.eq.s32.totalorder %s29, 0
    %p328 = por %p326, %p327
    %p329 = scmp.ne.s32.totalorder %s317, %s318
    %p330 = scmp.eq.s32.totalorder %s30, 1
    %p331 = por %p329, %p330
    %p333 = scmp.ne.s32.totalorder %s318, %s332
    %p334 = scmp.eq.s32.totalorder %s30, 0
    %p335 = por %p333, %p334
    %s337 = sadd.s32 %s336, 1
    %p340 = scmp.eq.s32.totalorder %s24, 1
    %p341 = scmp.ne.s32.totalorder %s336, %s338
    %p342 = scmp.eq.s32.totalorder %s24, 0
    %p343 = por %p341, %p342
    %p344 = scmp.ne.s32.totalorder %s336, %s338
    %p345 = scmp.eq.s32.totalorder %s29, 1
    %p346 = por %p344, %p345
    %p347 = scmp.ne.s32.totalorder %s338, %s339
    %p348 = scmp.eq.s32.totalorder %s29, 0
    %p349 = por %p347, %p348
    %p350 = scmp.ne.s32.totalorder %s338, %s339
    %p351 = scmp.eq.s32.totalorder %s30, 1
    %p352 = por %p350, %p351
    %p354 = scmp.ne.s32.totalorder %s339, %s353
    %p355 = scmp.eq.s32.totalorder %s30, 0
    %p356 = por %p354, %p355
    %s358 = sadd.s32 %s357, 1
    %p361 = scmp.eq.s32.totalorder %s24, 1
    %p362 = scmp.ne.s32.totalorder %s357, %s359
    %p363 = scmp.eq.s32.totalorder %s24, 0
    %p364 = por %p362, %p363
    %p365 = scmp.ne.s32.totalorder %s357, %s359
    %p366 = scmp.eq.s32.totalorder %s29, 1
    %p367 = por %p365, %p366
    %p368 = scmp.ne.s32.totalorder %s359, %s360
    %p369 = scmp.eq.s32.totalorder %s29, 0
    %p370 = por %p368, %p369
    %p371 = scmp.ne.s32.totalorder %s359, %s360
    %p372 = scmp.eq.s32.totalorder %s30, 1
    %p373 = por %p371, %p372
    %p375 = scmp.ne.s32.totalorder %s360, %s374
    %p376 = scmp.eq.s32.totalorder %s30, 0
    %p377 = por %p375, %p376
    %s379 = sadd.s32 %s378, 1
    %p382 = scmp.eq.s32.totalorder %s24, 1
    %p383 = scmp.ne.s32.totalorder %s378, %s380
    %p384 = scmp.eq.s32.totalorder %s24, 0
    %p385 = por %p383, %p384
    %p386 = scmp.ne.s32.totalorder %s378, %s380
    %p387 = scmp.eq.s32.totalorder %s29, 1
    %p388 = por %p386, %p387
    %p389 = scmp.ne.s32.totalorder %s380, %s381
    %p390 = scmp.eq.s32.totalorder %s29, 0
    %p391 = por %p389, %p390
    %p392 = scmp.ne.s32.totalorder %s380, %s381
    %p393 = scmp.eq.s32.totalorder %s30, 1
    %p394 = por %p392, %p393
    %p396 = scmp.ne.s32.totalorder %s381, %s395
    %p397 = scmp.eq.s32.totalorder %s30, 0
    %p398 = por %p396, %p397
    %s400 = sadd.s32 %s399, 1
    %p403 = scmp.eq.s32.totalorder %s24, 1
    %p404 = scmp.ne.s32.totalorder %s399, %s401
    %p405 = scmp.eq.s32.totalorder %s24, 0
    %p406 = por %p404, %p405
    %p407 = scmp.ne.s32.totalorder %s399, %s401
    %p408 = scmp.eq.s32.totalorder %s29, 1
    %p409 = por %p407, %p408
    %p410 = scmp.ne.s32.totalorder %s401, %s402
    %p411 = scmp.eq.s32.totalorder %s29, 0
    %p412 = por %p410, %p411
    %p413 = scmp.ne.s32.totalorder %s401, %s402
    %p414 = scmp.eq.s32.totalorder %s30, 1
    %p415 = por %p413, %p414
    %p417 = scmp.ne.s32.totalorder %s402, %s416
    %p418 = scmp.eq.s32.totalorder %s30, 0
    %p419 = por %p417, %p418
    %s420 = ssub.s32 %s24, %s31
    %p421 = scmp.eq.s32.totalorder %s420, 0
    %s423 = sadd.s32 %s422, 1
    %s424 = scalar_select %p421, %s422, %s423
    %p427 = pneg %p421
    %p428 = scmp.eq.s32.totalorder %s24, 1
    %p429 = por %p427, %p428
    %p430 = scmp.ne.s32.totalorder %s422, %s425
    %p431 = scmp.eq.s32.totalorder %s24, 0
    %p432 = por %p430, %p431
    %p433 = scmp.ne.s32.totalorder %s422, %s425
    %p434 = scmp.eq.s32.totalorder %s29, 1
    %p435 = por %p433, %p434
    %p436 = scmp.ne.s32.totalorder %s425, %s426
    %p437 = scmp.eq.s32.totalorder %s29, 0
    %p438 = por %p436, %p437
    %p439 = scmp.ne.s32.totalorder %s425, %s426
    %p440 = scmp.eq.s32.totalorder %s30, 1
    %p441 = por %p439, %p440
    %p443 = scmp.ne.s32.totalorder %s426, %s442
    %p444 = scmp.eq.s32.totalorder %s30, 0
    %p445 = por %p443, %p444
    %p446 = scmp.le.s32.totalorder 1, %s24
    %p447 = scmp.lt.s32.totalorder %s24, 3
    %p448 = pnand %p446, %p447
    %p449 = pneg %p448
    // Predicated region
    $region9: #{resnet_block_with_attn_forward.1} parent=5 // pred_check
      _
    $region10: #{resnet_block_with_attn_forward.1} parent=5 // pred_check_branch
      %451 = sbr.rel (%p448) target = $region12
    $region11: #{resnet_block_with_attn_forward.1} parent=5 // pred_region
      %s452 = ssub.s32 %s24, 1
      // Predicated region
      $region13: #{resnet_block_with_attn_forward.1} parent=11 // pred_check
        %p453 = pneg %p97
      $region14: #{resnet_block_with_attn_forward.1} parent=11 // pred_check_branch
        %455 = sbr.rel (%p453) target = $region16
      $region15: #{resnet_block_with_attn_forward.1} parent=11 // pred_region
        _
      $region16: #{resnet_block_with_attn_forward.1} parent=11 // pred_fallthru
        _
      // Predicated region
      $region17: #{resnet_block_with_attn_forward.1} parent=11 // pred_check
        %p456 = pneg %p118
      $region18: #{resnet_block_with_attn_forward.1} parent=11 // pred_check_branch
        %458 = sbr.rel (%p456) target = $region20
      $region19: #{resnet_block_with_attn_forward.1} parent=11 // pred_region
        _
      $region20: #{resnet_block_with_attn_forward.1} parent=11 // pred_fallthru
        _
      // Predicated region
      $region21: #{resnet_block_with_attn_forward.1} parent=11 // pred_check
        %p459 = pneg %p139
      $region22: #{resnet_block_with_attn_forward.1} parent=11 // pred_check_branch
        %461 = sbr.rel (%p459) target = $region24
      $region23: #{resnet_block_with_attn_forward.1} parent=11 // pred_region
        _
      $region24: #{resnet_block_with_attn_forward.1} parent=11 // pred_fallthru
        _
      // Predicated region
      $region25: #{resnet_block_with_attn_forward.1} parent=11 // pred_check
        %p462 = pneg %p160
      $region26: #{resnet_block_with_attn_forward.1} parent=11 // pred_check_branch
        %464 = sbr.rel (%p462) target = $region28
      $region27: #{resnet_block_with_attn_forward.1} parent=11 // pred_region
        _
      $region28: #{resnet_block_with_attn_forward.1} parent=11 // pred_fallthru
        _
      // Predicated region
      $region29: #{resnet_block_with_attn_forward.1} parent=11 // pred_check
        %p465 = pneg %p181
      $region30: #{resnet_block_with_attn_forward.1} parent=11 // pred_check_branch
        %467 = sbr.rel (%p465) target = $region32
      $region31: #{resnet_block_with_attn_forward.1} parent=11 // pred_region
        _
      $region32: #{resnet_block_with_attn_forward.1} parent=11 // pred_fallthru
        _
      // Predicated region
      $region33: #{resnet_block_with_attn_forward.1} parent=11 // pred_check
        %p468 = pneg %p202
      $region34: #{resnet_block_with_attn_forward.1} parent=11 // pred_check_branch
        %470 = sbr.rel (%p468) target = $region36
      $region35: #{resnet_block_with_attn_forward.1} parent=11 // pred_region
        _
      $region36: #{resnet_block_with_attn_forward.1} parent=11 // pred_fallthru
        _
      // Predicated region
      $region37: #{resnet_block_with_attn_forward.1} parent=11 // pred_check
        %p471 = pneg %p223
      $region38: #{resnet_block_with_attn_forward.1} parent=11 // pred_check_branch
        %473 = sbr.rel (%p471) target = $region40
      $region39: #{resnet_block_with_attn_forward.1} parent=11 // pred_region
        _
      $region40: #{resnet_block_with_attn_forward.1} parent=11 // pred_fallthru
        _
      // Predicated region
      $region41: #{resnet_block_with_attn_forward.1} parent=11 // pred_check
        %p474 = pneg %p244
      $region42: #{resnet_block_with_attn_forward.1} parent=11 // pred_check_branch
        %476 = sbr.rel (%p474) target = $region44
      $region43: #{resnet_block_with_attn_forward.1} parent=11 // pred_region
        _
      $region44: #{resnet_block_with_attn_forward.1} parent=11 // pred_fallthru
        _
      // Predicated region
      $region45: #{resnet_block_with_attn_forward.1} parent=11 // pred_check
        %p477 = pneg %p265
      $region46: #{resnet_block_with_attn_forward.1} parent=11 // pred_check_branch
        %479 = sbr.rel (%p477) target = $region48
      $region47: #{resnet_block_with_attn_forward.1} parent=11 // pred_region
        _
      $region48: #{resnet_block_with_attn_forward.1} parent=11 // pred_fallthru
        _
      // Predicated region
      $region49: #{resnet_block_with_attn_forward.1} parent=11 // pred_check
        %p480 = pneg %p286
      $region50: #{resnet_block_with_attn_forward.1} parent=11 // pred_check_branch
        %482 = sbr.rel (%p480) target = $region52
      $region51: #{resnet_block_with_attn_forward.1} parent=11 // pred_region
        _
      $region52: #{resnet_block_with_attn_forward.1} parent=11 // pred_fallthru
        _
      // Predicated region
      $region53: #{resnet_block_with_attn_forward.1} parent=11 // pred_check
        %p483 = pneg %p307
      $region54: #{resnet_block_with_attn_forward.1} parent=11 // pred_check_branch
        %485 = sbr.rel (%p483) target = $region56
      $region55: #{resnet_block_with_attn_forward.1} parent=11 // pred_region
        _
      $region56: #{resnet_block_with_attn_forward.1} parent=11 // pred_fallthru
        _
      // Predicated region
      $region57: #{resnet_block_with_attn_forward.1} parent=11 // pred_check
        %p486 = pneg %p328
      $region58: #{resnet_block_with_attn_forward.1} parent=11 // pred_check_branch
        %488 = sbr.rel (%p486) target = $region60
      $region59: #{resnet_block_with_attn_forward.1} parent=11 // pred_region
        _
      $region60: #{resnet_block_with_attn_forward.1} parent=11 // pred_fallthru
        _
      // Predicated region
      $region61: #{resnet_block_with_attn_forward.1} parent=11 // pred_check
        %p489 = pneg %p349
      $region62: #{resnet_block_with_attn_forward.1} parent=11 // pred_check_branch
        %491 = sbr.rel (%p489) target = $region64
      $region63: #{resnet_block_with_attn_forward.1} parent=11 // pred_region
        _
      $region64: #{resnet_block_with_attn_forward.1} parent=11 // pred_fallthru
        _
      // Predicated region
      $region65: #{resnet_block_with_attn_forward.1} parent=11 // pred_check
        %p492 = pneg %p370
      $region66: #{resnet_block_with_attn_forward.1} parent=11 // pred_check_branch
        %494 = sbr.rel (%p492) target = $region68
      $region67: #{resnet_block_with_attn_forward.1} parent=11 // pred_region
        _
      $region68: #{resnet_block_with_attn_forward.1} parent=11 // pred_fallthru
        _
      // Predicated region
      $region69: #{resnet_block_with_attn_forward.1} parent=11 // pred_check
        %p495 = pneg %p391
      $region70: #{resnet_block_with_attn_forward.1} parent=11 // pred_check_branch
        %497 = sbr.rel (%p495) target = $region72
      $region71: #{resnet_block_with_attn_forward.1} parent=11 // pred_region
        _
      $region72: #{resnet_block_with_attn_forward.1} parent=11 // pred_fallthru
        _
      // Predicated region
      $region73: #{resnet_block_with_attn_forward.1} parent=11 // pred_check
        %p498 = pneg %p412
      $region74: #{resnet_block_with_attn_forward.1} parent=11 // pred_check_branch
        %500 = sbr.rel (%p498) target = $region76
      $region75: #{resnet_block_with_attn_forward.1} parent=11 // pred_region
        _
      $region76: #{resnet_block_with_attn_forward.1} parent=11 // pred_fallthru
        _
    $region12: #{resnet_block_with_attn_forward.1} parent=5 // pred_fallthru
      _
    %p501 = scmp.lt.s32.totalorder %s24, 2
    // Predicated region
    $region77: #{resnet_block_with_attn_forward.1} parent=5 // pred_check
      %p502 = pneg %p501
    $region78: #{resnet_block_with_attn_forward.1} parent=5 // pred_check_branch
      %504 = sbr.rel (%p502) target = $region80
    $region79: #{resnet_block_with_attn_forward.1} parent=5 // pred_region
      // Predicated region
      $region81: #{resnet_block_with_attn_forward.1} parent=79 // pred_check
        %p505 = pneg %p44
      $region82: #{resnet_block_with_attn_forward.1} parent=79 // pred_check_branch
        %507 = sbr.rel (%p505) target = $region84
      $region83: #{resnet_block_with_attn_forward.1} parent=79 // pred_region
        %p508 = scmp.lt.s32.totalorder %s24, 1
        %s509 = scalar_select %p508, %s24, 1
        %s510 = smul.addr %s509, 8
        %s511 = smul.addr %s510, 8
        %s512 = scalar_lea.vmem %s0, %s511
      $region84: #{resnet_block_with_attn_forward.1} parent=79 // pred_fallthru
        _
      // Predicated region
      $region85: #{resnet_block_with_attn_forward.1} parent=79 // pred_check
        %p513 = pneg %p70
      $region86: #{resnet_block_with_attn_forward.1} parent=79 // pred_check_branch
        %515 = sbr.rel (%p513) target = $region88
      $region87: #{resnet_block_with_attn_forward.1} parent=79 // pred_region
        %p516 = scmp.lt.s32.totalorder %s24, 1
        %s517 = scalar_select %p516, %s24, 1
        %s518 = smul.addr %s517, 4
        %s519 = smul.addr %s518, 8
        %s520 = scalar_lea.vmem %s1, %s519
      $region88: #{resnet_block_with_attn_forward.1} parent=79 // pred_fallthru
        _
    $region80: #{resnet_block_with_attn_forward.1} parent=5 // pred_fallthru
      _
    %p521 = scmp.le.s32.totalorder 1, %s24
    %p522 = scmp.lt.s32.totalorder %s24, 3
    %p523 = pnand %p521, %p522
    %p524 = pneg %p523
    // Predicated region
    $region89: #{resnet_block_with_attn_forward.1} parent=5 // pred_check
      _
    $region90: #{resnet_block_with_attn_forward.1} parent=5 // pred_check_branch
      %526 = sbr.rel (%p523) target = $region92
    $region91: #{resnet_block_with_attn_forward.1} parent=5 // pred_region
      %s527 = ssub.s32 %s24, 1
      %p528 = scmp.lt.s32.totalorder %s29, 1
      %s529 = scalar_select %p528, %s29, 1
      %s530 = smul.addr %s529, 8
      %s531 = smul.addr %s530, 8
      %s532 = scalar_lea.vmem %s0, %s531
      %p533 = pneg %p50
      %p534 = pneg %p47
      %p535 = scmp.lt.s32.totalorder %s29, 1
      %s536 = scalar_select %p535, %s29, 1
      %s537 = smul.addr %s536, 4
      %s538 = smul.addr %s537, 8
      %s539 = scalar_lea.vmem %s1, %s538
      %p540 = pneg %p76
      %p541 = pneg %p73
      %p542 = pneg %p97
      %p543 = pneg %p94
      %p544 = pneg %p118
      %p545 = pneg %p115
      %p546 = pneg %p139
      %p547 = pneg %p136
      %p548 = pneg %p160
      %p549 = pneg %p157
      %p550 = pneg %p181
      %p551 = pneg %p178
      %p552 = pneg %p202
      %p553 = pneg %p199
      %p554 = pneg %p223
      %p555 = pneg %p220
      %p556 = pneg %p244
      %p557 = pneg %p241
      %p558 = pneg %p265
      %p559 = pneg %p262
      %p560 = pneg %p286
      %p561 = pneg %p283
      %p562 = pneg %p307
      %p563 = pneg %p304
      %p564 = pneg %p328
      %p565 = pneg %p325
      %p566 = pneg %p349
      %p567 = pneg %p346
      %p568 = pneg %p370
      %p569 = pneg %p367
      %p570 = pneg %p391
      %p571 = pneg %p388
      %p572 = pneg %p412
      %p573 = pneg %p409
      %p574 = pneg %p438
      %p575 = pneg %p435
      %p576 = scmp.lt.s32.totalorder %s29, 1
      %s577 = scalar_select %p576, %s29, 1
      %s578 = smul.addr %s577, 8
      %s579 = smul.addr %s578, 8
      %s580 = scalar_lea.vmem %s18, %s579
      %p581 = scmp.lt.s32.totalorder %s29, 1
      %s582 = scalar_select %p581, %s29, 1
      %s583 = smul.addr %s582, 8
      %s584 = smul.addr %s583, 8
      %s585 = scalar_lea.vmem %s0, %s584
      %p586 = scmp.lt.s32.totalorder %s29, 1
      %s587 = scalar_select %p586, %s29, 1
      %s588 = smul.addr %s587, 4
      %s589 = smul.addr %s588, 8
      %s590 = scalar_lea.vmem %s1, %s589
      %p591 = scmp.lt.s32.totalorder %s29, 1
      %s592 = scalar_select %p591, %s29, 1
      %s593 = smul.addr %s592, 8
      %s594 = smul.addr %s593, 8
      %s595 = scalar_lea.vmem %s18, %s594
      %v596 = vld [vmem:[%s2] sm:$0xff]
      %v597 = vld [vmem:[%s2 + $0x8] sm:$0xff]
      %v598 = vld [vmem:[%s2 + $0x10] sm:$0x1]
      %v599 = vld [vmem:[%s2 + $0x18] sm:$0x1]
      %v600 = vld [vmem:[%s585] sm:$0xff]
      %v601 = vld [vmem:[%s585 + $0x8] sm:$0xff]
      %v602 = vld [vmem:[%s585 + $0x10] sm:$0xff]
      %v603 = vld [vmem:[%s585 + $0x18] sm:$0xff]
      %v604 = vld [vmem:[%s585 + $0x20] sm:$0xff]
      %v605 = vld [vmem:[%s585 + $0x28] sm:$0xff]
      %v606 = vld [vmem:[%s585 + $0x30] sm:$0xff]
      %v607 = vld [vmem:[%s585 + $0x38] sm:$0xff]
      %v608 = vld [vmem:[%s5] sm:$0xff]
      %v609 = vld [vmem:[%s5 + $0x8] sm:$0xff]
      %v610 = vld [vmem:[%s5 + $0x10] sm:$0xff]
      %v611 = vld [vmem:[%s5 + $0x18] sm:$0xff]
      %v612 = vld [vmem:[%s3] sm:$0xff]
      %v613 = vld [vmem:[%s3 + $0x8] sm:$0xff]
      %v614 = vld [vmem:[%s3 + $0x10] sm:$0xff]
      %v615 = vld [vmem:[%s3 + $0x18] sm:$0xff]
      %v616 = vld [vmem:[%s4] sm:$0xff]
      %v617 = vld [vmem:[%s4 + $0x8] sm:$0xff]
      %v618 = vld [vmem:[%s4 + $0x10] sm:$0xff]
      %v619 = vld [vmem:[%s4 + $0x18] sm:$0xff]
      %v620 = vadd.f32 %v600, %v601
      %621 = vadd.xlane.f32.xlu0 %v620
      %v622 = vpop.xlane.xlu0 %621
      %v623 = vadd.f32 %v602, %v603
      %624 = vadd.xlane.f32.xlu0 %v623
      %v625 = vpop.xlane.xlu0 %624
      %v626 = vadd.f32 %v604, %v605
      %627 = vadd.xlane.f32.xlu0 %v626
      %v628 = vpop.xlane.xlu0 %627
      %v629 = vadd.f32 %v606, %v607
      %630 = vadd.xlane.f32.xlu0 %v629
      %v631 = vpop.xlane.xlu0 %630
      %vm632 = vcmask 261120
      %v634 = vsel %vm632, %v608, 0
      %v637 = vsel %vm632, %v609, 0
      %v640 = vsel %vm632, %v610, 0
      %v643 = vsel %vm632, %v611, 0
      %645 = vmatprep.subr.mxu0 0.0
      %646 = vmatpush1.msra.mxu0 0.0
      %647 = vmatprep.subr.mxu0 0.0
      %648 = vmatpush1.msra.mxu0 0.0
      %649 = vmatprep.subr.mxu0 0.0
      %650 = vmatpush1.msra.mxu0 0.0
      %651 = vmatprep.subr.mxu0 0.0
      %652 = vmatpush1.msra.mxu0 0.0
      %653 = vmatprep.subr.mxu0 0.0
      %654 = vmatpush1.msra.mxu0 0.0
      %655 = vmatprep.subr.mxu0 0.0
      %656 = vmatpush1.msra.mxu0 0.0
      %657 = vmatprep.subr.mxu0 0.0
      %658 = vmatpush1.msra.mxu0 0.0
      %659 = vmatprep.subr.mxu0 0.0
      %660 = vmatpush1.msra.mxu0 0.0
      %661 = vmatprep.subr.mxu0 0.0
      %662 = vmatpush1.msra.mxu0 0.0
      %663 = vmatprep.subr.mxu0 0.0
      %664 = vmatpush1.msra.mxu0 0.0
      %665 = vmatprep.subr.mxu0 0.0
      %666 = vmatpush1.msra.mxu0 0.0
      %667 = vmatprep.subr.mxu0 0.0
      %668 = vmatpush1.msra.mxu0 0.0
      %669 = vmatprep.subr.mxu0 0.0
      %670 = vmatpush1.msra.mxu0 %v631
      %671 = vmatprep.subr.mxu0 0.0
      %672 = vmatpush1.msra.mxu0 %v628
      %673 = vmatprep.subr.mxu0 0.0
      %674 = vmatpush1.msra.mxu0 %v625
      %675 = vmatprep.subr.mxu0 0.0
      %676 = vmatpush1.msra.mxu0 %v622
      %677 = vmatprep.subr.mxu0 0.0
      %678 = vmatpush2.msra.mxu0 0.0
      %679 = vmatprep.subr.mxu0 0.0
      %680 = vmatpush2.msra.mxu0 0.0
      %681 = vmatprep.subr.mxu0 0.0
      %682 = vmatpush2.msra.mxu0 0.0
      %683 = vmatprep.subr.mxu0 0.0
      %684 = vmatpush2.msra.mxu0 0.0
      %685 = vmatprep.subr.mxu0 0.0
      %686 = vmatpush2.msra.mxu0 0.0
      %687 = vmatprep.subr.mxu0 0.0
      %688 = vmatpush2.msra.mxu0 0.0
      %689 = vmatprep.subr.mxu0 0.0
      %690 = vmatpush2.msra.mxu0 0.0
      %691 = vmatprep.subr.mxu0 0.0
      %692 = vmatpush2.msra.mxu0 0.0
      %693 = vmatprep.subr.mxu0 0.0
      %694 = vmatpush2.msra.mxu0 0.0
      %695 = vmatprep.subr.mxu0 0.0
      %696 = vmatpush2.msra.mxu0 0.0
      %697 = vmatprep.subr.mxu0 0.0
      %698 = vmatpush2.msra.mxu0 0.0
      %699 = vmatprep.subr.mxu0 0.0
      %700 = vmatpush2.msra.mxu0 0.0
      %701 = vmatprep.subr.mxu0 0.0
      %702 = vmatpush2.msra.mxu0 0.0
      %703 = vmatprep.subr.mxu0 0.0
      %704 = vmatpush2.msra.mxu0 0.0
      %705 = vmatprep.subr.mxu0 0.0
      %706 = vmatpush2.msra.mxu0 0.0
      %707 = vmatprep.subr.mxu0 0.0
      %708 = vmatpush2.msra.mxu0 0.0
      %709 = vmatprep.mubr.f32.mxu0 0.0
      %710 = vmatmul.mubr.f32.gmra.mxu0 %v634
      %v711 = vpop.f32.mrf.mxu0
      %v712 = vadd.f32 0.0, %v711
      %v713 = vpop.f32.mrf.mxu0
      %714 = vmatprep.mubr.f32.mxu0 0.0
      %715 = vmatmul.mubr.f32.gmra.mxu0 %v637
      %v716 = vpop.f32.mrf.mxu0
      %v717 = vadd.f32 0.0, %v716
      %v718 = vpop.f32.mrf.mxu0
      %719 = vmatprep.mubr.f32.mxu0 0.0
      %720 = vmatmul.mubr.f32.gmra.mxu0 %v640
      %v721 = vpop.f32.mrf.mxu0
      %v722 = vadd.f32 0.0, %v721
      %v723 = vpop.f32.mrf.mxu0
      %724 = vmatprep.mubr.f32.mxu0 0.0
      %725 = vmatmul.mubr.f32.gmra.mxu0 %v643
      %v726 = vpop.f32.mrf.mxu0
      %v727 = vadd.f32 0.0, %v726
      %v728 = vpop.f32.mrf.mxu0
      %729 = vdwg.mxu0
      %v730 = vmul.f32 %v712, 0.0009765625
      %v731 = vmul.f32 %v717, 0.0009765625
      %v732 = vmul.f32 %v722, 0.0009765625
      %v733 = vmul.f32 %v727, 0.0009765625
      %735 = vset.pattern.permute.xlu0 0
      %736 = vperm.xlu0 %735, %v730
      %v737 = vpop.permute.xlu0 %736
      %740 = vset.pattern.permute.xlu0 0
      %741 = vperm.xlu0 %740, %v731
      %v742 = vpop.permute.xlu0 %741
      %745 = vset.pattern.permute.xlu0 0
      %746 = vperm.xlu0 %745, %v732
      %v747 = vpop.permute.xlu0 %746
      %750 = vset.pattern.permute.xlu0 0
      %751 = vperm.xlu0 %750, %v733
      %v752 = vpop.permute.xlu0 %751
      %v754 = vsub.f32 %v600, %v737
      %v755 = vsub.f32 %v601, %v737
      %v756 = vsub.f32 %v602, %v742
      %v757 = vsub.f32 %v603, %v742
      %v758 = vsub.f32 %v604, %v747
      %v759 = vsub.f32 %v605, %v747
      %v760 = vsub.f32 %v606, %v752
      %v761 = vsub.f32 %v607, %v752
      %v762 = vmul.f32 %v754, %v754
      %v763 = vmul.f32 %v755, %v755
      %v764 = vmul.f32 %v756, %v756
      %v765 = vmul.f32 %v757, %v757
      %v766 = vmul.f32 %v758, %v758
      %v767 = vmul.f32 %v759, %v759
      %v768 = vmul.f32 %v760, %v760
      %v769 = vmul.f32 %v761, %v761
      %v770 = vadd.f32 %v762, %v763
      %771 = vadd.xlane.f32.xlu0 %v770
      %v772 = vpop.xlane.xlu0 %771
      %v773 = vadd.f32 %v764, %v765
      %774 = vadd.xlane.f32.xlu0 %v773
      %v775 = vpop.xlane.xlu0 %774
      %v776 = vadd.f32 %v766, %v767
      %777 = vadd.xlane.f32.xlu0 %v776
      %v778 = vpop.xlane.xlu0 %777
      %v779 = vadd.f32 %v768, %v769
      %780 = vadd.xlane.f32.xlu0 %v779
      %v781 = vpop.xlane.xlu0 %780
      %782 = vmatprep.subr.mxu0 0.0
      %783 = vmatpush1.msra.mxu0 0.0
      %784 = vmatprep.subr.mxu0 0.0
      %785 = vmatpush1.msra.mxu0 0.0
      %786 = vmatprep.subr.mxu0 0.0
      %787 = vmatpush1.msra.mxu0 0.0
      %788 = vmatprep.subr.mxu0 0.0
      %789 = vmatpush1.msra.mxu0 0.0
      %790 = vmatprep.subr.mxu0 0.0
      %791 = vmatpush1.msra.mxu0 0.0
      %792 = vmatprep.subr.mxu0 0.0
      %793 = vmatpush1.msra.mxu0 0.0
      %794 = vmatprep.subr.mxu0 0.0
      %795 = vmatpush1.msra.mxu0 0.0
      %796 = vmatprep.subr.mxu0 0.0
      %797 = vmatpush1.msra.mxu0 0.0
      %798 = vmatprep.subr.mxu0 0.0
      %799 = vmatpush1.msra.mxu0 0.0
      %800 = vmatprep.subr.mxu0 0.0
      %801 = vmatpush1.msra.mxu0 0.0
      %802 = vmatprep.subr.mxu0 0.0
      %803 = vmatpush1.msra.mxu0 0.0
      %804 = vmatprep.subr.mxu0 0.0
      %805 = vmatpush1.msra.mxu0 0.0
      %806 = vmatprep.subr.mxu0 0.0
      %807 = vmatpush1.msra.mxu0 %v781
      %808 = vmatprep.subr.mxu0 0.0
      %809 = vmatpush1.msra.mxu0 %v778
      %810 = vmatprep.subr.mxu0 0.0
      %811 = vmatpush1.msra.mxu0 %v775
      %812 = vmatprep.subr.mxu0 0.0
      %813 = vmatpush1.msra.mxu0 %v772
      %814 = vmatprep.subr.mxu0 0.0
      %815 = vmatpush2.msra.mxu0 0.0
      %816 = vmatprep.subr.mxu0 0.0
      %817 = vmatpush2.msra.mxu0 0.0
      %818 = vmatprep.subr.mxu0 0.0
      %819 = vmatpush2.msra.mxu0 0.0
      %820 = vmatprep.subr.mxu0 0.0
      %821 = vmatpush2.msra.mxu0 0.0
      %822 = vmatprep.subr.mxu0 0.0
      %823 = vmatpush2.msra.mxu0 0.0
      %824 = vmatprep.subr.mxu0 0.0
      %825 = vmatpush2.msra.mxu0 0.0
      %826 = vmatprep.subr.mxu0 0.0
      %827 = vmatpush2.msra.mxu0 0.0
      %828 = vmatprep.subr.mxu0 0.0
      %829 = vmatpush2.msra.mxu0 0.0
      %830 = vmatprep.subr.mxu0 0.0
      %831 = vmatpush2.msra.mxu0 0.0
      %832 = vmatprep.subr.mxu0 0.0
      %833 = vmatpush2.msra.mxu0 0.0
      %834 = vmatprep.subr.mxu0 0.0
      %835 = vmatpush2.msra.mxu0 0.0
      %836 = vmatprep.subr.mxu0 0.0
      %837 = vmatpush2.msra.mxu0 0.0
      %838 = vmatprep.subr.mxu0 0.0
      %839 = vmatpush2.msra.mxu0 0.0
      %840 = vmatprep.subr.mxu0 0.0
      %841 = vmatpush2.msra.mxu0 0.0
      %842 = vmatprep.subr.mxu0 0.0
      %843 = vmatpush2.msra.mxu0 0.0
      %844 = vmatprep.subr.mxu0 0.0
      %845 = vmatpush2.msra.mxu0 0.0
      %846 = vmatprep.mubr.f32.mxu0 0.0
      %847 = vmatmul.mubr.f32.gmra.mxu0 %v634
      %v848 = vpop.f32.mrf.mxu0
      %v849 = vadd.f32 0.0, %v848
      %v850 = vpop.f32.mrf.mxu0
      %851 = vmatprep.mubr.f32.mxu0 0.0
      %852 = vmatmul.mubr.f32.gmra.mxu0 %v637
      %v853 = vpop.f32.mrf.mxu0
      %v854 = vadd.f32 0.0, %v853
      %v855 = vpop.f32.mrf.mxu0
      %856 = vmatprep.mubr.f32.mxu0 0.0
      %857 = vmatmul.mubr.f32.gmra.mxu0 %v640
      %v858 = vpop.f32.mrf.mxu0
      %v859 = vadd.f32 0.0, %v858
      %v860 = vpop.f32.mrf.mxu0
      %861 = vmatprep.mubr.f32.mxu0 0.0
      %862 = vmatmul.mubr.f32.gmra.mxu0 %v643
      %v863 = vpop.f32.mrf.mxu0
      %v864 = vadd.f32 0.0, %v863
      %v865 = vpop.f32.mrf.mxu0
      %866 = vdwg.mxu0
      %v867 = vmul.f32 %v849, 0.0009765625
      %v868 = vmul.f32 %v854, 0.0009765625
      %v869 = vmul.f32 %v859, 0.0009765625
      %v870 = vmul.f32 %v864, 0.0009765625
      %v871 = vadd.f32 %v867, 1e-05
      %v872 = vadd.f32 %v868, 1e-05
      %v873 = vadd.f32 %v869, 1e-05
      %v874 = vadd.f32 %v870, 1e-05
      %v875 = vrsqrt.pop %v871
      %v876 = vrsqrt.pop %v872
      %v877 = vrsqrt.pop %v873
      %v878 = vrsqrt.pop %v874
      %880 = vset.pattern.permute.xlu0 0
      %881 = vperm.xlu0 %880, %v875
      %v882 = vpop.permute.xlu0 %881
      %885 = vset.pattern.permute.xlu0 0
      %886 = vperm.xlu0 %885, %v876
      %v887 = vpop.permute.xlu0 %886
      %890 = vset.pattern.permute.xlu0 0
      %891 = vperm.xlu0 %890, %v877
      %v892 = vpop.permute.xlu0 %891
      %895 = vset.pattern.permute.xlu0 0
      %896 = vperm.xlu0 %895, %v878
      %v897 = vpop.permute.xlu0 %896
      %v899 = vmul.f32 %v754, %v882
      %v900 = vmul.f32 %v755, %v882
      %v901 = vmul.f32 %v756, %v887
      %v902 = vmul.f32 %v757, %v887
      %v903 = vmul.f32 %v758, %v892
      %v904 = vmul.f32 %v759, %v892
      %v905 = vmul.f32 %v760, %v897
      %v906 = vmul.f32 %v761, %v897
      %908 = vset.pattern.permute.xlu0 0
      %909 = vperm.xlu0 %908, %v612
      %v910 = vpop.permute.xlu0 %909
      %913 = vset.pattern.permute.xlu0 0
      %914 = vperm.xlu0 %913, %v613
      %v915 = vpop.permute.xlu0 %914
      %918 = vset.pattern.permute.xlu0 0
      %919 = vperm.xlu0 %918, %v614
      %v920 = vpop.permute.xlu0 %919
      %923 = vset.pattern.permute.xlu0 0
      %924 = vperm.xlu0 %923, %v615
      %v925 = vpop.permute.xlu0 %924
      %v927 = vmul.f32 %v899, %v910
      %v928 = vmul.f32 %v900, %v910
      %v929 = vmul.f32 %v901, %v915
      %v930 = vmul.f32 %v902, %v915
      %v931 = vmul.f32 %v903, %v920
      %v932 = vmul.f32 %v904, %v920
      %v933 = vmul.f32 %v905, %v925
      %v934 = vmul.f32 %v906, %v925
      %936 = vset.pattern.permute.xlu0 0
      %937 = vperm.xlu0 %936, %v616
      %v938 = vpop.permute.xlu0 %937
      %941 = vset.pattern.permute.xlu0 0
      %942 = vperm.xlu0 %941, %v617
      %v943 = vpop.permute.xlu0 %942
      %946 = vset.pattern.permute.xlu0 0
      %947 = vperm.xlu0 %946, %v618
      %v948 = vpop.permute.xlu0 %947
      %951 = vset.pattern.permute.xlu0 0
      %952 = vperm.xlu0 %951, %v619
      %v953 = vpop.permute.xlu0 %952
      %v955 = vadd.f32 %v927, %v938
      %v956 = vadd.f32 %v928, %v938
      %v957 = vadd.f32 %v929, %v943
      %v958 = vadd.f32 %v930, %v943
      %v959 = vadd.f32 %v931, %v948
      %v960 = vadd.f32 %v932, %v948
      %v961 = vadd.f32 %v933, %v953
      %v962 = vadd.f32 %v934, %v953
      %v963 = vmul.f32 %v955, 0.5
      %v964 = vmul.f32 %v956, 0.5
      %v965 = vmul.f32 %v957, 0.5
      %v966 = vmul.f32 %v958, 0.5
      %v967 = vmul.f32 %v959, 0.5
      %v968 = vmul.f32 %v960, 0.5
      %v969 = vmul.f32 %v961, 0.5
      %v970 = vmul.f32 %v962, 0.5
      %v971 = vtanh.pop %v963
      %v972 = vtanh.pop %v964
      %v973 = vtanh.pop %v965
      %v974 = vtanh.pop %v966
      %v975 = vtanh.pop %v967
      %v976 = vtanh.pop %v968
      %v977 = vtanh.pop %v969
      %v978 = vtanh.pop %v970
      %v979 = vmul.f32 %v971, 0.5
      %v980 = vmul.f32 %v972, 0.5
      %v981 = vmul.f32 %v973, 0.5
      %v982 = vmul.f32 %v974, 0.5
      %v983 = vmul.f32 %v975, 0.5
      %v984 = vmul.f32 %v976, 0.5
      %v985 = vmul.f32 %v977, 0.5
      %v986 = vmul.f32 %v978, 0.5
      %v987 = vadd.f32 %v979, 0.5
      %v988 = vadd.f32 %v980, 0.5
      %v989 = vadd.f32 %v981, 0.5
      %v990 = vadd.f32 %v982, 0.5
      %v991 = vadd.f32 %v983, 0.5
      %v992 = vadd.f32 %v984, 0.5
      %v993 = vadd.f32 %v985, 0.5
      %v994 = vadd.f32 %v986, 0.5
      %v995 = vmul.f32 %v955, %v987
      %v996 = vmul.f32 %v956, %v988
      %v997 = vmul.f32 %v957, %v989
      %v998 = vmul.f32 %v958, %v990
      %v999 = vmul.f32 %v959, %v991
      %v1000 = vmul.f32 %v960, %v992
      %v1001 = vmul.f32 %v961, %v993
      %v1002 = vmul.f32 %v962, %v994
      %v1003 = vld [vmem:[%s7] sm:$0xff]
      %v1004 = vld [vmem:[%s7 + $0x8] sm:$0xff]
      %v1005 = vld [vmem:[%s7 + $0x10] sm:$0xff]
      %v1006 = vld [vmem:[%s7 + $0x18] sm:$0xff]
      %1007 = vrot.lane.b32.xlu0 %v995, 17
      %v1008 = vpop.permute.xlu0 %1007
      %1009 = vrot.lane.b32.xlu0 %v997, 17
      %v1010 = vpop.permute.xlu0 %1009
      %1011 = vrot.lane.b32.xlu0 %v999, 17
      %v1012 = vpop.permute.xlu0 %1011
      %1013 = vrot.lane.b32.xlu0 %v1001, 17
      %v1014 = vpop.permute.xlu0 %1013
      %1015 = vrot.lane.b32.xlu0 %v996, 17
      %v1016 = vpop.permute.xlu0 %1015
      %1017 = vrot.lane.b32.xlu0 %v998, 17
      %v1018 = vpop.permute.xlu0 %1017
      %1019 = vrot.lane.b32.xlu0 %v1000, 17
      %v1020 = vpop.permute.xlu0 %1019
      %1021 = vrot.lane.b32.xlu0 %v1002, 17
      %v1022 = vpop.permute.xlu0 %1021
      %v1023 = vlaneseq
      %v1024 = vand.u32 %v1023, 127
      %vm1025 = vcmp.lt.s32.totalorder %v1024, 17
      %v1026 = vsel %vm1025, %v1008, %v1016
      %v1027 = vsel %vm1025, %v1010, %v1018
      %v1028 = vsel %vm1025, %v1012, %v1020
      %v1029 = vsel %vm1025, %v1014, %v1022
      %v1030 = vsel %vm1025, %v1016, %v1008
      %v1031 = vsel %vm1025, %v1018, %v1010
      %v1032 = vsel %vm1025, %v1020, %v1012
      %v1033 = vsel %vm1025, %v1022, %v1014
      %v1034 = vlaneseq
      %v1035 = vshrl.u32 %v1034, 7
      %v1036 = vsub.s32 0, %v1035
      %v1037 = vrot.slane %v596, %v1036
      %v1038 = vlaneseq
      %v1039 = vshrl.u32 %v1038, 7
      %v1040 = vsub.s32 0, %v1039
      %v1041 = vrot.slane %v597, %v1040
      %v1042 = vmul.f32 %v1030, %v1037
      %v1043 = vmul.f32 %v1026, %v1041
      %v1044 = vmul.f32 %v1031, %v1037
      %v1045 = vmul.f32 %v1027, %v1041
      %v1046 = vmul.f32 %v1032, %v1037
      %v1047 = vmul.f32 %v1028, %v1041
      %v1048 = vmul.f32 %v1033, %v1037
      %v1049 = vmul.f32 %v1029, %v1041
      %1050 = vst [vmem:[#allocation2] sm:$0xff] %v1042
      %1051 = vst [vmem:[#allocation2 + $0x8] sm:$0xff] %v1043
      %1052 = vst [vmem:[#allocation2 + $0x10] sm:$0xff] %v1044
      %1053 = vst [vmem:[#allocation2 + $0x18] sm:$0xff] %v1045
      %1054 = vst [vmem:[#allocation2 + $0x20] sm:$0xff] %v1046
      %1055 = vst [vmem:[#allocation2 + $0x28] sm:$0xff] %v1047
      %1056 = vst [vmem:[#allocation2 + $0x30] sm:$0xff] %v1048
      %1057 = vst [vmem:[#allocation2 + $0x38] sm:$0xff] %v1049
      %1058 = vrot.lane.b32.xlu0 %v995, 16
      %v1059 = vpop.permute.xlu0 %1058
      %1060 = vrot.lane.b32.xlu0 %v997, 16
      %v1061 = vpop.permute.xlu0 %1060
      %1062 = vrot.lane.b32.xlu0 %v999, 16
      %v1063 = vpop.permute.xlu0 %1062
      %1064 = vrot.lane.b32.xlu0 %v1001, 16
      %v1065 = vpop.permute.xlu0 %1064
      %1066 = vrot.lane.b32.xlu0 %v996, 16
      %v1067 = vpop.permute.xlu0 %1066
      %1068 = vrot.lane.b32.xlu0 %v998, 16
      %v1069 = vpop.permute.xlu0 %1068
      %1070 = vrot.lane.b32.xlu0 %v1000, 16
      %v1071 = vpop.permute.xlu0 %1070
      %1072 = vrot.lane.b32.xlu0 %v1002, 16
      %v1073 = vpop.permute.xlu0 %1072
      %vm1074 = vcmp.lt.s32.totalorder %v1024, 16
      %v1075 = vsel %vm1074, %v1059, %v1067
      %v1076 = vsel %vm1074, %v1061, %v1069
      %v1077 = vsel %vm1074, %v1063, %v1071
      %v1078 = vsel %vm1074, %v1065, %v1073
      %v1079 = vsel %vm1074, %v1067, %v1059
      %v1080 = vsel %vm1074, %v1069, %v1061
      %v1081 = vsel %vm1074, %v1071, %v1063
      %v1082 = vsel %vm1074, %v1073, %v1065
      %v1083 = vlaneseq
      %v1084 = vshrl.u32 %v1083, 7
      %v1085 = vsub.s32 1, %v1084
      %v1086 = vrot.slane %v596, %v1085
      %v1087 = vlaneseq
      %v1088 = vshrl.u32 %v1087, 7
      %v1089 = vsub.s32 1, %v1088
      %v1090 = vrot.slane %v597, %v1089
      %v1091 = vmul.f32 %v1079, %v1086
      %v1092 = vmul.f32 %v1075, %v1090
      %v1093 = vmul.f32 %v1080, %v1086
      %v1094 = vmul.f32 %v1076, %v1090
      %v1095 = vmul.f32 %v1081, %v1086
      %v1096 = vmul.f32 %v1077, %v1090
      %v1097 = vmul.f32 %v1082, %v1086
      %v1098 = vmul.f32 %v1078, %v1090
      %1099 = vst [vmem:[#allocation2 + $0x40] sm:$0xff] %v1091
      %1100 = vst [vmem:[#allocation2 + $0x48] sm:$0xff] %v1092
      %1101 = vst [vmem:[#allocation2 + $0x50] sm:$0xff] %v1093
      %1102 = vst [vmem:[#allocation2 + $0x58] sm:$0xff] %v1094
      %1103 = vst [vmem:[#allocation2 + $0x60] sm:$0xff] %v1095
      %1104 = vst [vmem:[#allocation2 + $0x68] sm:$0xff] %v1096
      %1105 = vst [vmem:[#allocation2 + $0x70] sm:$0xff] %v1097
      %1106 = vst [vmem:[#allocation2 + $0x78] sm:$0xff] %v1098
      %1107 = vrot.lane.b32.xlu0 %v995, 15
      %v1108 = vpop.permute.xlu0 %1107
      %1109 = vrot.lane.b32.xlu0 %v997, 15
      %v1110 = vpop.permute.xlu0 %1109
      %1111 = vrot.lane.b32.xlu0 %v999, 15
      %v1112 = vpop.permute.xlu0 %1111
      %1113 = vrot.lane.b32.xlu0 %v1001, 15
      %v1114 = vpop.permute.xlu0 %1113
      %1115 = vrot.lane.b32.xlu0 %v996, 15
      %v1116 = vpop.permute.xlu0 %1115
      %1117 = vrot.lane.b32.xlu0 %v998, 15
      %v1118 = vpop.permute.xlu0 %1117
      %1119 = vrot.lane.b32.xlu0 %v1000, 15
      %v1120 = vpop.permute.xlu0 %1119
      %1121 = vrot.lane.b32.xlu0 %v1002, 15
      %v1122 = vpop.permute.xlu0 %1121
      %vm1123 = vcmp.lt.s32.totalorder %v1024, 15
      %v1124 = vsel %vm1123, %v1108, %v1116
      %v1125 = vsel %vm1123, %v1110, %v1118
      %v1126 = vsel %vm1123, %v1112, %v1120
      %v1127 = vsel %vm1123, %v1114, %v1122
      %v1128 = vsel %vm1123, %v1116, %v1108
      %v1129 = vsel %vm1123, %v1118, %v1110
      %v1130 = vsel %vm1123, %v1120, %v1112
      %v1131 = vsel %vm1123, %v1122, %v1114
      %v1132 = vlaneseq
      %v1133 = vshrl.u32 %v1132, 7
      %v1134 = vsub.s32 2, %v1133
      %v1135 = vrot.slane %v596, %v1134
      %v1136 = vlaneseq
      %v1137 = vshrl.u32 %v1136, 7
      %v1138 = vsub.s32 2, %v1137
      %v1139 = vrot.slane %v597, %v1138
      %v1140 = vmul.f32 %v1128, %v1135
      %v1141 = vmul.f32 %v1124, %v1139
      %v1142 = vmul.f32 %v1129, %v1135
      %v1143 = vmul.f32 %v1125, %v1139
      %v1144 = vmul.f32 %v1130, %v1135
      %v1145 = vmul.f32 %v1126, %v1139
      %v1146 = vmul.f32 %v1131, %v1135
      %v1147 = vmul.f32 %v1127, %v1139
      %1148 = vst [vmem:[#allocation2 + $0x80] sm:$0xff] %v1140
      %1149 = vst [vmem:[#allocation2 + $0x88] sm:$0xff] %v1141
      %1150 = vst [vmem:[#allocation2 + $0x90] sm:$0xff] %v1142
      %1151 = vst [vmem:[#allocation2 + $0x98] sm:$0xff] %v1143
      %1152 = vst [vmem:[#allocation2 + $0xa0] sm:$0xff] %v1144
      %1153 = vst [vmem:[#allocation2 + $0xa8] sm:$0xff] %v1145
      %1154 = vst [vmem:[#allocation2 + $0xb0] sm:$0xff] %v1146
      %1155 = vst [vmem:[#allocation2 + $0xb8] sm:$0xff] %v1147
      %v1156 = vld [vmem:[%s6] sm:$0xff]
      %v1157 = vld [vmem:[%s6 + $0x8] sm:$0xff]
      %v1158 = vld [vmem:[%s6 + $0x10] sm:$0xff]
      %v1159 = vld [vmem:[%s6 + $0x18] sm:$0xff]
      %v1160 = vld [vmem:[#allocation2] sm:$0xff]
      %v1161 = vld [vmem:[#allocation2 + $0x8] sm:$0xff]
      %v1162 = vld [vmem:[#allocation2 + $0x10] sm:$0xff]
      %v1163 = vld [vmem:[#allocation2 + $0x18] sm:$0xff]
      %v1164 = vld [vmem:[#allocation2 + $0x20] sm:$0xff]
      %v1165 = vld [vmem:[#allocation2 + $0x28] sm:$0xff]
      %v1166 = vld [vmem:[#allocation2 + $0x30] sm:$0xff]
      %v1167 = vld [vmem:[#allocation2 + $0x38] sm:$0xff]
      %v1168 = vld [vmem:[#allocation2 + $0x40] sm:$0xff]
      %v1169 = vld [vmem:[#allocation2 + $0x48] sm:$0xff]
      %v1170 = vld [vmem:[#allocation2 + $0x50] sm:$0xff]
      %v1171 = vld [vmem:[#allocation2 + $0x58] sm:$0xff]
      %v1172 = vld [vmem:[#allocation2 + $0x60] sm:$0xff]
      %v1173 = vld [vmem:[#allocation2 + $0x68] sm:$0xff]
      %v1174 = vld [vmem:[#allocation2 + $0x70] sm:$0xff]
      %v1175 = vld [vmem:[#allocation2 + $0x78] sm:$0xff]
      %v1176 = vld [vmem:[#allocation2 + $0x80] sm:$0xff]
      %v1177 = vld [vmem:[#allocation2 + $0x88] sm:$0xff]
      %v1178 = vld [vmem:[#allocation2 + $0x90] sm:$0xff]
      %v1179 = vld [vmem:[#allocation2 + $0x98] sm:$0xff]
      %v1180 = vld [vmem:[#allocation2 + $0xa0] sm:$0xff]
      %v1181 = vld [vmem:[#allocation2 + $0xa8] sm:$0xff]
      %v1182 = vld [vmem:[#allocation2 + $0xb0] sm:$0xff]
      %v1183 = vld [vmem:[#allocation2 + $0xb8] sm:$0xff]
      %1184 = vrot.lane.b32.xlu0 %v995, 1
      %v1185 = vpop.permute.xlu0 %1184
      %1186 = vrot.lane.b32.xlu0 %v997, 1
      %v1187 = vpop.permute.xlu0 %1186
      %1188 = vrot.lane.b32.xlu0 %v999, 1
      %v1189 = vpop.permute.xlu0 %1188
      %1190 = vrot.lane.b32.xlu0 %v1001, 1
      %v1191 = vpop.permute.xlu0 %1190
      %1192 = vrot.lane.b32.xlu0 %v996, 1
      %v1193 = vpop.permute.xlu0 %1192
      %1194 = vrot.lane.b32.xlu0 %v998, 1
      %v1195 = vpop.permute.xlu0 %1194
      %1196 = vrot.lane.b32.xlu0 %v1000, 1
      %v1197 = vpop.permute.xlu0 %1196
      %1198 = vrot.lane.b32.xlu0 %v1002, 1
      %v1199 = vpop.permute.xlu0 %1198
      %vm1200 = vcmp.lt.s32.totalorder %v1024, 1
      %v1201 = vsel %vm1200, %v1185, %v1193
      %v1202 = vsel %vm1200, %v1187, %v1195
      %v1203 = vsel %vm1200, %v1189, %v1197
      %v1204 = vsel %vm1200, %v1191, %v1199
      %v1205 = vsel %vm1200, %v1193, %v1185
      %v1206 = vsel %vm1200, %v1195, %v1187
      %v1207 = vsel %vm1200, %v1197, %v1189
      %v1208 = vsel %vm1200, %v1199, %v1191
      %v1209 = vlaneseq
      %v1210 = vshrl.u32 %v1209, 7
      %v1211 = vsub.s32 3, %v1210
      %v1212 = vrot.slane %v596, %v1211
      %v1213 = vlaneseq
      %v1214 = vshrl.u32 %v1213, 7
      %v1215 = vsub.s32 3, %v1214
      %v1216 = vrot.slane %v597, %v1215
      %v1217 = vmul.f32 %v1205, %v1212
      %v1218 = vmul.f32 %v1201, %v1216
      %v1219 = vmul.f32 %v1206, %v1212
      %v1220 = vmul.f32 %v1202, %v1216
      %v1221 = vmul.f32 %v1207, %v1212
      %v1222 = vmul.f32 %v1203, %v1216
      %v1223 = vmul.f32 %v1208, %v1212
      %v1224 = vmul.f32 %v1204, %v1216
      %1225 = vst [vmem:[#allocation2] sm:$0xff] %v1217
      %1226 = vst [vmem:[#allocation2 + $0x8] sm:$0xff] %v1218
      %1227 = vst [vmem:[#allocation2 + $0x10] sm:$0xff] %v1219
      %1228 = vst [vmem:[#allocation2 + $0x18] sm:$0xff] %v1220
      %1229 = vst [vmem:[#allocation2 + $0x20] sm:$0xff] %v1221
      %1230 = vst [vmem:[#allocation2 + $0x28] sm:$0xff] %v1222
      %1231 = vst [vmem:[#allocation2 + $0x30] sm:$0xff] %v1223
      %1232 = vst [vmem:[#allocation2 + $0x38] sm:$0xff] %v1224
      %1233 = vst [vmem:[#allocation2 + $0x40] sm:$0xff] %v995
      %1234 = vst [vmem:[#allocation2 + $0x48] sm:$0xff] %v996
      %1235 = vst [vmem:[#allocation2 + $0x50] sm:$0xff] %v997
      %1236 = vst [vmem:[#allocation2 + $0x58] sm:$0xff] %v998
      %1237 = vst [vmem:[#allocation2 + $0x60] sm:$0xff] %v999
      %1238 = vst [vmem:[#allocation2 + $0x68] sm:$0xff] %v1000
      %1239 = vst [vmem:[#allocation2 + $0x70] sm:$0xff] %v1001
      %1240 = vst [vmem:[#allocation2 + $0x78] sm:$0xff] %v1002
      %1241 = vrot.lane.b32.xlu0 %v995, 127
      %v1242 = vpop.permute.xlu0 %1241
      %1243 = vrot.lane.b32.xlu0 %v997, 127
      %v1244 = vpop.permute.xlu0 %1243
      %1245 = vrot.lane.b32.xlu0 %v999, 127
      %v1246 = vpop.permute.xlu0 %1245
      %1247 = vrot.lane.b32.xlu0 %v1001, 127
      %v1248 = vpop.permute.xlu0 %1247
      %1249 = vrot.lane.b32.xlu0 %v996, 127
      %v1250 = vpop.permute.xlu0 %1249
      %1251 = vrot.lane.b32.xlu0 %v998, 127
      %v1252 = vpop.permute.xlu0 %1251
      %1253 = vrot.lane.b32.xlu0 %v1000, 127
      %v1254 = vpop.permute.xlu0 %1253
      %1255 = vrot.lane.b32.xlu0 %v1002, 127
      %v1256 = vpop.permute.xlu0 %1255
      %vm1257 = vcmp.lt.s32.totalorder %v1024, 127
      %v1258 = vsel %vm1257, %v1242, %v1250
      %v1259 = vsel %vm1257, %v1244, %v1252
      %v1260 = vsel %vm1257, %v1246, %v1254
      %v1261 = vsel %vm1257, %v1248, %v1256
      %v1262 = vsel %vm1257, %v1250, %v1242
      %v1263 = vsel %vm1257, %v1252, %v1244
      %v1264 = vsel %vm1257, %v1254, %v1246
      %v1265 = vsel %vm1257, %v1256, %v1248
      %v1266 = vlaneseq
      %v1267 = vshrl.u32 %v1266, 7
      %v1268 = vsub.s32 5, %v1267
      %v1269 = vrot.slane %v596, %v1268
      %v1270 = vlaneseq
      %v1271 = vshrl.u32 %v1270, 7
      %v1272 = vsub.s32 5, %v1271
      %v1273 = vrot.slane %v597, %v1272
      %v1274 = vmul.f32 %v1258, %v1269
      %v1275 = vmul.f32 %v1262, %v1273
      %v1276 = vmul.f32 %v1259, %v1269
      %v1277 = vmul.f32 %v1263, %v1273
      %v1278 = vmul.f32 %v1260, %v1269
      %v1279 = vmul.f32 %v1264, %v1273
      %v1280 = vmul.f32 %v1261, %v1269
      %v1281 = vmul.f32 %v1265, %v1273
      %1282 = vst [vmem:[#allocation2 + $0x80] sm:$0xff] %v1274
      %1283 = vst [vmem:[#allocation2 + $0x88] sm:$0xff] %v1275
      %1284 = vst [vmem:[#allocation2 + $0x90] sm:$0xff] %v1276
      %1285 = vst [vmem:[#allocation2 + $0x98] sm:$0xff] %v1277
      %1286 = vst [vmem:[#allocation2 + $0xa0] sm:$0xff] %v1278
      %1287 = vst [vmem:[#allocation2 + $0xa8] sm:$0xff] %v1279
      %1288 = vst [vmem:[#allocation2 + $0xb0] sm:$0xff] %v1280
      %1289 = vst [vmem:[#allocation2 + $0xb8] sm:$0xff] %v1281
      %s1290 = scalar_lea.vmem %s6, 32
      %v1291 = vld [vmem:[%s1290] sm:$0xff]
      %v1292 = vld [vmem:[%s1290 + $0x8] sm:$0xff]
      %v1293 = vld [vmem:[%s1290 + $0x10] sm:$0xff]
      %v1294 = vld [vmem:[%s1290 + $0x18] sm:$0xff]
      %v1295 = vld [vmem:[#allocation2] sm:$0xff]
      %v1296 = vld [vmem:[#allocation2 + $0x8] sm:$0xff]
      %v1297 = vld [vmem:[#allocation2 + $0x10] sm:$0xff]
      %v1298 = vld [vmem:[#allocation2 + $0x18] sm:$0xff]
      %v1299 = vld [vmem:[#allocation2 + $0x20] sm:$0xff]
      %v1300 = vld [vmem:[#allocation2 + $0x28] sm:$0xff]
      %v1301 = vld [vmem:[#allocation2 + $0x30] sm:$0xff]
      %v1302 = vld [vmem:[#allocation2 + $0x38] sm:$0xff]
      %v1303 = vld [vmem:[#allocation2 + $0x40] sm:$0xff]
      %v1304 = vld [vmem:[#allocation2 + $0x48] sm:$0xff]
      %v1305 = vld [vmem:[#allocation2 + $0x50] sm:$0xff]
      %v1306 = vld [vmem:[#allocation2 + $0x58] sm:$0xff]
      %v1307 = vld [vmem:[#allocation2 + $0x60] sm:$0xff]
      %v1308 = vld [vmem:[#allocation2 + $0x68] sm:$0xff]
      %v1309 = vld [vmem:[#allocation2 + $0x70] sm:$0xff]
      %v1310 = vld [vmem:[#allocation2 + $0x78] sm:$0xff]
      %v1311 = vld [vmem:[#allocation2 + $0x80] sm:$0xff]
      %v1312 = vld [vmem:[#allocation2 + $0x88] sm:$0xff]
      %v1313 = vld [vmem:[#allocation2 + $0x90] sm:$0xff]
      %v1314 = vld [vmem:[#allocation2 + $0x98] sm:$0xff]
      %v1315 = vld [vmem:[#allocation2 + $0xa0] sm:$0xff]
      %v1316 = vld [vmem:[#allocation2 + $0xa8] sm:$0xff]
      %v1317 = vld [vmem:[#allocation2 + $0xb0] sm:$0xff]
      %v1318 = vld [vmem:[#allocation2 + $0xb8] sm:$0xff]
      %vm1319 = vcmask 785408
      %v1321 = vsel %vm1319, %v1291, 0
      %v1324 = vsel %vm1319, %v1292, 0
      %v1327 = vsel %vm1319, %v1293, 0
      %v1330 = vsel %vm1319, %v1294, 0
      %1332 = vmatprep.subr.mxu0 0.0
      %1333 = vmatpush1.msra.mxu0 0.0
      %1334 = vmatprep.subr.mxu0 0.0
      %1335 = vmatpush1.msra.mxu0 0.0
      %1336 = vmatprep.subr.mxu0 0.0
      %1337 = vmatpush1.msra.mxu0 0.0
      %1338 = vmatprep.subr.mxu0 0.0
      %1339 = vmatpush1.msra.mxu0 0.0
      %1340 = vmatprep.subr.mxu0 %v1318
      %1341 = vmatpush1.msra.mxu0 %v1317
      %1342 = vmatprep.subr.mxu0 %v1316
      %1343 = vmatpush1.msra.mxu0 %v1315
      %1344 = vmatprep.subr.mxu0 %v1314
      %1345 = vmatpush1.msra.mxu0 %v1313
      %1346 = vmatprep.subr.mxu0 %v1312
      %1347 = vmatpush1.msra.mxu0 %v1311
      %1348 = vmatprep.subr.mxu0 %v1310
      %1349 = vmatpush1.msra.mxu0 %v1309
      %1350 = vmatprep.subr.mxu0 %v1308
      %1351 = vmatpush1.msra.mxu0 %v1307
      %1352 = vmatprep.subr.mxu0 %v1306
      %1353 = vmatpush1.msra.mxu0 %v1305
      %1354 = vmatprep.subr.mxu0 %v1304
      %1355 = vmatpush1.msra.mxu0 %v1303
      %1356 = vmatprep.subr.mxu0 %v1302
      %1357 = vmatpush1.msra.mxu0 %v1301
      %1358 = vmatprep.subr.mxu0 %v1300
      %1359 = vmatpush1.msra.mxu0 %v1299
      %1360 = vmatprep.subr.mxu0 %v1298
      %1361 = vmatpush1.msra.mxu0 %v1297
      %1362 = vmatprep.subr.mxu0 %v1296
      %1363 = vmatpush1.msra.mxu0 %v1295
      %1364 = vmatprep.subr.mxu0 0.0
      %1365 = vmatpush2.msra.mxu0 0.0
      %1366 = vmatprep.subr.mxu0 0.0
      %1367 = vmatpush2.msra.mxu0 0.0
      %1368 = vmatprep.subr.mxu0 0.0
      %1369 = vmatpush2.msra.mxu0 0.0
      %1370 = vmatprep.subr.mxu0 0.0
      %1371 = vmatpush2.msra.mxu0 0.0
      %1372 = vmatprep.subr.mxu0 0.0
      %1373 = vmatpush2.msra.mxu0 0.0
      %1374 = vmatprep.subr.mxu0 0.0
      %1375 = vmatpush2.msra.mxu0 0.0
      %1376 = vmatprep.subr.mxu0 0.0
      %1377 = vmatpush2.msra.mxu0 0.0
      %1378 = vmatprep.subr.mxu0 0.0
      %1379 = vmatpush2.msra.mxu0 0.0
      %1380 = vmatprep.subr.mxu0 0.0
      %1381 = vmatpush2.msra.mxu0 0.0
      %1382 = vmatprep.subr.mxu0 0.0
      %1383 = vmatpush2.msra.mxu0 0.0
      %1384 = vmatprep.subr.mxu0 0.0
      %1385 = vmatpush2.msra.mxu0 0.0
      %1386 = vmatprep.subr.mxu0 0.0
      %1387 = vmatpush2.msra.mxu0 0.0
      %1388 = vmatprep.subr.mxu0 0.0
      %1389 = vmatpush2.msra.mxu0 0.0
      %1390 = vmatprep.subr.mxu0 0.0
      %1391 = vmatpush2.msra.mxu0 0.0
      %1392 = vmatprep.subr.mxu0 0.0
      %1393 = vmatpush2.msra.mxu0 0.0
      %1394 = vmatprep.subr.mxu0 0.0
      %1395 = vmatpush2.msra.mxu0 0.0
      %1396 = vmatprep.mubr.f32.mxu0 0.0
      %1397 = vmatmul.mubr.f32.gmra.mxu0 %v1321
      %v1398 = vpop.f32.mrf.mxu0
      %v1399 = vadd.f32 0.0, %v1398
      %v1400 = vpop.f32.mrf.mxu0
      %v1401 = vadd.f32 0.0, %v1400
      %1402 = vmatprep.mubr.f32.mxu0 0.0
      %1403 = vmatmul.mubr.f32.gmra.mxu0 %v1324
      %v1404 = vpop.f32.mrf.mxu0
      %v1405 = vadd.f32 0.0, %v1404
      %v1406 = vpop.f32.mrf.mxu0
      %v1407 = vadd.f32 0.0, %v1406
      %1408 = vmatprep.mubr.f32.mxu0 0.0
      %1409 = vmatmul.mubr.f32.gmra.mxu0 %v1327
      %v1410 = vpop.f32.mrf.mxu0
      %v1411 = vadd.f32 0.0, %v1410
      %v1412 = vpop.f32.mrf.mxu0
      %v1413 = vadd.f32 0.0, %v1412
      %1414 = vmatprep.mubr.f32.mxu0 0.0
      %1415 = vmatmul.mubr.f32.gmra.mxu0 %v1330
      %v1416 = vpop.f32.mrf.mxu0
      %v1417 = vadd.f32 0.0, %v1416
      %v1418 = vpop.f32.mrf.mxu0
      %v1419 = vadd.f32 0.0, %v1418
      %1420 = vdwg.mxu0
      %v1422 = vsel %vm1319, %v1156, 0
      %v1425 = vsel %vm1319, %v1157, 0
      %v1428 = vsel %vm1319, %v1158, 0
      %v1431 = vsel %vm1319, %v1159, 0
      %1433 = vmatprep.subr.mxu0 0.0
      %1434 = vmatpush1.msra.mxu0 0.0
      %1435 = vmatprep.subr.mxu0 0.0
      %1436 = vmatpush1.msra.mxu0 0.0
      %1437 = vmatprep.subr.mxu0 0.0
      %1438 = vmatpush1.msra.mxu0 0.0
      %1439 = vmatprep.subr.mxu0 0.0
      %1440 = vmatpush1.msra.mxu0 0.0
      %1441 = vmatprep.subr.mxu0 %v1183
      %1442 = vmatpush1.msra.mxu0 %v1182
      %1443 = vmatprep.subr.mxu0 %v1181
      %1444 = vmatpush1.msra.mxu0 %v1180
      %1445 = vmatprep.subr.mxu0 %v1179
      %1446 = vmatpush1.msra.mxu0 %v1178
      %1447 = vmatprep.subr.mxu0 %v1177
      %1448 = vmatpush1.msra.mxu0 %v1176
      %1449 = vmatprep.subr.mxu0 %v1175
      %1450 = vmatpush1.msra.mxu0 %v1174
      %1451 = vmatprep.subr.mxu0 %v1173
      %1452 = vmatpush1.msra.mxu0 %v1172
      %1453 = vmatprep.subr.mxu0 %v1171
      %1454 = vmatpush1.msra.mxu0 %v1170
      %1455 = vmatprep.subr.mxu0 %v1169
      %1456 = vmatpush1.msra.mxu0 %v1168
      %1457 = vmatprep.subr.mxu0 %v1167
      %1458 = vmatpush1.msra.mxu0 %v1166
      %1459 = vmatprep.subr.mxu0 %v1165
      %1460 = vmatpush1.msra.mxu0 %v1164
      %1461 = vmatprep.subr.mxu0 %v1163
      %1462 = vmatpush1.msra.mxu0 %v1162
      %1463 = vmatprep.subr.mxu0 %v1161
      %1464 = vmatpush1.msra.mxu0 %v1160
      %1465 = vmatprep.subr.mxu0 0.0
      %1466 = vmatpush2.msra.mxu0 0.0
      %1467 = vmatprep.subr.mxu0 0.0
      %1468 = vmatpush2.msra.mxu0 0.0
      %1469 = vmatprep.subr.mxu0 0.0
      %1470 = vmatpush2.msra.mxu0 0.0
      %1471 = vmatprep.subr.mxu0 0.0
      %1472 = vmatpush2.msra.mxu0 0.0
      %1473 = vmatprep.subr.mxu0 0.0
      %1474 = vmatpush2.msra.mxu0 0.0
      %1475 = vmatprep.subr.mxu0 0.0
      %1476 = vmatpush2.msra.mxu0 0.0
      %1477 = vmatprep.subr.mxu0 0.0
      %1478 = vmatpush2.msra.mxu0 0.0
      %1479 = vmatprep.subr.mxu0 0.0
      %1480 = vmatpush2.msra.mxu0 0.0
      %1481 = vmatprep.subr.mxu0 0.0
      %1482 = vmatpush2.msra.mxu0 0.0
      %1483 = vmatprep.subr.mxu0 0.0
      %1484 = vmatpush2.msra.mxu0 0.0
      %1485 = vmatprep.subr.mxu0 0.0
      %1486 = vmatpush2.msra.mxu0 0.0
      %1487 = vmatprep.subr.mxu0 0.0
      %1488 = vmatpush2.msra.mxu0 0.0
      %1489 = vmatprep.subr.mxu0 0.0
      %1490 = vmatpush2.msra.mxu0 0.0
      %1491 = vmatprep.subr.mxu0 0.0
      %1492 = vmatpush2.msra.mxu0 0.0
      %1493 = vmatprep.subr.mxu0 0.0
      %1494 = vmatpush2.msra.mxu0 0.0
      %1495 = vmatprep.subr.mxu0 0.0
      %1496 = vmatpush2.msra.mxu0 0.0
      %1497 = vmatprep.mubr.f32.mxu0 0.0
      %1498 = vmatmul.mubr.f32.gmra.mxu0 %v1422
      %v1499 = vpop.f32.mrf.mxu0
      %v1500 = vadd.f32 %v1399, %v1499
      %v1501 = vpop.f32.mrf.mxu0
      %v1502 = vadd.f32 %v1401, %v1501
      %1503 = vmatprep.mubr.f32.mxu0 0.0
      %1504 = vmatmul.mubr.f32.gmra.mxu0 %v1425
      %v1505 = vpop.f32.mrf.mxu0
      %v1506 = vadd.f32 %v1405, %v1505
      %v1507 = vpop.f32.mrf.mxu0
      %v1508 = vadd.f32 %v1407, %v1507
      %1509 = vmatprep.mubr.f32.mxu0 0.0
      %1510 = vmatmul.mubr.f32.gmra.mxu0 %v1428
      %v1511 = vpop.f32.mrf.mxu0
      %v1512 = vadd.f32 %v1411, %v1511
      %v1513 = vpop.f32.mrf.mxu0
      %v1514 = vadd.f32 %v1413, %v1513
      %1515 = vmatprep.mubr.f32.mxu0 0.0
      %1516 = vmatmul.mubr.f32.gmra.mxu0 %v1431
      %v1517 = vpop.f32.mrf.mxu0
      %v1518 = vadd.f32 %v1417, %v1517
      %v1519 = vpop.f32.mrf.mxu0
      %v1520 = vadd.f32 %v1419, %v1519
      %1521 = vdwg.mxu0
      %1522 = vrot.lane.b32.xlu0 %v995, 113
      %v1523 = vpop.permute.xlu0 %1522
      %1524 = vrot.lane.b32.xlu0 %v997, 113
      %v1525 = vpop.permute.xlu0 %1524
      %1526 = vrot.lane.b32.xlu0 %v999, 113
      %v1527 = vpop.permute.xlu0 %1526
      %1528 = vrot.lane.b32.xlu0 %v1001, 113
      %v1529 = vpop.permute.xlu0 %1528
      %1530 = vrot.lane.b32.xlu0 %v996, 113
      %v1531 = vpop.permute.xlu0 %1530
      %1532 = vrot.lane.b32.xlu0 %v998, 113
      %v1533 = vpop.permute.xlu0 %1532
      %1534 = vrot.lane.b32.xlu0 %v1000, 113
      %v1535 = vpop.permute.xlu0 %1534
      %1536 = vrot.lane.b32.xlu0 %v1002, 113
      %v1537 = vpop.permute.xlu0 %1536
      %vm1538 = vcmp.lt.s32.totalorder %v1024, 113
      %v1539 = vsel %vm1538, %v1523, %v1531
      %v1540 = vsel %vm1538, %v1525, %v1533
      %v1541 = vsel %vm1538, %v1527, %v1535
      %v1542 = vsel %vm1538, %v1529, %v1537
      %v1543 = vsel %vm1538, %v1531, %v1523
      %v1544 = vsel %vm1538, %v1533, %v1525
      %v1545 = vsel %vm1538, %v1535, %v1527
      %v1546 = vsel %vm1538, %v1537, %v1529
      %v1547 = vlaneseq
      %v1548 = vshrl.u32 %v1547, 7
      %v1549 = vsub.s32 6, %v1548
      %v1550 = vrot.slane %v596, %v1549
      %v1551 = vlaneseq
      %v1552 = vshrl.u32 %v1551, 7
      %v1553 = vsub.s32 6, %v1552
      %v1554 = vrot.slane %v597, %v1553
      %v1555 = vmul.f32 %v1539, %v1550
      %v1556 = vmul.f32 %v1543, %v1554
      %v1557 = vmul.f32 %v1540, %v1550
      %v1558 = vmul.f32 %v1544, %v1554
      %v1559 = vmul.f32 %v1541, %v1550
      %v1560 = vmul.f32 %v1545, %v1554
      %v1561 = vmul.f32 %v1542, %v1550
      %v1562 = vmul.f32 %v1546, %v1554
      %1563 = vst [vmem:[#allocation2] sm:$0xff] %v1555
      %1564 = vst [vmem:[#allocation2 + $0x8] sm:$0xff] %v1556
      %1565 = vst [vmem:[#allocation2 + $0x10] sm:$0xff] %v1557
      %1566 = vst [vmem:[#allocation2 + $0x18] sm:$0xff] %v1558
      %1567 = vst [vmem:[#allocation2 + $0x20] sm:$0xff] %v1559
      %1568 = vst [vmem:[#allocation2 + $0x28] sm:$0xff] %v1560
      %1569 = vst [vmem:[#allocation2 + $0x30] sm:$0xff] %v1561
      %1570 = vst [vmem:[#allocation2 + $0x38] sm:$0xff] %v1562
      %1571 = vrot.lane.b32.xlu0 %v995, 112
      %v1572 = vpop.permute.xlu0 %1571
      %1573 = vrot.lane.b32.xlu0 %v997, 112
      %v1574 = vpop.permute.xlu0 %1573
      %1575 = vrot.lane.b32.xlu0 %v999, 112
      %v1576 = vpop.permute.xlu0 %1575
      %1577 = vrot.lane.b32.xlu0 %v1001, 112
      %v1578 = vpop.permute.xlu0 %1577
      %1579 = vrot.lane.b32.xlu0 %v996, 112
      %v1580 = vpop.permute.xlu0 %1579
      %1581 = vrot.lane.b32.xlu0 %v998, 112
      %v1582 = vpop.permute.xlu0 %1581
      %1583 = vrot.lane.b32.xlu0 %v1000, 112
      %v1584 = vpop.permute.xlu0 %1583
      %1585 = vrot.lane.b32.xlu0 %v1002, 112
      %v1586 = vpop.permute.xlu0 %1585
      %vm1587 = vcmp.lt.s32.totalorder %v1024, 112
      %v1588 = vsel %vm1587, %v1572, %v1580
      %v1589 = vsel %vm1587, %v1574, %v1582
      %v1590 = vsel %vm1587, %v1576, %v1584
      %v1591 = vsel %vm1587, %v1578, %v1586
      %v1592 = vsel %vm1587, %v1580, %v1572
      %v1593 = vsel %vm1587, %v1582, %v1574
      %v1594 = vsel %vm1587, %v1584, %v1576
      %v1595 = vsel %vm1587, %v1586, %v1578
      %v1596 = vlaneseq
      %v1597 = vshrl.u32 %v1596, 7
      %v1598 = vsub.s32 7, %v1597
      %v1599 = vrot.slane %v596, %v1598
      %v1600 = vlaneseq
      %v1601 = vshrl.u32 %v1600, 7
      %v1602 = vsub.s32 7, %v1601
      %v1603 = vrot.slane %v597, %v1602
      %v1604 = vmul.f32 %v1588, %v1599
      %v1605 = vmul.f32 %v1592, %v1603
      %v1606 = vmul.f32 %v1589, %v1599
      %v1607 = vmul.f32 %v1593, %v1603
      %v1608 = vmul.f32 %v1590, %v1599
      %v1609 = vmul.f32 %v1594, %v1603
      %v1610 = vmul.f32 %v1591, %v1599
      %v1611 = vmul.f32 %v1595, %v1603
      %1612 = vst [vmem:[#allocation2 + $0x40] sm:$0xff] %v1604
      %1613 = vst [vmem:[#allocation2 + $0x48] sm:$0xff] %v1605
      %1614 = vst [vmem:[#allocation2 + $0x50] sm:$0xff] %v1606
      %1615 = vst [vmem:[#allocation2 + $0x58] sm:$0xff] %v1607
      %1616 = vst [vmem:[#allocation2 + $0x60] sm:$0xff] %v1608
      %1617 = vst [vmem:[#allocation2 + $0x68] sm:$0xff] %v1609
      %1618 = vst [vmem:[#allocation2 + $0x70] sm:$0xff] %v1610
      %1619 = vst [vmem:[#allocation2 + $0x78] sm:$0xff] %v1611
      %1620 = vrot.lane.b32.xlu0 %v995, 111
      %v1621 = vpop.permute.xlu0 %1620
      %1622 = vrot.lane.b32.xlu0 %v997, 111
      %v1623 = vpop.permute.xlu0 %1622
      %1624 = vrot.lane.b32.xlu0 %v999, 111
      %v1625 = vpop.permute.xlu0 %1624
      %1626 = vrot.lane.b32.xlu0 %v1001, 111
      %v1627 = vpop.permute.xlu0 %1626
      %1628 = vrot.lane.b32.xlu0 %v996, 111
      %v1629 = vpop.permute.xlu0 %1628
      %1630 = vrot.lane.b32.xlu0 %v998, 111
      %v1631 = vpop.permute.xlu0 %1630
      %1632 = vrot.lane.b32.xlu0 %v1000, 111
      %v1633 = vpop.permute.xlu0 %1632
      %1634 = vrot.lane.b32.xlu0 %v1002, 111
      %v1635 = vpop.permute.xlu0 %1634
      %vm1636 = vcmp.lt.s32.totalorder %v1024, 111
      %v1637 = vsel %vm1636, %v1621, %v1629
      %v1638 = vsel %vm1636, %v1623, %v1631
      %v1639 = vsel %vm1636, %v1625, %v1633
      %v1640 = vsel %vm1636, %v1627, %v1635
      %v1641 = vsel %vm1636, %v1629, %v1621
      %v1642 = vsel %vm1636, %v1631, %v1623
      %v1643 = vsel %vm1636, %v1633, %v1625
      %v1644 = vsel %vm1636, %v1635, %v1627
      %v1645 = vlaneseq
      %v1646 = vshrl.u32 %v1645, 7
      %v1647 = vsub.s32 0, %v1646
      %v1648 = vrot.slane %v598, %v1647
      %v1649 = vlaneseq
      %v1650 = vshrl.u32 %v1649, 7
      %v1651 = vsub.s32 0, %v1650
      %v1652 = vrot.slane %v599, %v1651
      %v1653 = vmul.f32 %v1637, %v1648
      %v1654 = vmul.f32 %v1641, %v1652
      %v1655 = vmul.f32 %v1638, %v1648
      %v1656 = vmul.f32 %v1642, %v1652
      %v1657 = vmul.f32 %v1639, %v1648
      %v1658 = vmul.f32 %v1643, %v1652
      %v1659 = vmul.f32 %v1640, %v1648
      %v1660 = vmul.f32 %v1644, %v1652
      %1661 = vst [vmem:[#allocation2 + $0x80] sm:$0xff] %v1653
      %1662 = vst [vmem:[#allocation2 + $0x88] sm:$0xff] %v1654
      %1663 = vst [vmem:[#allocation2 + $0x90] sm:$0xff] %v1655
      %1664 = vst [vmem:[#allocation2 + $0x98] sm:$0xff] %v1656
      %1665 = vst [vmem:[#allocation2 + $0xa0] sm:$0xff] %v1657
      %1666 = vst [vmem:[#allocation2 + $0xa8] sm:$0xff] %v1658
      %1667 = vst [vmem:[#allocation2 + $0xb0] sm:$0xff] %v1659
      %1668 = vst [vmem:[#allocation2 + $0xb8] sm:$0xff] %v1660
      %s1669 = scalar_lea.vmem %s6, 64
      %v1670 = vld [vmem:[%s1669] sm:$0xff]
      %v1671 = vld [vmem:[%s1669 + $0x8] sm:$0xff]
      %v1672 = vld [vmem:[%s1669 + $0x10] sm:$0xff]
      %v1673 = vld [vmem:[%s1669 + $0x18] sm:$0xff]
      %v1674 = vld [vmem:[#allocation2] sm:$0xff]
      %v1675 = vld [vmem:[#allocation2 + $0x8] sm:$0xff]
      %v1676 = vld [vmem:[#allocation2 + $0x10] sm:$0xff]
      %v1677 = vld [vmem:[#allocation2 + $0x18] sm:$0xff]
      %v1678 = vld [vmem:[#allocation2 + $0x20] sm:$0xff]
      %v1679 = vld [vmem:[#allocation2 + $0x28] sm:$0xff]
      %v1680 = vld [vmem:[#allocation2 + $0x30] sm:$0xff]
      %v1681 = vld [vmem:[#allocation2 + $0x38] sm:$0xff]
      %v1682 = vld [vmem:[#allocation2 + $0x40] sm:$0xff]
      %v1683 = vld [vmem:[#allocation2 + $0x48] sm:$0xff]
      %v1684 = vld [vmem:[#allocation2 + $0x50] sm:$0xff]
      %v1685 = vld [vmem:[#allocation2 + $0x58] sm:$0xff]
      %v1686 = vld [vmem:[#allocation2 + $0x60] sm:$0xff]
      %v1687 = vld [vmem:[#allocation2 + $0x68] sm:$0xff]
      %v1688 = vld [vmem:[#allocation2 + $0x70] sm:$0xff]
      %v1689 = vld [vmem:[#allocation2 + $0x78] sm:$0xff]
      %v1690 = vld [vmem:[#allocation2 + $0x80] sm:$0xff]
      %v1691 = vld [vmem:[#allocation2 + $0x88] sm:$0xff]
      %v1692 = vld [vmem:[#allocation2 + $0x90] sm:$0xff]
      %v1693 = vld [vmem:[#allocation2 + $0x98] sm:$0xff]
      %v1694 = vld [vmem:[#allocation2 + $0xa0] sm:$0xff]
      %v1695 = vld [vmem:[#allocation2 + $0xa8] sm:$0xff]
      %v1696 = vld [vmem:[#allocation2 + $0xb0] sm:$0xff]
      %v1697 = vld [vmem:[#allocation2 + $0xb8] sm:$0xff]
      %v1699 = vsel %vm1319, %v1670, 0
      %v1702 = vsel %vm1319, %v1671, 0
      %v1705 = vsel %vm1319, %v1672, 0
      %v1708 = vsel %vm1319, %v1673, 0
      %1710 = vmatprep.subr.mxu0 0.0
      %1711 = vmatpush1.msra.mxu0 0.0
      %1712 = vmatprep.subr.mxu0 0.0
      %1713 = vmatpush1.msra.mxu0 0.0
      %1714 = vmatprep.subr.mxu0 0.0
      %1715 = vmatpush1.msra.mxu0 0.0
      %1716 = vmatprep.subr.mxu0 0.0
      %1717 = vmatpush1.msra.mxu0 0.0
      %1718 = vmatprep.subr.mxu0 %v1697
      %1719 = vmatpush1.msra.mxu0 %v1696
      %1720 = vmatprep.subr.mxu0 %v1695
      %1721 = vmatpush1.msra.mxu0 %v1694
      %1722 = vmatprep.subr.mxu0 %v1693
      %1723 = vmatpush1.msra.mxu0 %v1692
      %1724 = vmatprep.subr.mxu0 %v1691
      %1725 = vmatpush1.msra.mxu0 %v1690
      %1726 = vmatprep.subr.mxu0 %v1689
      %1727 = vmatpush1.msra.mxu0 %v1688
      %1728 = vmatprep.subr.mxu0 %v1687
      %1729 = vmatpush1.msra.mxu0 %v1686
      %1730 = vmatprep.subr.mxu0 %v1685
      %1731 = vmatpush1.msra.mxu0 %v1684
      %1732 = vmatprep.subr.mxu0 %v1683
      %1733 = vmatpush1.msra.mxu0 %v1682
      %1734 = vmatprep.subr.mxu0 %v1681
      %1735 = vmatpush1.msra.mxu0 %v1680
      %1736 = vmatprep.subr.mxu0 %v1679
      %1737 = vmatpush1.msra.mxu0 %v1678
      %1738 = vmatprep.subr.mxu0 %v1677
      %1739 = vmatpush1.msra.mxu0 %v1676
      %1740 = vmatprep.subr.mxu0 %v1675
      %1741 = vmatpush1.msra.mxu0 %v1674
      %1742 = vmatprep.subr.mxu0 0.0
      %1743 = vmatpush2.msra.mxu0 0.0
      %1744 = vmatprep.subr.mxu0 0.0
      %1745 = vmatpush2.msra.mxu0 0.0
      %1746 = vmatprep.subr.mxu0 0.0
      %1747 = vmatpush2.msra.mxu0 0.0
      %1748 = vmatprep.subr.mxu0 0.0
      %1749 = vmatpush2.msra.mxu0 0.0
      %1750 = vmatprep.subr.mxu0 0.0
      %1751 = vmatpush2.msra.mxu0 0.0
      %1752 = vmatprep.subr.mxu0 0.0
      %1753 = vmatpush2.msra.mxu0 0.0
      %1754 = vmatprep.subr.mxu0 0.0
      %1755 = vmatpush2.msra.mxu0 0.0
      %1756 = vmatprep.subr.mxu0 0.0
      %1757 = vmatpush2.msra.mxu0 0.0
      %1758 = vmatprep.subr.mxu0 0.0
      %1759 = vmatpush2.msra.mxu0 0.0
      %1760 = vmatprep.subr.mxu0 0.0
      %1761 = vmatpush2.msra.mxu0 0.0
      %1762 = vmatprep.subr.mxu0 0.0
      %1763 = vmatpush2.msra.mxu0 0.0
      %1764 = vmatprep.subr.mxu0 0.0
      %1765 = vmatpush2.msra.mxu0 0.0
      %1766 = vmatprep.subr.mxu0 0.0
      %1767 = vmatpush2.msra.mxu0 0.0
      %1768 = vmatprep.subr.mxu0 0.0
      %1769 = vmatpush2.msra.mxu0 0.0
      %1770 = vmatprep.subr.mxu0 0.0
      %1771 = vmatpush2.msra.mxu0 0.0
      %1772 = vmatprep.subr.mxu0 0.0
      %1773 = vmatpush2.msra.mxu0 0.0
      %1774 = vmatprep.mubr.f32.mxu0 0.0
      %1775 = vmatmul.mubr.f32.gmra.mxu0 %v1699
      %v1776 = vpop.f32.mrf.mxu0
      %v1777 = vadd.f32 0.0, %v1776
      %v1778 = vpop.f32.mrf.mxu0
      %v1779 = vadd.f32 0.0, %v1778
      %1780 = vmatprep.mubr.f32.mxu0 0.0
      %1781 = vmatmul.mubr.f32.gmra.mxu0 %v1702
      %v1782 = vpop.f32.mrf.mxu0
      %v1783 = vadd.f32 0.0, %v1782
      %v1784 = vpop.f32.mrf.mxu0
      %v1785 = vadd.f32 0.0, %v1784
      %1786 = vmatprep.mubr.f32.mxu0 0.0
      %1787 = vmatmul.mubr.f32.gmra.mxu0 %v1705
      %v1788 = vpop.f32.mrf.mxu0
      %v1789 = vadd.f32 0.0, %v1788
      %v1790 = vpop.f32.mrf.mxu0
      %v1791 = vadd.f32 0.0, %v1790
      %1792 = vmatprep.mubr.f32.mxu0 0.0
      %1793 = vmatmul.mubr.f32.gmra.mxu0 %v1708
      %v1794 = vpop.f32.mrf.mxu0
      %v1795 = vadd.f32 0.0, %v1794
      %v1796 = vpop.f32.mrf.mxu0
      %v1797 = vadd.f32 0.0, %v1796
      %1798 = vdwg.mxu0
      %v1799 = vadd.f32 %v1500, %v1777
      %v1800 = vadd.f32 %v1502, %v1779
      %v1801 = vadd.f32 %v1506, %v1783
      %v1802 = vadd.f32 %v1508, %v1785
      %v1803 = vadd.f32 %v1512, %v1789
      %v1804 = vadd.f32 %v1514, %v1791
      %v1805 = vadd.f32 %v1518, %v1795
      %v1806 = vadd.f32 %v1520, %v1797
      %1808 = vset.pattern.permute.xlu0 0
      %1809 = vperm.xlu0 %1808, %v1003
      %v1810 = vpop.permute.xlu0 %1809
      %1813 = vset.pattern.permute.xlu0 0
      %1814 = vperm.xlu0 %1813, %v1004
      %v1815 = vpop.permute.xlu0 %1814
      %1818 = vset.pattern.permute.xlu0 0
      %1819 = vperm.xlu0 %1818, %v1005
      %v1820 = vpop.permute.xlu0 %1819
      %1823 = vset.pattern.permute.xlu0 0
      %1824 = vperm.xlu0 %1823, %v1006
      %v1825 = vpop.permute.xlu0 %1824
      %v1827 = vadd.f32 %v1799, %v1810
      %v1828 = vadd.f32 %v1800, %v1810
      %v1829 = vadd.f32 %v1801, %v1815
      %v1830 = vadd.f32 %v1802, %v1815
      %v1831 = vadd.f32 %v1803, %v1820
      %v1832 = vadd.f32 %v1804, %v1820
      %v1833 = vadd.f32 %v1805, %v1825
      %v1834 = vadd.f32 %v1806, %v1825
      %v1835 = vld [vmem:[%s590] sm:$0xff]
      %v1836 = vld [vmem:[%s590 + $0x8] sm:$0xff]
      %v1837 = vld [vmem:[%s590 + $0x10] sm:$0xff]
      %v1838 = vld [vmem:[%s590 + $0x18] sm:$0xff]
      %1840 = vset.pattern.permute.xlu0 0
      %1841 = vperm.xlu0 %1840, %v1835
      %v1842 = vpop.permute.xlu0 %1841
      %1845 = vset.pattern.permute.xlu0 0
      %1846 = vperm.xlu0 %1845, %v1836
      %v1847 = vpop.permute.xlu0 %1846
      %1850 = vset.pattern.permute.xlu0 0
      %1851 = vperm.xlu0 %1850, %v1837
      %v1852 = vpop.permute.xlu0 %1851
      %1855 = vset.pattern.permute.xlu0 0
      %1856 = vperm.xlu0 %1855, %v1838
      %v1857 = vpop.permute.xlu0 %1856
      %v1859 = vadd.f32 %v1827, %v1842
      %v1860 = vadd.f32 %v1828, %v1842
      %v1861 = vadd.f32 %v1829, %v1847
      %v1862 = vadd.f32 %v1830, %v1847
      %v1863 = vadd.f32 %v1831, %v1852
      %v1864 = vadd.f32 %v1832, %v1852
      %v1865 = vadd.f32 %v1833, %v1857
      %v1866 = vadd.f32 %v1834, %v1857
      %v1867 = vld [vmem:[%s10] sm:$0xff]
      %v1868 = vld [vmem:[%s10 + $0x8] sm:$0xff]
      %v1869 = vld [vmem:[%s10 + $0x10] sm:$0xff]
      %v1870 = vld [vmem:[%s10 + $0x18] sm:$0xff]
      %v1871 = vld [vmem:[%s8] sm:$0xff]
      %v1872 = vld [vmem:[%s8 + $0x8] sm:$0xff]
      %v1873 = vld [vmem:[%s8 + $0x10] sm:$0xff]
      %v1874 = vld [vmem:[%s8 + $0x18] sm:$0xff]
      %v1875 = vld [vmem:[%s9] sm:$0xff]
      %v1876 = vld [vmem:[%s9 + $0x8] sm:$0xff]
      %v1877 = vld [vmem:[%s9 + $0x10] sm:$0xff]
      %v1878 = vld [vmem:[%s9 + $0x18] sm:$0xff]
      %v1879 = vadd.f32 %v1859, %v1860
      %1880 = vadd.xlane.f32.xlu0 %v1879
      %v1881 = vpop.xlane.xlu0 %1880
      %v1882 = vadd.f32 %v1861, %v1862
      %1883 = vadd.xlane.f32.xlu0 %v1882
      %v1884 = vpop.xlane.xlu0 %1883
      %v1885 = vadd.f32 %v1863, %v1864
      %1886 = vadd.xlane.f32.xlu0 %v1885
      %v1887 = vpop.xlane.xlu0 %1886
      %v1888 = vadd.f32 %v1865, %v1866
      %1889 = vadd.xlane.f32.xlu0 %v1888
      %v1890 = vpop.xlane.xlu0 %1889
      %v1892 = vsel %vm632, %v1867, 0
      %v1895 = vsel %vm632, %v1868, 0
      %v1898 = vsel %vm632, %v1869, 0
      %v1901 = vsel %vm632, %v1870, 0
      %1903 = vmatprep.subr.mxu0 0.0
      %1904 = vmatpush1.msra.mxu0 0.0
      %1905 = vmatprep.subr.mxu0 0.0
      %1906 = vmatpush1.msra.mxu0 0.0
      %1907 = vmatprep.subr.mxu0 0.0
      %1908 = vmatpush1.msra.mxu0 0.0
      %1909 = vmatprep.subr.mxu0 0.0
      %1910 = vmatpush1.msra.mxu0 0.0
      %1911 = vmatprep.subr.mxu0 0.0
      %1912 = vmatpush1.msra.mxu0 0.0
      %1913 = vmatprep.subr.mxu0 0.0
      %1914 = vmatpush1.msra.mxu0 0.0
      %1915 = vmatprep.subr.mxu0 0.0
      %1916 = vmatpush1.msra.mxu0 0.0
      %1917 = vmatprep.subr.mxu0 0.0
      %1918 = vmatpush1.msra.mxu0 0.0
      %1919 = vmatprep.subr.mxu0 0.0
      %1920 = vmatpush1.msra.mxu0 0.0
      %1921 = vmatprep.subr.mxu0 0.0
      %1922 = vmatpush1.msra.mxu0 0.0
      %1923 = vmatprep.subr.mxu0 0.0
      %1924 = vmatpush1.msra.mxu0 0.0
      %1925 = vmatprep.subr.mxu0 0.0
      %1926 = vmatpush1.msra.mxu0 0.0
      %1927 = vmatprep.subr.mxu0 0.0
      %1928 = vmatpush1.msra.mxu0 %v1890
      %1929 = vmatprep.subr.mxu0 0.0
      %1930 = vmatpush1.msra.mxu0 %v1887
      %1931 = vmatprep.subr.mxu0 0.0
      %1932 = vmatpush1.msra.mxu0 %v1884
      %1933 = vmatprep.subr.mxu0 0.0
      %1934 = vmatpush1.msra.mxu0 %v1881
      %1935 = vmatprep.subr.mxu0 0.0
      %1936 = vmatpush2.msra.mxu0 0.0
      %1937 = vmatprep.subr.mxu0 0.0
      %1938 = vmatpush2.msra.mxu0 0.0
      %1939 = vmatprep.subr.mxu0 0.0
      %1940 = vmatpush2.msra.mxu0 0.0
      %1941 = vmatprep.subr.mxu0 0.0
      %1942 = vmatpush2.msra.mxu0 0.0
      %1943 = vmatprep.subr.mxu0 0.0
      %1944 = vmatpush2.msra.mxu0 0.0
      %1945 = vmatprep.subr.mxu0 0.0
      %1946 = vmatpush2.msra.mxu0 0.0
      %1947 = vmatprep.subr.mxu0 0.0
      %1948 = vmatpush2.msra.mxu0 0.0
      %1949 = vmatprep.subr.mxu0 0.0
      %1950 = vmatpush2.msra.mxu0 0.0
      %1951 = vmatprep.subr.mxu0 0.0
      %1952 = vmatpush2.msra.mxu0 0.0
      %1953 = vmatprep.subr.mxu0 0.0
      %1954 = vmatpush2.msra.mxu0 0.0
      %1955 = vmatprep.subr.mxu0 0.0
      %1956 = vmatpush2.msra.mxu0 0.0
      %1957 = vmatprep.subr.mxu0 0.0
      %1958 = vmatpush2.msra.mxu0 0.0
      %1959 = vmatprep.subr.mxu0 0.0
      %1960 = vmatpush2.msra.mxu0 0.0
      %1961 = vmatprep.subr.mxu0 0.0
      %1962 = vmatpush2.msra.mxu0 0.0
      %1963 = vmatprep.subr.mxu0 0.0
      %1964 = vmatpush2.msra.mxu0 0.0
      %1965 = vmatprep.subr.mxu0 0.0
      %1966 = vmatpush2.msra.mxu0 0.0
      %1967 = vmatprep.mubr.f32.mxu0 0.0
      %1968 = vmatmul.mubr.f32.gmra.mxu0 %v1892
      %v1969 = vpop.f32.mrf.mxu0
      %v1970 = vadd.f32 0.0, %v1969
      %v1971 = vpop.f32.mrf.mxu0
      %1972 = vmatprep.mubr.f32.mxu0 0.0
      %1973 = vmatmul.mubr.f32.gmra.mxu0 %v1895
      %v1974 = vpop.f32.mrf.mxu0
      %v1975 = vadd.f32 0.0, %v1974
      %v1976 = vpop.f32.mrf.mxu0
      %1977 = vmatprep.mubr.f32.mxu0 0.0
      %1978 = vmatmul.mubr.f32.gmra.mxu0 %v1898
      %v1979 = vpop.f32.mrf.mxu0
      %v1980 = vadd.f32 0.0, %v1979
      %v1981 = vpop.f32.mrf.mxu0
      %1982 = vmatprep.mubr.f32.mxu0 0.0
      %1983 = vmatmul.mubr.f32.gmra.mxu0 %v1901
      %v1984 = vpop.f32.mrf.mxu0
      %v1985 = vadd.f32 0.0, %v1984
      %v1986 = vpop.f32.mrf.mxu0
      %1987 = vdwg.mxu0
      %v1988 = vmul.f32 %v1970, 0.0009765625
      %v1989 = vmul.f32 %v1975, 0.0009765625
      %v1990 = vmul.f32 %v1980, 0.0009765625
      %v1991 = vmul.f32 %v1985, 0.0009765625
      %1993 = vset.pattern.permute.xlu0 0
      %1994 = vperm.xlu0 %1993, %v1988
      %v1995 = vpop.permute.xlu0 %1994
      %1998 = vset.pattern.permute.xlu0 0
      %1999 = vperm.xlu0 %1998, %v1989
      %v2000 = vpop.permute.xlu0 %1999
      %2003 = vset.pattern.permute.xlu0 0
      %2004 = vperm.xlu0 %2003, %v1990
      %v2005 = vpop.permute.xlu0 %2004
      %2008 = vset.pattern.permute.xlu0 0
      %2009 = vperm.xlu0 %2008, %v1991
      %v2010 = vpop.permute.xlu0 %2009
      %v2012 = vsub.f32 %v1859, %v1995
      %v2013 = vsub.f32 %v1860, %v1995
      %v2014 = vsub.f32 %v1861, %v2000
      %v2015 = vsub.f32 %v1862, %v2000
      %v2016 = vsub.f32 %v1863, %v2005
      %v2017 = vsub.f32 %v1864, %v2005
      %v2018 = vsub.f32 %v1865, %v2010
      %v2019 = vsub.f32 %v1866, %v2010
      %v2020 = vmul.f32 %v2012, %v2012
      %v2021 = vmul.f32 %v2013, %v2013
      %v2022 = vmul.f32 %v2014, %v2014
      %v2023 = vmul.f32 %v2015, %v2015
      %v2024 = vmul.f32 %v2016, %v2016
      %v2025 = vmul.f32 %v2017, %v2017
      %v2026 = vmul.f32 %v2018, %v2018
      %v2027 = vmul.f32 %v2019, %v2019
      %v2028 = vadd.f32 %v2020, %v2021
      %2029 = vadd.xlane.f32.xlu0 %v2028
      %v2030 = vpop.xlane.xlu0 %2029
      %v2031 = vadd.f32 %v2022, %v2023
      %2032 = vadd.xlane.f32.xlu0 %v2031
      %v2033 = vpop.xlane.xlu0 %2032
      %v2034 = vadd.f32 %v2024, %v2025
      %2035 = vadd.xlane.f32.xlu0 %v2034
      %v2036 = vpop.xlane.xlu0 %2035
      %v2037 = vadd.f32 %v2026, %v2027
      %2038 = vadd.xlane.f32.xlu0 %v2037
      %v2039 = vpop.xlane.xlu0 %2038
      %2040 = vmatprep.subr.mxu0 0.0
      %2041 = vmatpush1.msra.mxu0 0.0
      %2042 = vmatprep.subr.mxu0 0.0
      %2043 = vmatpush1.msra.mxu0 0.0
      %2044 = vmatprep.subr.mxu0 0.0
      %2045 = vmatpush1.msra.mxu0 0.0
      %2046 = vmatprep.subr.mxu0 0.0
      %2047 = vmatpush1.msra.mxu0 0.0
      %2048 = vmatprep.subr.mxu0 0.0
      %2049 = vmatpush1.msra.mxu0 0.0
      %2050 = vmatprep.subr.mxu0 0.0
      %2051 = vmatpush1.msra.mxu0 0.0
      %2052 = vmatprep.subr.mxu0 0.0
      %2053 = vmatpush1.msra.mxu0 0.0
      %2054 = vmatprep.subr.mxu0 0.0
      %2055 = vmatpush1.msra.mxu0 0.0
      %2056 = vmatprep.subr.mxu0 0.0
      %2057 = vmatpush1.msra.mxu0 0.0
      %2058 = vmatprep.subr.mxu0 0.0
      %2059 = vmatpush1.msra.mxu0 0.0
      %2060 = vmatprep.subr.mxu0 0.0
      %2061 = vmatpush1.msra.mxu0 0.0
      %2062 = vmatprep.subr.mxu0 0.0
      %2063 = vmatpush1.msra.mxu0 0.0
      %2064 = vmatprep.subr.mxu0 0.0
      %2065 = vmatpush1.msra.mxu0 %v2039
      %2066 = vmatprep.subr.mxu0 0.0
      %2067 = vmatpush1.msra.mxu0 %v2036
      %2068 = vmatprep.subr.mxu0 0.0
      %2069 = vmatpush1.msra.mxu0 %v2033
      %2070 = vmatprep.subr.mxu0 0.0
      %2071 = vmatpush1.msra.mxu0 %v2030
      %2072 = vmatprep.subr.mxu0 0.0
      %2073 = vmatpush2.msra.mxu0 0.0
      %2074 = vmatprep.subr.mxu0 0.0
      %2075 = vmatpush2.msra.mxu0 0.0
      %2076 = vmatprep.subr.mxu0 0.0
      %2077 = vmatpush2.msra.mxu0 0.0
      %2078 = vmatprep.subr.mxu0 0.0
      %2079 = vmatpush2.msra.mxu0 0.0
      %2080 = vmatprep.subr.mxu0 0.0
      %2081 = vmatpush2.msra.mxu0 0.0
      %2082 = vmatprep.subr.mxu0 0.0
      %2083 = vmatpush2.msra.mxu0 0.0
      %2084 = vmatprep.subr.mxu0 0.0
      %2085 = vmatpush2.msra.mxu0 0.0
      %2086 = vmatprep.subr.mxu0 0.0
      %2087 = vmatpush2.msra.mxu0 0.0
      %2088 = vmatprep.subr.mxu0 0.0
      %2089 = vmatpush2.msra.mxu0 0.0
      %2090 = vmatprep.subr.mxu0 0.0
      %2091 = vmatpush2.msra.mxu0 0.0
      %2092 = vmatprep.subr.mxu0 0.0
      %2093 = vmatpush2.msra.mxu0 0.0
      %2094 = vmatprep.subr.mxu0 0.0
      %2095 = vmatpush2.msra.mxu0 0.0
      %2096 = vmatprep.subr.mxu0 0.0
      %2097 = vmatpush2.msra.mxu0 0.0
      %2098 = vmatprep.subr.mxu0 0.0
      %2099 = vmatpush2.msra.mxu0 0.0
      %2100 = vmatprep.subr.mxu0 0.0
      %2101 = vmatpush2.msra.mxu0 0.0
      %2102 = vmatprep.subr.mxu0 0.0
      %2103 = vmatpush2.msra.mxu0 0.0
      %2104 = vmatprep.mubr.f32.mxu0 0.0
      %2105 = vmatmul.mubr.f32.gmra.mxu0 %v1892
      %v2106 = vpop.f32.mrf.mxu0
      %v2107 = vadd.f32 0.0, %v2106
      %v2108 = vpop.f32.mrf.mxu0
      %2109 = vmatprep.mubr.f32.mxu0 0.0
      %2110 = vmatmul.mubr.f32.gmra.mxu0 %v1895
      %v2111 = vpop.f32.mrf.mxu0
      %v2112 = vadd.f32 0.0, %v2111
      %v2113 = vpop.f32.mrf.mxu0
      %2114 = vmatprep.mubr.f32.mxu0 0.0
      %2115 = vmatmul.mubr.f32.gmra.mxu0 %v1898
      %v2116 = vpop.f32.mrf.mxu0
      %v2117 = vadd.f32 0.0, %v2116
      %v2118 = vpop.f32.mrf.mxu0
      %2119 = vmatprep.mubr.f32.mxu0 0.0
      %2120 = vmatmul.mubr.f32.gmra.mxu0 %v1901
      %v2121 = vpop.f32.mrf.mxu0
      %v2122 = vadd.f32 0.0, %v2121
      %v2123 = vpop.f32.mrf.mxu0
      %2124 = vdwg.mxu0
      %v2125 = vmul.f32 %v2107, 0.0009765625
      %v2126 = vmul.f32 %v2112, 0.0009765625
      %v2127 = vmul.f32 %v2117, 0.0009765625
      %v2128 = vmul.f32 %v2122, 0.0009765625
      %v2129 = vadd.f32 %v2125, 1e-05
      %v2130 = vadd.f32 %v2126, 1e-05
      %v2131 = vadd.f32 %v2127, 1e-05
      %v2132 = vadd.f32 %v2128, 1e-05
      %v2133 = vrsqrt.pop %v2129
      %v2134 = vrsqrt.pop %v2130
      %v2135 = vrsqrt.pop %v2131
      %v2136 = vrsqrt.pop %v2132
      %2138 = vset.pattern.permute.xlu0 0
      %2139 = vperm.xlu0 %2138, %v2133
      %v2140 = vpop.permute.xlu0 %2139
      %2143 = vset.pattern.permute.xlu0 0
      %2144 = vperm.xlu0 %2143, %v2134
      %v2145 = vpop.permute.xlu0 %2144
      %2148 = vset.pattern.permute.xlu0 0
      %2149 = vperm.xlu0 %2148, %v2135
      %v2150 = vpop.permute.xlu0 %2149
      %2153 = vset.pattern.permute.xlu0 0
      %2154 = vperm.xlu0 %2153, %v2136
      %v2155 = vpop.permute.xlu0 %2154
      %v2157 = vmul.f32 %v2012, %v2140
      %v2158 = vmul.f32 %v2013, %v2140
      %v2159 = vmul.f32 %v2014, %v2145
      %v2160 = vmul.f32 %v2015, %v2145
      %v2161 = vmul.f32 %v2016, %v2150
      %v2162 = vmul.f32 %v2017, %v2150
      %v2163 = vmul.f32 %v2018, %v2155
      %v2164 = vmul.f32 %v2019, %v2155
      %2166 = vset.pattern.permute.xlu0 0
      %2167 = vperm.xlu0 %2166, %v1871
      %v2168 = vpop.permute.xlu0 %2167
      %2171 = vset.pattern.permute.xlu0 0
      %2172 = vperm.xlu0 %2171, %v1872
      %v2173 = vpop.permute.xlu0 %2172
      %2176 = vset.pattern.permute.xlu0 0
      %2177 = vperm.xlu0 %2176, %v1873
      %v2178 = vpop.permute.xlu0 %2177
      %2181 = vset.pattern.permute.xlu0 0
      %2182 = vperm.xlu0 %2181, %v1874
      %v2183 = vpop.permute.xlu0 %2182
      %v2185 = vmul.f32 %v2157, %v2168
      %v2186 = vmul.f32 %v2158, %v2168
      %v2187 = vmul.f32 %v2159, %v2173
      %v2188 = vmul.f32 %v2160, %v2173
      %v2189 = vmul.f32 %v2161, %v2178
      %v2190 = vmul.f32 %v2162, %v2178
      %v2191 = vmul.f32 %v2163, %v2183
      %v2192 = vmul.f32 %v2164, %v2183
      %2194 = vset.pattern.permute.xlu0 0
      %2195 = vperm.xlu0 %2194, %v1875
      %v2196 = vpop.permute.xlu0 %2195
      %2199 = vset.pattern.permute.xlu0 0
      %2200 = vperm.xlu0 %2199, %v1876
      %v2201 = vpop.permute.xlu0 %2200
      %2204 = vset.pattern.permute.xlu0 0
      %2205 = vperm.xlu0 %2204, %v1877
      %v2206 = vpop.permute.xlu0 %2205
      %2209 = vset.pattern.permute.xlu0 0
      %2210 = vperm.xlu0 %2209, %v1878
      %v2211 = vpop.permute.xlu0 %2210
      %v2213 = vadd.f32 %v2185, %v2196
      %v2214 = vadd.f32 %v2186, %v2196
      %v2215 = vadd.f32 %v2187, %v2201
      %v2216 = vadd.f32 %v2188, %v2201
      %v2217 = vadd.f32 %v2189, %v2206
      %v2218 = vadd.f32 %v2190, %v2206
      %v2219 = vadd.f32 %v2191, %v2211
      %v2220 = vadd.f32 %v2192, %v2211
      %v2221 = vmul.f32 %v2213, 0.5
      %v2222 = vmul.f32 %v2214, 0.5
      %v2223 = vmul.f32 %v2215, 0.5
      %v2224 = vmul.f32 %v2216, 0.5
      %v2225 = vmul.f32 %v2217, 0.5
      %v2226 = vmul.f32 %v2218, 0.5
      %v2227 = vmul.f32 %v2219, 0.5
      %v2228 = vmul.f32 %v2220, 0.5
      %v2229 = vtanh.pop %v2221
      %v2230 = vtanh.pop %v2222
      %v2231 = vtanh.pop %v2223
      %v2232 = vtanh.pop %v2224
      %v2233 = vtanh.pop %v2225
      %v2234 = vtanh.pop %v2226
      %v2235 = vtanh.pop %v2227
      %v2236 = vtanh.pop %v2228
      %v2237 = vmul.f32 %v2229, 0.5
      %v2238 = vmul.f32 %v2230, 0.5
      %v2239 = vmul.f32 %v2231, 0.5
      %v2240 = vmul.f32 %v2232, 0.5
      %v2241 = vmul.f32 %v2233, 0.5
      %v2242 = vmul.f32 %v2234, 0.5
      %v2243 = vmul.f32 %v2235, 0.5
      %v2244 = vmul.f32 %v2236, 0.5
      %v2245 = vadd.f32 %v2237, 0.5
      %v2246 = vadd.f32 %v2238, 0.5
      %v2247 = vadd.f32 %v2239, 0.5
      %v2248 = vadd.f32 %v2240, 0.5
      %v2249 = vadd.f32 %v2241, 0.5
      %v2250 = vadd.f32 %v2242, 0.5
      %v2251 = vadd.f32 %v2243, 0.5
      %v2252 = vadd.f32 %v2244, 0.5
      %v2253 = vmul.f32 %v2213, %v2245
      %v2254 = vmul.f32 %v2214, %v2246
      %v2255 = vmul.f32 %v2215, %v2247
      %v2256 = vmul.f32 %v2216, %v2248
      %v2257 = vmul.f32 %v2217, %v2249
      %v2258 = vmul.f32 %v2218, %v2250
      %v2259 = vmul.f32 %v2219, %v2251
      %v2260 = vmul.f32 %v2220, %v2252
      %v2261 = vld [vmem:[%s12] sm:$0xff]
      %v2262 = vld [vmem:[%s12 + $0x8] sm:$0xff]
      %v2263 = vld [vmem:[%s12 + $0x10] sm:$0xff]
      %v2264 = vld [vmem:[%s12 + $0x18] sm:$0xff]
      %2265 = vrot.lane.b32.xlu0 %v2253, 17
      %v2266 = vpop.permute.xlu0 %2265
      %2267 = vrot.lane.b32.xlu0 %v2255, 17
      %v2268 = vpop.permute.xlu0 %2267
      %2269 = vrot.lane.b32.xlu0 %v2257, 17
      %v2270 = vpop.permute.xlu0 %2269
      %2271 = vrot.lane.b32.xlu0 %v2259, 17
      %v2272 = vpop.permute.xlu0 %2271
      %2273 = vrot.lane.b32.xlu0 %v2254, 17
      %v2274 = vpop.permute.xlu0 %2273
      %2275 = vrot.lane.b32.xlu0 %v2256, 17
      %v2276 = vpop.permute.xlu0 %2275
      %2277 = vrot.lane.b32.xlu0 %v2258, 17
      %v2278 = vpop.permute.xlu0 %2277
      %2279 = vrot.lane.b32.xlu0 %v2260, 17
      %v2280 = vpop.permute.xlu0 %2279
      %v2281 = vsel %vm1025, %v2266, %v2274
      %v2282 = vsel %vm1025, %v2268, %v2276
      %v2283 = vsel %vm1025, %v2270, %v2278
      %v2284 = vsel %vm1025, %v2272, %v2280
      %v2285 = vsel %vm1025, %v2274, %v2266
      %v2286 = vsel %vm1025, %v2276, %v2268
      %v2287 = vsel %vm1025, %v2278, %v2270
      %v2288 = vsel %vm1025, %v2280, %v2272
      %v2289 = vmul.f32 %v2285, %v1037
      %v2290 = vmul.f32 %v2281, %v1041
      %v2291 = vmul.f32 %v2286, %v1037
      %v2292 = vmul.f32 %v2282, %v1041
      %v2293 = vmul.f32 %v2287, %v1037
      %v2294 = vmul.f32 %v2283, %v1041
      %v2295 = vmul.f32 %v2288, %v1037
      %v2296 = vmul.f32 %v2284, %v1041
      %2297 = vst [vmem:[#allocation3] sm:$0xff] %v2289
      %2298 = vst [vmem:[#allocation3 + $0x8] sm:$0xff] %v2290
      %2299 = vst [vmem:[#allocation3 + $0x10] sm:$0xff] %v2291
      %2300 = vst [vmem:[#allocation3 + $0x18] sm:$0xff] %v2292
      %2301 = vst [vmem:[#allocation3 + $0x20] sm:$0xff] %v2293
      %2302 = vst [vmem:[#allocation3 + $0x28] sm:$0xff] %v2294
      %2303 = vst [vmem:[#allocation3 + $0x30] sm:$0xff] %v2295
      %2304 = vst [vmem:[#allocation3 + $0x38] sm:$0xff] %v2296
      %2305 = vrot.lane.b32.xlu0 %v2253, 16
      %v2306 = vpop.permute.xlu0 %2305
      %2307 = vrot.lane.b32.xlu0 %v2255, 16
      %v2308 = vpop.permute.xlu0 %2307
      %2309 = vrot.lane.b32.xlu0 %v2257, 16
      %v2310 = vpop.permute.xlu0 %2309
      %2311 = vrot.lane.b32.xlu0 %v2259, 16
      %v2312 = vpop.permute.xlu0 %2311
      %2313 = vrot.lane.b32.xlu0 %v2254, 16
      %v2314 = vpop.permute.xlu0 %2313
      %2315 = vrot.lane.b32.xlu0 %v2256, 16
      %v2316 = vpop.permute.xlu0 %2315
      %2317 = vrot.lane.b32.xlu0 %v2258, 16
      %v2318 = vpop.permute.xlu0 %2317
      %2319 = vrot.lane.b32.xlu0 %v2260, 16
      %v2320 = vpop.permute.xlu0 %2319
      %v2321 = vsel %vm1074, %v2306, %v2314
      %v2322 = vsel %vm1074, %v2308, %v2316
      %v2323 = vsel %vm1074, %v2310, %v2318
      %v2324 = vsel %vm1074, %v2312, %v2320
      %v2325 = vsel %vm1074, %v2314, %v2306
      %v2326 = vsel %vm1074, %v2316, %v2308
      %v2327 = vsel %vm1074, %v2318, %v2310
      %v2328 = vsel %vm1074, %v2320, %v2312
      %v2329 = vmul.f32 %v2325, %v1086
      %v2330 = vmul.f32 %v2321, %v1090
      %v2331 = vmul.f32 %v2326, %v1086
      %v2332 = vmul.f32 %v2322, %v1090
      %v2333 = vmul.f32 %v2327, %v1086
      %v2334 = vmul.f32 %v2323, %v1090
      %v2335 = vmul.f32 %v2328, %v1086
      %v2336 = vmul.f32 %v2324, %v1090
      %2337 = vst [vmem:[#allocation3 + $0x40] sm:$0xff] %v2329
      %2338 = vst [vmem:[#allocation3 + $0x48] sm:$0xff] %v2330
      %2339 = vst [vmem:[#allocation3 + $0x50] sm:$0xff] %v2331
      %2340 = vst [vmem:[#allocation3 + $0x58] sm:$0xff] %v2332
      %2341 = vst [vmem:[#allocation3 + $0x60] sm:$0xff] %v2333
      %2342 = vst [vmem:[#allocation3 + $0x68] sm:$0xff] %v2334
      %2343 = vst [vmem:[#allocation3 + $0x70] sm:$0xff] %v2335
      %2344 = vst [vmem:[#allocation3 + $0x78] sm:$0xff] %v2336
      %2345 = vrot.lane.b32.xlu0 %v2253, 15
      %v2346 = vpop.permute.xlu0 %2345
      %2347 = vrot.lane.b32.xlu0 %v2255, 15
      %v2348 = vpop.permute.xlu0 %2347
      %2349 = vrot.lane.b32.xlu0 %v2257, 15
      %v2350 = vpop.permute.xlu0 %2349
      %2351 = vrot.lane.b32.xlu0 %v2259, 15
      %v2352 = vpop.permute.xlu0 %2351
      %2353 = vrot.lane.b32.xlu0 %v2254, 15
      %v2354 = vpop.permute.xlu0 %2353
      %2355 = vrot.lane.b32.xlu0 %v2256, 15
      %v2356 = vpop.permute.xlu0 %2355
      %2357 = vrot.lane.b32.xlu0 %v2258, 15
      %v2358 = vpop.permute.xlu0 %2357
      %2359 = vrot.lane.b32.xlu0 %v2260, 15
      %v2360 = vpop.permute.xlu0 %2359
      %v2361 = vsel %vm1123, %v2346, %v2354
      %v2362 = vsel %vm1123, %v2348, %v2356
      %v2363 = vsel %vm1123, %v2350, %v2358
      %v2364 = vsel %vm1123, %v2352, %v2360
      %v2365 = vsel %vm1123, %v2354, %v2346
      %v2366 = vsel %vm1123, %v2356, %v2348
      %v2367 = vsel %vm1123, %v2358, %v2350
      %v2368 = vsel %vm1123, %v2360, %v2352
      %v2369 = vmul.f32 %v2365, %v1135
      %v2370 = vmul.f32 %v2361, %v1139
      %v2371 = vmul.f32 %v2366, %v1135
      %v2372 = vmul.f32 %v2362, %v1139
      %v2373 = vmul.f32 %v2367, %v1135
      %v2374 = vmul.f32 %v2363, %v1139
      %v2375 = vmul.f32 %v2368, %v1135
      %v2376 = vmul.f32 %v2364, %v1139
      %2377 = vst [vmem:[#allocation3 + $0x80] sm:$0xff] %v2369
      %2378 = vst [vmem:[#allocation3 + $0x88] sm:$0xff] %v2370
      %2379 = vst [vmem:[#allocation3 + $0x90] sm:$0xff] %v2371
      %2380 = vst [vmem:[#allocation3 + $0x98] sm:$0xff] %v2372
      %2381 = vst [vmem:[#allocation3 + $0xa0] sm:$0xff] %v2373
      %2382 = vst [vmem:[#allocation3 + $0xa8] sm:$0xff] %v2374
      %2383 = vst [vmem:[#allocation3 + $0xb0] sm:$0xff] %v2375
      %2384 = vst [vmem:[#allocation3 + $0xb8] sm:$0xff] %v2376
      %v2385 = vld [vmem:[%s11] sm:$0xff]
      %v2386 = vld [vmem:[%s11 + $0x8] sm:$0xff]
      %v2387 = vld [vmem:[%s11 + $0x10] sm:$0xff]
      %v2388 = vld [vmem:[%s11 + $0x18] sm:$0xff]
      %v2389 = vld [vmem:[#allocation3] sm:$0xff]
      %v2390 = vld [vmem:[#allocation3 + $0x8] sm:$0xff]
      %v2391 = vld [vmem:[#allocation3 + $0x10] sm:$0xff]
      %v2392 = vld [vmem:[#allocation3 + $0x18] sm:$0xff]
      %v2393 = vld [vmem:[#allocation3 + $0x20] sm:$0xff]
      %v2394 = vld [vmem:[#allocation3 + $0x28] sm:$0xff]
      %v2395 = vld [vmem:[#allocation3 + $0x30] sm:$0xff]
      %v2396 = vld [vmem:[#allocation3 + $0x38] sm:$0xff]
      %v2397 = vld [vmem:[#allocation3 + $0x40] sm:$0xff]
      %v2398 = vld [vmem:[#allocation3 + $0x48] sm:$0xff]
      %v2399 = vld [vmem:[#allocation3 + $0x50] sm:$0xff]
      %v2400 = vld [vmem:[#allocation3 + $0x58] sm:$0xff]
      %v2401 = vld [vmem:[#allocation3 + $0x60] sm:$0xff]
      %v2402 = vld [vmem:[#allocation3 + $0x68] sm:$0xff]
      %v2403 = vld [vmem:[#allocation3 + $0x70] sm:$0xff]
      %v2404 = vld [vmem:[#allocation3 + $0x78] sm:$0xff]
      %v2405 = vld [vmem:[#allocation3 + $0x80] sm:$0xff]
      %v2406 = vld [vmem:[#allocation3 + $0x88] sm:$0xff]
      %v2407 = vld [vmem:[#allocation3 + $0x90] sm:$0xff]
      %v2408 = vld [vmem:[#allocation3 + $0x98] sm:$0xff]
      %v2409 = vld [vmem:[#allocation3 + $0xa0] sm:$0xff]
      %v2410 = vld [vmem:[#allocation3 + $0xa8] sm:$0xff]
      %v2411 = vld [vmem:[#allocation3 + $0xb0] sm:$0xff]
      %v2412 = vld [vmem:[#allocation3 + $0xb8] sm:$0xff]
      %2413 = vrot.lane.b32.xlu0 %v2253, 1
      %v2414 = vpop.permute.xlu0 %2413
      %2415 = vrot.lane.b32.xlu0 %v2255, 1
      %v2416 = vpop.permute.xlu0 %2415
      %2417 = vrot.lane.b32.xlu0 %v2257, 1
      %v2418 = vpop.permute.xlu0 %2417
      %2419 = vrot.lane.b32.xlu0 %v2259, 1
      %v2420 = vpop.permute.xlu0 %2419
      %2421 = vrot.lane.b32.xlu0 %v2254, 1
      %v2422 = vpop.permute.xlu0 %2421
      %2423 = vrot.lane.b32.xlu0 %v2256, 1
      %v2424 = vpop.permute.xlu0 %2423
      %2425 = vrot.lane.b32.xlu0 %v2258, 1
      %v2426 = vpop.permute.xlu0 %2425
      %2427 = vrot.lane.b32.xlu0 %v2260, 1
      %v2428 = vpop.permute.xlu0 %2427
      %v2429 = vsel %vm1200, %v2414, %v2422
      %v2430 = vsel %vm1200, %v2416, %v2424
      %v2431 = vsel %vm1200, %v2418, %v2426
      %v2432 = vsel %vm1200, %v2420, %v2428
      %v2433 = vsel %vm1200, %v2422, %v2414
      %v2434 = vsel %vm1200, %v2424, %v2416
      %v2435 = vsel %vm1200, %v2426, %v2418
      %v2436 = vsel %vm1200, %v2428, %v2420
      %v2437 = vmul.f32 %v2433, %v1212
      %v2438 = vmul.f32 %v2429, %v1216
      %v2439 = vmul.f32 %v2434, %v1212
      %v2440 = vmul.f32 %v2430, %v1216
      %v2441 = vmul.f32 %v2435, %v1212
      %v2442 = vmul.f32 %v2431, %v1216
      %v2443 = vmul.f32 %v2436, %v1212
      %v2444 = vmul.f32 %v2432, %v1216
      %2445 = vst [vmem:[#allocation3] sm:$0xff] %v2437
      %2446 = vst [vmem:[#allocation3 + $0x8] sm:$0xff] %v2438
      %2447 = vst [vmem:[#allocation3 + $0x10] sm:$0xff] %v2439
      %2448 = vst [vmem:[#allocation3 + $0x18] sm:$0xff] %v2440
      %2449 = vst [vmem:[#allocation3 + $0x20] sm:$0xff] %v2441
      %2450 = vst [vmem:[#allocation3 + $0x28] sm:$0xff] %v2442
      %2451 = vst [vmem:[#allocation3 + $0x30] sm:$0xff] %v2443
      %2452 = vst [vmem:[#allocation3 + $0x38] sm:$0xff] %v2444
      %2453 = vst [vmem:[#allocation3 + $0x40] sm:$0xff] %v2253
      %2454 = vst [vmem:[#allocation3 + $0x48] sm:$0xff] %v2254
      %2455 = vst [vmem:[#allocation3 + $0x50] sm:$0xff] %v2255
      %2456 = vst [vmem:[#allocation3 + $0x58] sm:$0xff] %v2256
      %2457 = vst [vmem:[#allocation3 + $0x60] sm:$0xff] %v2257
      %2458 = vst [vmem:[#allocation3 + $0x68] sm:$0xff] %v2258
      %2459 = vst [vmem:[#allocation3 + $0x70] sm:$0xff] %v2259
      %2460 = vst [vmem:[#allocation3 + $0x78] sm:$0xff] %v2260
      %2461 = vrot.lane.b32.xlu0 %v2253, 127
      %v2462 = vpop.permute.xlu0 %2461
      %2463 = vrot.lane.b32.xlu0 %v2255, 127
      %v2464 = vpop.permute.xlu0 %2463
      %2465 = vrot.lane.b32.xlu0 %v2257, 127
      %v2466 = vpop.permute.xlu0 %2465
      %2467 = vrot.lane.b32.xlu0 %v2259, 127
      %v2468 = vpop.permute.xlu0 %2467
      %2469 = vrot.lane.b32.xlu0 %v2254, 127
      %v2470 = vpop.permute.xlu0 %2469
      %2471 = vrot.lane.b32.xlu0 %v2256, 127
      %v2472 = vpop.permute.xlu0 %2471
      %2473 = vrot.lane.b32.xlu0 %v2258, 127
      %v2474 = vpop.permute.xlu0 %2473
      %2475 = vrot.lane.b32.xlu0 %v2260, 127
      %v2476 = vpop.permute.xlu0 %2475
      %v2477 = vsel %vm1257, %v2462, %v2470
      %v2478 = vsel %vm1257, %v2464, %v2472
      %v2479 = vsel %vm1257, %v2466, %v2474
      %v2480 = vsel %vm1257, %v2468, %v2476
      %v2481 = vsel %vm1257, %v2470, %v2462
      %v2482 = vsel %vm1257, %v2472, %v2464
      %v2483 = vsel %vm1257, %v2474, %v2466
      %v2484 = vsel %vm1257, %v2476, %v2468
      %v2485 = vmul.f32 %v2477, %v1269
      %v2486 = vmul.f32 %v2481, %v1273
      %v2487 = vmul.f32 %v2478, %v1269
      %v2488 = vmul.f32 %v2482, %v1273
      %v2489 = vmul.f32 %v2479, %v1269
      %v2490 = vmul.f32 %v2483, %v1273
      %v2491 = vmul.f32 %v2480, %v1269
      %v2492 = vmul.f32 %v2484, %v1273
      %2493 = vst [vmem:[#allocation3 + $0x80] sm:$0xff] %v2485
      %2494 = vst [vmem:[#allocation3 + $0x88] sm:$0xff] %v2486
      %2495 = vst [vmem:[#allocation3 + $0x90] sm:$0xff] %v2487
      %2496 = vst [vmem:[#allocation3 + $0x98] sm:$0xff] %v2488
      %2497 = vst [vmem:[#allocation3 + $0xa0] sm:$0xff] %v2489
      %2498 = vst [vmem:[#allocation3 + $0xa8] sm:$0xff] %v2490
      %2499 = vst [vmem:[#allocation3 + $0xb0] sm:$0xff] %v2491
      %2500 = vst [vmem:[#allocation3 + $0xb8] sm:$0xff] %v2492
      %s2501 = scalar_lea.vmem %s11, 32
      %v2502 = vld [vmem:[%s2501] sm:$0xff]
      %v2503 = vld [vmem:[%s2501 + $0x8] sm:$0xff]
      %v2504 = vld [vmem:[%s2501 + $0x10] sm:$0xff]
      %v2505 = vld [vmem:[%s2501 + $0x18] sm:$0xff]
      %v2506 = vld [vmem:[#allocation3] sm:$0xff]
      %v2507 = vld [vmem:[#allocation3 + $0x8] sm:$0xff]
      %v2508 = vld [vmem:[#allocation3 + $0x10] sm:$0xff]
      %v2509 = vld [vmem:[#allocation3 + $0x18] sm:$0xff]
      %v2510 = vld [vmem:[#allocation3 + $0x20] sm:$0xff]
      %v2511 = vld [vmem:[#allocation3 + $0x28] sm:$0xff]
      %v2512 = vld [vmem:[#allocation3 + $0x30] sm:$0xff]
      %v2513 = vld [vmem:[#allocation3 + $0x38] sm:$0xff]
      %v2514 = vld [vmem:[#allocation3 + $0x40] sm:$0xff]
      %v2515 = vld [vmem:[#allocation3 + $0x48] sm:$0xff]
      %v2516 = vld [vmem:[#allocation3 + $0x50] sm:$0xff]
      %v2517 = vld [vmem:[#allocation3 + $0x58] sm:$0xff]
      %v2518 = vld [vmem:[#allocation3 + $0x60] sm:$0xff]
      %v2519 = vld [vmem:[#allocation3 + $0x68] sm:$0xff]
      %v2520 = vld [vmem:[#allocation3 + $0x70] sm:$0xff]
      %v2521 = vld [vmem:[#allocation3 + $0x78] sm:$0xff]
      %v2522 = vld [vmem:[#allocation3 + $0x80] sm:$0xff]
      %v2523 = vld [vmem:[#allocation3 + $0x88] sm:$0xff]
      %v2524 = vld [vmem:[#allocation3 + $0x90] sm:$0xff]
      %v2525 = vld [vmem:[#allocation3 + $0x98] sm:$0xff]
      %v2526 = vld [vmem:[#allocation3 + $0xa0] sm:$0xff]
      %v2527 = vld [vmem:[#allocation3 + $0xa8] sm:$0xff]
      %v2528 = vld [vmem:[#allocation3 + $0xb0] sm:$0xff]
      %v2529 = vld [vmem:[#allocation3 + $0xb8] sm:$0xff]
      %v2531 = vsel %vm1319, %v2502, 0
      %v2534 = vsel %vm1319, %v2503, 0
      %v2537 = vsel %vm1319, %v2504, 0
      %v2540 = vsel %vm1319, %v2505, 0
      %2542 = vmatprep.subr.mxu0 0.0
      %2543 = vmatpush1.msra.mxu0 0.0
      %2544 = vmatprep.subr.mxu0 0.0
      %2545 = vmatpush1.msra.mxu0 0.0
      %2546 = vmatprep.subr.mxu0 0.0
      %2547 = vmatpush1.msra.mxu0 0.0
      %2548 = vmatprep.subr.mxu0 0.0
      %2549 = vmatpush1.msra.mxu0 0.0
      %2550 = vmatprep.subr.mxu0 %v2529
      %2551 = vmatpush1.msra.mxu0 %v2528
      %2552 = vmatprep.subr.mxu0 %v2527
      %2553 = vmatpush1.msra.mxu0 %v2526
      %2554 = vmatprep.subr.mxu0 %v2525
      %2555 = vmatpush1.msra.mxu0 %v2524
      %2556 = vmatprep.subr.mxu0 %v2523
      %2557 = vmatpush1.msra.mxu0 %v2522
      %2558 = vmatprep.subr.mxu0 %v2521
      %2559 = vmatpush1.msra.mxu0 %v2520
      %2560 = vmatprep.subr.mxu0 %v2519
      %2561 = vmatpush1.msra.mxu0 %v2518
      %2562 = vmatprep.subr.mxu0 %v2517
      %2563 = vmatpush1.msra.mxu0 %v2516
      %2564 = vmatprep.subr.mxu0 %v2515
      %2565 = vmatpush1.msra.mxu0 %v2514
      %2566 = vmatprep.subr.mxu0 %v2513
      %2567 = vmatpush1.msra.mxu0 %v2512
      %2568 = vmatprep.subr.mxu0 %v2511
      %2569 = vmatpush1.msra.mxu0 %v2510
      %2570 = vmatprep.subr.mxu0 %v2509
      %2571 = vmatpush1.msra.mxu0 %v2508
      %2572 = vmatprep.subr.mxu0 %v2507
      %2573 = vmatpush1.msra.mxu0 %v2506
      %2574 = vmatprep.subr.mxu0 0.0
      %2575 = vmatpush2.msra.mxu0 0.0
      %2576 = vmatprep.subr.mxu0 0.0
      %2577 = vmatpush2.msra.mxu0 0.0
      %2578 = vmatprep.subr.mxu0 0.0
      %2579 = vmatpush2.msra.mxu0 0.0
      %2580 = vmatprep.subr.mxu0 0.0
      %2581 = vmatpush2.msra.mxu0 0.0
      %2582 = vmatprep.subr.mxu0 0.0
      %2583 = vmatpush2.msra.mxu0 0.0
      %2584 = vmatprep.subr.mxu0 0.0
      %2585 = vmatpush2.msra.mxu0 0.0
      %2586 = vmatprep.subr.mxu0 0.0
      %2587 = vmatpush2.msra.mxu0 0.0
      %2588 = vmatprep.subr.mxu0 0.0
      %2589 = vmatpush2.msra.mxu0 0.0
      %2590 = vmatprep.subr.mxu0 0.0
      %2591 = vmatpush2.msra.mxu0 0.0
      %2592 = vmatprep.subr.mxu0 0.0
      %2593 = vmatpush2.msra.mxu0 0.0
      %2594 = vmatprep.subr.mxu0 0.0
      %2595 = vmatpush2.msra.mxu0 0.0
      %2596 = vmatprep.subr.mxu0 0.0
      %2597 = vmatpush2.msra.mxu0 0.0
      %2598 = vmatprep.subr.mxu0 0.0
      %2599 = vmatpush2.msra.mxu0 0.0
      %2600 = vmatprep.subr.mxu0 0.0
      %2601 = vmatpush2.msra.mxu0 0.0
      %2602 = vmatprep.subr.mxu0 0.0
      %2603 = vmatpush2.msra.mxu0 0.0
      %2604 = vmatprep.subr.mxu0 0.0
      %2605 = vmatpush2.msra.mxu0 0.0
      %2606 = vmatprep.mubr.f32.mxu0 0.0
      %2607 = vmatmul.mubr.f32.gmra.mxu0 %v2531
      %v2608 = vpop.f32.mrf.mxu0
      %v2609 = vadd.f32 0.0, %v2608
      %v2610 = vpop.f32.mrf.mxu0
      %v2611 = vadd.f32 0.0, %v2610
      %2612 = vmatprep.mubr.f32.mxu0 0.0
      %2613 = vmatmul.mubr.f32.gmra.mxu0 %v2534
      %v2614 = vpop.f32.mrf.mxu0
      %v2615 = vadd.f32 0.0, %v2614
      %v2616 = vpop.f32.mrf.mxu0
      %v2617 = vadd.f32 0.0, %v2616
      %2618 = vmatprep.mubr.f32.mxu0 0.0
      %2619 = vmatmul.mubr.f32.gmra.mxu0 %v2537
      %v2620 = vpop.f32.mrf.mxu0
      %v2621 = vadd.f32 0.0, %v2620
      %v2622 = vpop.f32.mrf.mxu0
      %v2623 = vadd.f32 0.0, %v2622
      %2624 = vmatprep.mubr.f32.mxu0 0.0
      %2625 = vmatmul.mubr.f32.gmra.mxu0 %v2540
      %v2626 = vpop.f32.mrf.mxu0
      %v2627 = vadd.f32 0.0, %v2626
      %v2628 = vpop.f32.mrf.mxu0
      %v2629 = vadd.f32 0.0, %v2628
      %2630 = vdwg.mxu0
      %v2632 = vsel %vm1319, %v2385, 0
      %v2635 = vsel %vm1319, %v2386, 0
      %v2638 = vsel %vm1319, %v2387, 0
      %v2641 = vsel %vm1319, %v2388, 0
      %2643 = vmatprep.subr.mxu0 0.0
      %2644 = vmatpush1.msra.mxu0 0.0
      %2645 = vmatprep.subr.mxu0 0.0
      %2646 = vmatpush1.msra.mxu0 0.0
      %2647 = vmatprep.subr.mxu0 0.0
      %2648 = vmatpush1.msra.mxu0 0.0
      %2649 = vmatprep.subr.mxu0 0.0
      %2650 = vmatpush1.msra.mxu0 0.0
      %2651 = vmatprep.subr.mxu0 %v2412
      %2652 = vmatpush1.msra.mxu0 %v2411
      %2653 = vmatprep.subr.mxu0 %v2410
      %2654 = vmatpush1.msra.mxu0 %v2409
      %2655 = vmatprep.subr.mxu0 %v2408
      %2656 = vmatpush1.msra.mxu0 %v2407
      %2657 = vmatprep.subr.mxu0 %v2406
      %2658 = vmatpush1.msra.mxu0 %v2405
      %2659 = vmatprep.subr.mxu0 %v2404
      %2660 = vmatpush1.msra.mxu0 %v2403
      %2661 = vmatprep.subr.mxu0 %v2402
      %2662 = vmatpush1.msra.mxu0 %v2401
      %2663 = vmatprep.subr.mxu0 %v2400
      %2664 = vmatpush1.msra.mxu0 %v2399
      %2665 = vmatprep.subr.mxu0 %v2398
      %2666 = vmatpush1.msra.mxu0 %v2397
      %2667 = vmatprep.subr.mxu0 %v2396
      %2668 = vmatpush1.msra.mxu0 %v2395
      %2669 = vmatprep.subr.mxu0 %v2394
      %2670 = vmatpush1.msra.mxu0 %v2393
      %2671 = vmatprep.subr.mxu0 %v2392
      %2672 = vmatpush1.msra.mxu0 %v2391
      %2673 = vmatprep.subr.mxu0 %v2390
      %2674 = vmatpush1.msra.mxu0 %v2389
      %2675 = vmatprep.subr.mxu0 0.0
      %2676 = vmatpush2.msra.mxu0 0.0
      %2677 = vmatprep.subr.mxu0 0.0
      %2678 = vmatpush2.msra.mxu0 0.0
      %2679 = vmatprep.subr.mxu0 0.0
      %2680 = vmatpush2.msra.mxu0 0.0
      %2681 = vmatprep.subr.mxu0 0.0
      %2682 = vmatpush2.msra.mxu0 0.0
      %2683 = vmatprep.subr.mxu0 0.0
      %2684 = vmatpush2.msra.mxu0 0.0
      %2685 = vmatprep.subr.mxu0 0.0
      %2686 = vmatpush2.msra.mxu0 0.0
      %2687 = vmatprep.subr.mxu0 0.0
      %2688 = vmatpush2.msra.mxu0 0.0
      %2689 = vmatprep.subr.mxu0 0.0
      %2690 = vmatpush2.msra.mxu0 0.0
      %2691 = vmatprep.subr.mxu0 0.0
      %2692 = vmatpush2.msra.mxu0 0.0
      %2693 = vmatprep.subr.mxu0 0.0
      %2694 = vmatpush2.msra.mxu0 0.0
      %2695 = vmatprep.subr.mxu0 0.0
      %2696 = vmatpush2.msra.mxu0 0.0
      %2697 = vmatprep.subr.mxu0 0.0
      %2698 = vmatpush2.msra.mxu0 0.0
      %2699 = vmatprep.subr.mxu0 0.0
      %2700 = vmatpush2.msra.mxu0 0.0
      %2701 = vmatprep.subr.mxu0 0.0
      %2702 = vmatpush2.msra.mxu0 0.0
      %2703 = vmatprep.subr.mxu0 0.0
      %2704 = vmatpush2.msra.mxu0 0.0
      %2705 = vmatprep.subr.mxu0 0.0
      %2706 = vmatpush2.msra.mxu0 0.0
      %2707 = vmatprep.mubr.f32.mxu0 0.0
      %2708 = vmatmul.mubr.f32.gmra.mxu0 %v2632
      %v2709 = vpop.f32.mrf.mxu0
      %v2710 = vadd.f32 %v2609, %v2709
      %v2711 = vpop.f32.mrf.mxu0
      %v2712 = vadd.f32 %v2611, %v2711
      %2713 = vmatprep.mubr.f32.mxu0 0.0
      %2714 = vmatmul.mubr.f32.gmra.mxu0 %v2635
      %v2715 = vpop.f32.mrf.mxu0
      %v2716 = vadd.f32 %v2615, %v2715
      %v2717 = vpop.f32.mrf.mxu0
      %v2718 = vadd.f32 %v2617, %v2717
      %2719 = vmatprep.mubr.f32.mxu0 0.0
      %2720 = vmatmul.mubr.f32.gmra.mxu0 %v2638
      %v2721 = vpop.f32.mrf.mxu0
      %v2722 = vadd.f32 %v2621, %v2721
      %v2723 = vpop.f32.mrf.mxu0
      %v2724 = vadd.f32 %v2623, %v2723
      %2725 = vmatprep.mubr.f32.mxu0 0.0
      %2726 = vmatmul.mubr.f32.gmra.mxu0 %v2641
      %v2727 = vpop.f32.mrf.mxu0
      %v2728 = vadd.f32 %v2627, %v2727
      %v2729 = vpop.f32.mrf.mxu0
      %v2730 = vadd.f32 %v2629, %v2729
      %2731 = vdwg.mxu0
      %2732 = vrot.lane.b32.xlu0 %v2253, 113
      %v2733 = vpop.permute.xlu0 %2732
      %2734 = vrot.lane.b32.xlu0 %v2255, 113
      %v2735 = vpop.permute.xlu0 %2734
      %2736 = vrot.lane.b32.xlu0 %v2257, 113
      %v2737 = vpop.permute.xlu0 %2736
      %2738 = vrot.lane.b32.xlu0 %v2259, 113
      %v2739 = vpop.permute.xlu0 %2738
      %2740 = vrot.lane.b32.xlu0 %v2254, 113
      %v2741 = vpop.permute.xlu0 %2740
      %2742 = vrot.lane.b32.xlu0 %v2256, 113
      %v2743 = vpop.permute.xlu0 %2742
      %2744 = vrot.lane.b32.xlu0 %v2258, 113
      %v2745 = vpop.permute.xlu0 %2744
      %2746 = vrot.lane.b32.xlu0 %v2260, 113
      %v2747 = vpop.permute.xlu0 %2746
      %v2748 = vsel %vm1538, %v2733, %v2741
      %v2749 = vsel %vm1538, %v2735, %v2743
      %v2750 = vsel %vm1538, %v2737, %v2745
      %v2751 = vsel %vm1538, %v2739, %v2747
      %v2752 = vsel %vm1538, %v2741, %v2733
      %v2753 = vsel %vm1538, %v2743, %v2735
      %v2754 = vsel %vm1538, %v2745, %v2737
      %v2755 = vsel %vm1538, %v2747, %v2739
      %v2756 = vmul.f32 %v2748, %v1550
      %v2757 = vmul.f32 %v2752, %v1554
      %v2758 = vmul.f32 %v2749, %v1550
      %v2759 = vmul.f32 %v2753, %v1554
      %v2760 = vmul.f32 %v2750, %v1550
      %v2761 = vmul.f32 %v2754, %v1554
      %v2762 = vmul.f32 %v2751, %v1550
      %v2763 = vmul.f32 %v2755, %v1554
      %2764 = vst [vmem:[#allocation3] sm:$0xff] %v2756
      %2765 = vst [vmem:[#allocation3 + $0x8] sm:$0xff] %v2757
      %2766 = vst [vmem:[#allocation3 + $0x10] sm:$0xff] %v2758
      %2767 = vst [vmem:[#allocation3 + $0x18] sm:$0xff] %v2759
      %2768 = vst [vmem:[#allocation3 + $0x20] sm:$0xff] %v2760
      %2769 = vst [vmem:[#allocation3 + $0x28] sm:$0xff] %v2761
      %2770 = vst [vmem:[#allocation3 + $0x30] sm:$0xff] %v2762
      %2771 = vst [vmem:[#allocation3 + $0x38] sm:$0xff] %v2763
      %2772 = vrot.lane.b32.xlu0 %v2253, 112
      %v2773 = vpop.permute.xlu0 %2772
      %2774 = vrot.lane.b32.xlu0 %v2255, 112
      %v2775 = vpop.permute.xlu0 %2774
      %2776 = vrot.lane.b32.xlu0 %v2257, 112
      %v2777 = vpop.permute.xlu0 %2776
      %2778 = vrot.lane.b32.xlu0 %v2259, 112
      %v2779 = vpop.permute.xlu0 %2778
      %2780 = vrot.lane.b32.xlu0 %v2254, 112
      %v2781 = vpop.permute.xlu0 %2780
      %2782 = vrot.lane.b32.xlu0 %v2256, 112
      %v2783 = vpop.permute.xlu0 %2782
      %2784 = vrot.lane.b32.xlu0 %v2258, 112
      %v2785 = vpop.permute.xlu0 %2784
      %2786 = vrot.lane.b32.xlu0 %v2260, 112
      %v2787 = vpop.permute.xlu0 %2786
      %v2788 = vsel %vm1587, %v2773, %v2781
      %v2789 = vsel %vm1587, %v2775, %v2783
      %v2790 = vsel %vm1587, %v2777, %v2785
      %v2791 = vsel %vm1587, %v2779, %v2787
      %v2792 = vsel %vm1587, %v2781, %v2773
      %v2793 = vsel %vm1587, %v2783, %v2775
      %v2794 = vsel %vm1587, %v2785, %v2777
      %v2795 = vsel %vm1587, %v2787, %v2779
      %v2796 = vmul.f32 %v2788, %v1599
      %v2797 = vmul.f32 %v2792, %v1603
      %v2798 = vmul.f32 %v2789, %v1599
      %v2799 = vmul.f32 %v2793, %v1603
      %v2800 = vmul.f32 %v2790, %v1599
      %v2801 = vmul.f32 %v2794, %v1603
      %v2802 = vmul.f32 %v2791, %v1599
      %v2803 = vmul.f32 %v2795, %v1603
      %2804 = vst [vmem:[#allocation3 + $0x40] sm:$0xff] %v2796
      %2805 = vst [vmem:[#allocation3 + $0x48] sm:$0xff] %v2797
      %2806 = vst [vmem:[#allocation3 + $0x50] sm:$0xff] %v2798
      %2807 = vst [vmem:[#allocation3 + $0x58] sm:$0xff] %v2799
      %2808 = vst [vmem:[#allocation3 + $0x60] sm:$0xff] %v2800
      %2809 = vst [vmem:[#allocation3 + $0x68] sm:$0xff] %v2801
      %2810 = vst [vmem:[#allocation3 + $0x70] sm:$0xff] %v2802
      %2811 = vst [vmem:[#allocation3 + $0x78] sm:$0xff] %v2803
      %2812 = vrot.lane.b32.xlu0 %v2253, 111
      %v2813 = vpop.permute.xlu0 %2812
      %2814 = vrot.lane.b32.xlu0 %v2255, 111
      %v2815 = vpop.permute.xlu0 %2814
      %2816 = vrot.lane.b32.xlu0 %v2257, 111
      %v2817 = vpop.permute.xlu0 %2816
      %2818 = vrot.lane.b32.xlu0 %v2259, 111
      %v2819 = vpop.permute.xlu0 %2818
      %2820 = vrot.lane.b32.xlu0 %v2254, 111
      %v2821 = vpop.permute.xlu0 %2820
      %2822 = vrot.lane.b32.xlu0 %v2256, 111
      %v2823 = vpop.permute.xlu0 %2822
      %2824 = vrot.lane.b32.xlu0 %v2258, 111
      %v2825 = vpop.permute.xlu0 %2824
      %2826 = vrot.lane.b32.xlu0 %v2260, 111
      %v2827 = vpop.permute.xlu0 %2826
      %v2828 = vsel %vm1636, %v2813, %v2821
      %v2829 = vsel %vm1636, %v2815, %v2823
      %v2830 = vsel %vm1636, %v2817, %v2825
      %v2831 = vsel %vm1636, %v2819, %v2827
      %v2832 = vsel %vm1636, %v2821, %v2813
      %v2833 = vsel %vm1636, %v2823, %v2815
      %v2834 = vsel %vm1636, %v2825, %v2817
      %v2835 = vsel %vm1636, %v2827, %v2819
      %v2836 = vmul.f32 %v2828, %v1648
      %v2837 = vmul.f32 %v2832, %v1652
      %v2838 = vmul.f32 %v2829, %v1648
      %v2839 = vmul.f32 %v2833, %v1652
      %v2840 = vmul.f32 %v2830, %v1648
      %v2841 = vmul.f32 %v2834, %v1652
      %v2842 = vmul.f32 %v2831, %v1648
      %v2843 = vmul.f32 %v2835, %v1652
      %2844 = vst [vmem:[#allocation3 + $0x80] sm:$0xff] %v2836
      %2845 = vst [vmem:[#allocation3 + $0x88] sm:$0xff] %v2837
      %2846 = vst [vmem:[#allocation3 + $0x90] sm:$0xff] %v2838
      %2847 = vst [vmem:[#allocation3 + $0x98] sm:$0xff] %v2839
      %2848 = vst [vmem:[#allocation3 + $0xa0] sm:$0xff] %v2840
      %2849 = vst [vmem:[#allocation3 + $0xa8] sm:$0xff] %v2841
      %2850 = vst [vmem:[#allocation3 + $0xb0] sm:$0xff] %v2842
      %2851 = vst [vmem:[#allocation3 + $0xb8] sm:$0xff] %v2843
      %s2852 = scalar_lea.vmem %s11, 64
      %v2853 = vld [vmem:[%s2852] sm:$0xff]
      %v2854 = vld [vmem:[%s2852 + $0x8] sm:$0xff]
      %v2855 = vld [vmem:[%s2852 + $0x10] sm:$0xff]
      %v2856 = vld [vmem:[%s2852 + $0x18] sm:$0xff]
      %v2857 = vld [vmem:[#allocation3] sm:$0xff]
      %v2858 = vld [vmem:[#allocation3 + $0x8] sm:$0xff]
      %v2859 = vld [vmem:[#allocation3 + $0x10] sm:$0xff]
      %v2860 = vld [vmem:[#allocation3 + $0x18] sm:$0xff]
      %v2861 = vld [vmem:[#allocation3 + $0x20] sm:$0xff]
      %v2862 = vld [vmem:[#allocation3 + $0x28] sm:$0xff]
      %v2863 = vld [vmem:[#allocation3 + $0x30] sm:$0xff]
      %v2864 = vld [vmem:[#allocation3 + $0x38] sm:$0xff]
      %v2865 = vld [vmem:[#allocation3 + $0x40] sm:$0xff]
      %v2866 = vld [vmem:[#allocation3 + $0x48] sm:$0xff]
      %v2867 = vld [vmem:[#allocation3 + $0x50] sm:$0xff]
      %v2868 = vld [vmem:[#allocation3 + $0x58] sm:$0xff]
      %v2869 = vld [vmem:[#allocation3 + $0x60] sm:$0xff]
      %v2870 = vld [vmem:[#allocation3 + $0x68] sm:$0xff]
      %v2871 = vld [vmem:[#allocation3 + $0x70] sm:$0xff]
      %v2872 = vld [vmem:[#allocation3 + $0x78] sm:$0xff]
      %v2873 = vld [vmem:[#allocation3 + $0x80] sm:$0xff]
      %v2874 = vld [vmem:[#allocation3 + $0x88] sm:$0xff]
      %v2875 = vld [vmem:[#allocation3 + $0x90] sm:$0xff]
      %v2876 = vld [vmem:[#allocation3 + $0x98] sm:$0xff]
      %v2877 = vld [vmem:[#allocation3 + $0xa0] sm:$0xff]
      %v2878 = vld [vmem:[#allocation3 + $0xa8] sm:$0xff]
      %v2879 = vld [vmem:[#allocation3 + $0xb0] sm:$0xff]
      %v2880 = vld [vmem:[#allocation3 + $0xb8] sm:$0xff]
      %v2882 = vsel %vm1319, %v2853, 0
      %v2885 = vsel %vm1319, %v2854, 0
      %v2888 = vsel %vm1319, %v2855, 0
      %v2891 = vsel %vm1319, %v2856, 0
      %2893 = vmatprep.subr.mxu0 0.0
      %2894 = vmatpush1.msra.mxu0 0.0
      %2895 = vmatprep.subr.mxu0 0.0
      %2896 = vmatpush1.msra.mxu0 0.0
      %2897 = vmatprep.subr.mxu0 0.0
      %2898 = vmatpush1.msra.mxu0 0.0
      %2899 = vmatprep.subr.mxu0 0.0
      %2900 = vmatpush1.msra.mxu0 0.0
      %2901 = vmatprep.subr.mxu0 %v2880
      %2902 = vmatpush1.msra.mxu0 %v2879
      %2903 = vmatprep.subr.mxu0 %v2878
      %2904 = vmatpush1.msra.mxu0 %v2877
      %2905 = vmatprep.subr.mxu0 %v2876
      %2906 = vmatpush1.msra.mxu0 %v2875
      %2907 = vmatprep.subr.mxu0 %v2874
      %2908 = vmatpush1.msra.mxu0 %v2873
      %2909 = vmatprep.subr.mxu0 %v2872
      %2910 = vmatpush1.msra.mxu0 %v2871
      %2911 = vmatprep.subr.mxu0 %v2870
      %2912 = vmatpush1.msra.mxu0 %v2869
      %2913 = vmatprep.subr.mxu0 %v2868
      %2914 = vmatpush1.msra.mxu0 %v2867
      %2915 = vmatprep.subr.mxu0 %v2866
      %2916 = vmatpush1.msra.mxu0 %v2865
      %2917 = vmatprep.subr.mxu0 %v2864
      %2918 = vmatpush1.msra.mxu0 %v2863
      %2919 = vmatprep.subr.mxu0 %v2862
      %2920 = vmatpush1.msra.mxu0 %v2861
      %2921 = vmatprep.subr.mxu0 %v2860
      %2922 = vmatpush1.msra.mxu0 %v2859
      %2923 = vmatprep.subr.mxu0 %v2858
      %2924 = vmatpush1.msra.mxu0 %v2857
      %2925 = vmatprep.subr.mxu0 0.0
      %2926 = vmatpush2.msra.mxu0 0.0
      %2927 = vmatprep.subr.mxu0 0.0
      %2928 = vmatpush2.msra.mxu0 0.0
      %2929 = vmatprep.subr.mxu0 0.0
      %2930 = vmatpush2.msra.mxu0 0.0
      %2931 = vmatprep.subr.mxu0 0.0
      %2932 = vmatpush2.msra.mxu0 0.0
      %2933 = vmatprep.subr.mxu0 0.0
      %2934 = vmatpush2.msra.mxu0 0.0
      %2935 = vmatprep.subr.mxu0 0.0
      %2936 = vmatpush2.msra.mxu0 0.0
      %2937 = vmatprep.subr.mxu0 0.0
      %2938 = vmatpush2.msra.mxu0 0.0
      %2939 = vmatprep.subr.mxu0 0.0
      %2940 = vmatpush2.msra.mxu0 0.0
      %2941 = vmatprep.subr.mxu0 0.0
      %2942 = vmatpush2.msra.mxu0 0.0
      %2943 = vmatprep.subr.mxu0 0.0
      %2944 = vmatpush2.msra.mxu0 0.0
      %2945 = vmatprep.subr.mxu0 0.0
      %2946 = vmatpush2.msra.mxu0 0.0
      %2947 = vmatprep.subr.mxu0 0.0
      %2948 = vmatpush2.msra.mxu0 0.0
      %2949 = vmatprep.subr.mxu0 0.0
      %2950 = vmatpush2.msra.mxu0 0.0
      %2951 = vmatprep.subr.mxu0 0.0
      %2952 = vmatpush2.msra.mxu0 0.0
      %2953 = vmatprep.subr.mxu0 0.0
      %2954 = vmatpush2.msra.mxu0 0.0
      %2955 = vmatprep.subr.mxu0 0.0
      %2956 = vmatpush2.msra.mxu0 0.0
      %2957 = vmatprep.mubr.f32.mxu0 0.0
      %2958 = vmatmul.mubr.f32.gmra.mxu0 %v2882
      %v2959 = vpop.f32.mrf.mxu0
      %v2960 = vadd.f32 0.0, %v2959
      %v2961 = vpop.f32.mrf.mxu0
      %v2962 = vadd.f32 0.0, %v2961
      %2963 = vmatprep.mubr.f32.mxu0 0.0
      %2964 = vmatmul.mubr.f32.gmra.mxu0 %v2885
      %v2965 = vpop.f32.mrf.mxu0
      %v2966 = vadd.f32 0.0, %v2965
      %v2967 = vpop.f32.mrf.mxu0
      %v2968 = vadd.f32 0.0, %v2967
      %2969 = vmatprep.mubr.f32.mxu0 0.0
      %2970 = vmatmul.mubr.f32.gmra.mxu0 %v2888
      %v2971 = vpop.f32.mrf.mxu0
      %v2972 = vadd.f32 0.0, %v2971
      %v2973 = vpop.f32.mrf.mxu0
      %v2974 = vadd.f32 0.0, %v2973
      %2975 = vmatprep.mubr.f32.mxu0 0.0
      %2976 = vmatmul.mubr.f32.gmra.mxu0 %v2891
      %v2977 = vpop.f32.mrf.mxu0
      %v2978 = vadd.f32 0.0, %v2977
      %v2979 = vpop.f32.mrf.mxu0
      %v2980 = vadd.f32 0.0, %v2979
      %2981 = vdwg.mxu0
      %v2982 = vadd.f32 %v2710, %v2960
      %v2983 = vadd.f32 %v2712, %v2962
      %v2984 = vadd.f32 %v2716, %v2966
      %v2985 = vadd.f32 %v2718, %v2968
      %v2986 = vadd.f32 %v2722, %v2972
      %v2987 = vadd.f32 %v2724, %v2974
      %v2988 = vadd.f32 %v2728, %v2978
      %v2989 = vadd.f32 %v2730, %v2980
      %2991 = vset.pattern.permute.xlu0 0
      %2992 = vperm.xlu0 %2991, %v2261
      %v2993 = vpop.permute.xlu0 %2992
      %2996 = vset.pattern.permute.xlu0 0
      %2997 = vperm.xlu0 %2996, %v2262
      %v2998 = vpop.permute.xlu0 %2997
      %3001 = vset.pattern.permute.xlu0 0
      %3002 = vperm.xlu0 %3001, %v2263
      %v3003 = vpop.permute.xlu0 %3002
      %3006 = vset.pattern.permute.xlu0 0
      %3007 = vperm.xlu0 %3006, %v2264
      %v3008 = vpop.permute.xlu0 %3007
      %v3010 = vadd.f32 %v2982, %v2993
      %v3011 = vadd.f32 %v2983, %v2993
      %v3012 = vadd.f32 %v2984, %v2998
      %v3013 = vadd.f32 %v2985, %v2998
      %v3014 = vadd.f32 %v2986, %v3003
      %v3015 = vadd.f32 %v2987, %v3003
      %v3016 = vadd.f32 %v2988, %v3008
      %v3017 = vadd.f32 %v2989, %v3008
      %v3018 = vadd.f32 %v3010, %v600
      %v3019 = vadd.f32 %v3011, %v601
      %v3020 = vadd.f32 %v3012, %v602
      %v3021 = vadd.f32 %v3013, %v603
      %v3022 = vadd.f32 %v3014, %v604
      %v3023 = vadd.f32 %v3015, %v605
      %v3024 = vadd.f32 %v3016, %v606
      %v3025 = vadd.f32 %v3017, %v607
      %v3026 = vld [vmem:[%s10] sm:$0xff]
      %v3027 = vld [vmem:[%s10 + $0x8] sm:$0xff]
      %v3028 = vld [vmem:[%s10 + $0x10] sm:$0xff]
      %v3029 = vld [vmem:[%s10 + $0x18] sm:$0xff]
      %v3030 = vld [vmem:[%s13] sm:$0xff]
      %v3031 = vld [vmem:[%s13 + $0x8] sm:$0xff]
      %v3032 = vld [vmem:[%s13 + $0x10] sm:$0xff]
      %v3033 = vld [vmem:[%s13 + $0x18] sm:$0xff]
      %v3034 = vld [vmem:[%s14] sm:$0xff]
      %v3035 = vld [vmem:[%s14 + $0x8] sm:$0xff]
      %v3036 = vld [vmem:[%s14 + $0x10] sm:$0xff]
      %v3037 = vld [vmem:[%s14 + $0x18] sm:$0xff]
      %v3038 = vadd.f32 %v3018, %v3019
      %3039 = vadd.xlane.f32.xlu0 %v3038
      %v3040 = vpop.xlane.xlu0 %3039
      %v3041 = vadd.f32 %v3020, %v3021
      %3042 = vadd.xlane.f32.xlu0 %v3041
      %v3043 = vpop.xlane.xlu0 %3042
      %v3044 = vadd.f32 %v3022, %v3023
      %3045 = vadd.xlane.f32.xlu0 %v3044
      %v3046 = vpop.xlane.xlu0 %3045
      %v3047 = vadd.f32 %v3024, %v3025
      %3048 = vadd.xlane.f32.xlu0 %v3047
      %v3049 = vpop.xlane.xlu0 %3048
      %v3051 = vsel %vm632, %v3026, 0
      %v3054 = vsel %vm632, %v3027, 0
      %v3057 = vsel %vm632, %v3028, 0
      %v3060 = vsel %vm632, %v3029, 0
      %3062 = vmatprep.subr.mxu0 0.0
      %3063 = vmatpush1.msra.mxu0 0.0
      %3064 = vmatprep.subr.mxu0 0.0
      %3065 = vmatpush1.msra.mxu0 0.0
      %3066 = vmatprep.subr.mxu0 0.0
      %3067 = vmatpush1.msra.mxu0 0.0
      %3068 = vmatprep.subr.mxu0 0.0
      %3069 = vmatpush1.msra.mxu0 0.0
      %3070 = vmatprep.subr.mxu0 0.0
      %3071 = vmatpush1.msra.mxu0 0.0
      %3072 = vmatprep.subr.mxu0 0.0
      %3073 = vmatpush1.msra.mxu0 0.0
      %3074 = vmatprep.subr.mxu0 0.0
      %3075 = vmatpush1.msra.mxu0 0.0
      %3076 = vmatprep.subr.mxu0 0.0
      %3077 = vmatpush1.msra.mxu0 0.0
      %3078 = vmatprep.subr.mxu0 0.0
      %3079 = vmatpush1.msra.mxu0 0.0
      %3080 = vmatprep.subr.mxu0 0.0
      %3081 = vmatpush1.msra.mxu0 0.0
      %3082 = vmatprep.subr.mxu0 0.0
      %3083 = vmatpush1.msra.mxu0 0.0
      %3084 = vmatprep.subr.mxu0 0.0
      %3085 = vmatpush1.msra.mxu0 0.0
      %3086 = vmatprep.subr.mxu0 0.0
      %3087 = vmatpush1.msra.mxu0 %v3049
      %3088 = vmatprep.subr.mxu0 0.0
      %3089 = vmatpush1.msra.mxu0 %v3046
      %3090 = vmatprep.subr.mxu0 0.0
      %3091 = vmatpush1.msra.mxu0 %v3043
      %3092 = vmatprep.subr.mxu0 0.0
      %3093 = vmatpush1.msra.mxu0 %v3040
      %3094 = vmatprep.subr.mxu0 0.0
      %3095 = vmatpush2.msra.mxu0 0.0
      %3096 = vmatprep.subr.mxu0 0.0
      %3097 = vmatpush2.msra.mxu0 0.0
      %3098 = vmatprep.subr.mxu0 0.0
      %3099 = vmatpush2.msra.mxu0 0.0
      %3100 = vmatprep.subr.mxu0 0.0
      %3101 = vmatpush2.msra.mxu0 0.0
      %3102 = vmatprep.subr.mxu0 0.0
      %3103 = vmatpush2.msra.mxu0 0.0
      %3104 = vmatprep.subr.mxu0 0.0
      %3105 = vmatpush2.msra.mxu0 0.0
      %3106 = vmatprep.subr.mxu0 0.0
      %3107 = vmatpush2.msra.mxu0 0.0
      %3108 = vmatprep.subr.mxu0 0.0
      %3109 = vmatpush2.msra.mxu0 0.0
      %3110 = vmatprep.subr.mxu0 0.0
      %3111 = vmatpush2.msra.mxu0 0.0
      %3112 = vmatprep.subr.mxu0 0.0
      %3113 = vmatpush2.msra.mxu0 0.0
      %3114 = vmatprep.subr.mxu0 0.0
      %3115 = vmatpush2.msra.mxu0 0.0
      %3116 = vmatprep.subr.mxu0 0.0
      %3117 = vmatpush2.msra.mxu0 0.0
      %3118 = vmatprep.subr.mxu0 0.0
      %3119 = vmatpush2.msra.mxu0 0.0
      %3120 = vmatprep.subr.mxu0 0.0
      %3121 = vmatpush2.msra.mxu0 0.0
      %3122 = vmatprep.subr.mxu0 0.0
      %3123 = vmatpush2.msra.mxu0 0.0
      %3124 = vmatprep.subr.mxu0 0.0
      %3125 = vmatpush2.msra.mxu0 0.0
      %3126 = vmatprep.mubr.f32.mxu0 0.0
      %3127 = vmatmul.mubr.f32.gmra.mxu0 %v3051
      %v3128 = vpop.f32.mrf.mxu0
      %v3129 = vadd.f32 0.0, %v3128
      %v3130 = vpop.f32.mrf.mxu0
      %3131 = vmatprep.mubr.f32.mxu0 0.0
      %3132 = vmatmul.mubr.f32.gmra.mxu0 %v3054
      %v3133 = vpop.f32.mrf.mxu0
      %v3134 = vadd.f32 0.0, %v3133
      %v3135 = vpop.f32.mrf.mxu0
      %3136 = vmatprep.mubr.f32.mxu0 0.0
      %3137 = vmatmul.mubr.f32.gmra.mxu0 %v3057
      %v3138 = vpop.f32.mrf.mxu0
      %v3139 = vadd.f32 0.0, %v3138
      %v3140 = vpop.f32.mrf.mxu0
      %3141 = vmatprep.mubr.f32.mxu0 0.0
      %3142 = vmatmul.mubr.f32.gmra.mxu0 %v3060
      %v3143 = vpop.f32.mrf.mxu0
      %v3144 = vadd.f32 0.0, %v3143
      %v3145 = vpop.f32.mrf.mxu0
      %3146 = vdwg.mxu0
      %v3147 = vmul.f32 %v3129, 0.0009765625
      %v3148 = vmul.f32 %v3134, 0.0009765625
      %v3149 = vmul.f32 %v3139, 0.0009765625
      %v3150 = vmul.f32 %v3144, 0.0009765625
      %3152 = vset.pattern.permute.xlu0 0
      %3153 = vperm.xlu0 %3152, %v3147
      %v3154 = vpop.permute.xlu0 %3153
      %3157 = vset.pattern.permute.xlu0 0
      %3158 = vperm.xlu0 %3157, %v3148
      %v3159 = vpop.permute.xlu0 %3158
      %3162 = vset.pattern.permute.xlu0 0
      %3163 = vperm.xlu0 %3162, %v3149
      %v3164 = vpop.permute.xlu0 %3163
      %3167 = vset.pattern.permute.xlu0 0
      %3168 = vperm.xlu0 %3167, %v3150
      %v3169 = vpop.permute.xlu0 %3168
      %v3171 = vsub.f32 %v3018, %v3154
      %v3172 = vsub.f32 %v3019, %v3154
      %v3173 = vsub.f32 %v3020, %v3159
      %v3174 = vsub.f32 %v3021, %v3159
      %v3175 = vsub.f32 %v3022, %v3164
      %v3176 = vsub.f32 %v3023, %v3164
      %v3177 = vsub.f32 %v3024, %v3169
      %v3178 = vsub.f32 %v3025, %v3169
      %v3179 = vmul.f32 %v3171, %v3171
      %v3180 = vmul.f32 %v3172, %v3172
      %v3181 = vmul.f32 %v3173, %v3173
      %v3182 = vmul.f32 %v3174, %v3174
      %v3183 = vmul.f32 %v3175, %v3175
      %v3184 = vmul.f32 %v3176, %v3176
      %v3185 = vmul.f32 %v3177, %v3177
      %v3186 = vmul.f32 %v3178, %v3178
      %v3187 = vadd.f32 %v3179, %v3180
      %3188 = vadd.xlane.f32.xlu0 %v3187
      %v3189 = vpop.xlane.xlu0 %3188
      %v3190 = vadd.f32 %v3181, %v3182
      %3191 = vadd.xlane.f32.xlu0 %v3190
      %v3192 = vpop.xlane.xlu0 %3191
      %v3193 = vadd.f32 %v3183, %v3184
      %3194 = vadd.xlane.f32.xlu0 %v3193
      %v3195 = vpop.xlane.xlu0 %3194
      %v3196 = vadd.f32 %v3185, %v3186
      %3197 = vadd.xlane.f32.xlu0 %v3196
      %v3198 = vpop.xlane.xlu0 %3197
      %3199 = vmatprep.subr.mxu0 0.0
      %3200 = vmatpush1.msra.mxu0 0.0
      %3201 = vmatprep.subr.mxu0 0.0
      %3202 = vmatpush1.msra.mxu0 0.0
      %3203 = vmatprep.subr.mxu0 0.0
      %3204 = vmatpush1.msra.mxu0 0.0
      %3205 = vmatprep.subr.mxu0 0.0
      %3206 = vmatpush1.msra.mxu0 0.0
      %3207 = vmatprep.subr.mxu0 0.0
      %3208 = vmatpush1.msra.mxu0 0.0
      %3209 = vmatprep.subr.mxu0 0.0
      %3210 = vmatpush1.msra.mxu0 0.0
      %3211 = vmatprep.subr.mxu0 0.0
      %3212 = vmatpush1.msra.mxu0 0.0
      %3213 = vmatprep.subr.mxu0 0.0
      %3214 = vmatpush1.msra.mxu0 0.0
      %3215 = vmatprep.subr.mxu0 0.0
      %3216 = vmatpush1.msra.mxu0 0.0
      %3217 = vmatprep.subr.mxu0 0.0
      %3218 = vmatpush1.msra.mxu0 0.0
      %3219 = vmatprep.subr.mxu0 0.0
      %3220 = vmatpush1.msra.mxu0 0.0
      %3221 = vmatprep.subr.mxu0 0.0
      %3222 = vmatpush1.msra.mxu0 0.0
      %3223 = vmatprep.subr.mxu0 0.0
      %3224 = vmatpush1.msra.mxu0 %v3198
      %3225 = vmatprep.subr.mxu0 0.0
      %3226 = vmatpush1.msra.mxu0 %v3195
      %3227 = vmatprep.subr.mxu0 0.0
      %3228 = vmatpush1.msra.mxu0 %v3192
      %3229 = vmatprep.subr.mxu0 0.0
      %3230 = vmatpush1.msra.mxu0 %v3189
      %3231 = vmatprep.subr.mxu0 0.0
      %3232 = vmatpush2.msra.mxu0 0.0
      %3233 = vmatprep.subr.mxu0 0.0
      %3234 = vmatpush2.msra.mxu0 0.0
      %3235 = vmatprep.subr.mxu0 0.0
      %3236 = vmatpush2.msra.mxu0 0.0
      %3237 = vmatprep.subr.mxu0 0.0
      %3238 = vmatpush2.msra.mxu0 0.0
      %3239 = vmatprep.subr.mxu0 0.0
      %3240 = vmatpush2.msra.mxu0 0.0
      %3241 = vmatprep.subr.mxu0 0.0
      %3242 = vmatpush2.msra.mxu0 0.0
      %3243 = vmatprep.subr.mxu0 0.0
      %3244 = vmatpush2.msra.mxu0 0.0
      %3245 = vmatprep.subr.mxu0 0.0
      %3246 = vmatpush2.msra.mxu0 0.0
      %3247 = vmatprep.subr.mxu0 0.0
      %3248 = vmatpush2.msra.mxu0 0.0
      %3249 = vmatprep.subr.mxu0 0.0
      %3250 = vmatpush2.msra.mxu0 0.0
      %3251 = vmatprep.subr.mxu0 0.0
      %3252 = vmatpush2.msra.mxu0 0.0
      %3253 = vmatprep.subr.mxu0 0.0
      %3254 = vmatpush2.msra.mxu0 0.0
      %3255 = vmatprep.subr.mxu0 0.0
      %3256 = vmatpush2.msra.mxu0 0.0
      %3257 = vmatprep.subr.mxu0 0.0
      %3258 = vmatpush2.msra.mxu0 0.0
      %3259 = vmatprep.subr.mxu0 0.0
      %3260 = vmatpush2.msra.mxu0 0.0
      %3261 = vmatprep.subr.mxu0 0.0
      %3262 = vmatpush2.msra.mxu0 0.0
      %3263 = vmatprep.mubr.f32.mxu0 0.0
      %3264 = vmatmul.mubr.f32.gmra.mxu0 %v3051
      %v3265 = vpop.f32.mrf.mxu0
      %v3266 = vadd.f32 0.0, %v3265
      %v3267 = vpop.f32.mrf.mxu0
      %3268 = vmatprep.mubr.f32.mxu0 0.0
      %3269 = vmatmul.mubr.f32.gmra.mxu0 %v3054
      %v3270 = vpop.f32.mrf.mxu0
      %v3271 = vadd.f32 0.0, %v3270
      %v3272 = vpop.f32.mrf.mxu0
      %3273 = vmatprep.mubr.f32.mxu0 0.0
      %3274 = vmatmul.mubr.f32.gmra.mxu0 %v3057
      %v3275 = vpop.f32.mrf.mxu0
      %v3276 = vadd.f32 0.0, %v3275
      %v3277 = vpop.f32.mrf.mxu0
      %3278 = vmatprep.mubr.f32.mxu0 0.0
      %3279 = vmatmul.mubr.f32.gmra.mxu0 %v3060
      %v3280 = vpop.f32.mrf.mxu0
      %v3281 = vadd.f32 0.0, %v3280
      %v3282 = vpop.f32.mrf.mxu0
      %3283 = vdwg.mxu0
      %v3284 = vmul.f32 %v3266, 0.0009765625
      %v3285 = vmul.f32 %v3271, 0.0009765625
      %v3286 = vmul.f32 %v3276, 0.0009765625
      %v3287 = vmul.f32 %v3281, 0.0009765625
      %v3288 = vadd.f32 %v3284, 1e-05
      %v3289 = vadd.f32 %v3285, 1e-05
      %v3290 = vadd.f32 %v3286, 1e-05
      %v3291 = vadd.f32 %v3287, 1e-05
      %v3292 = vrsqrt.pop %v3288
      %v3293 = vrsqrt.pop %v3289
      %v3294 = vrsqrt.pop %v3290
      %v3295 = vrsqrt.pop %v3291
      %3297 = vset.pattern.permute.xlu0 0
      %3298 = vperm.xlu0 %3297, %v3292
      %v3299 = vpop.permute.xlu0 %3298
      %3302 = vset.pattern.permute.xlu0 0
      %3303 = vperm.xlu0 %3302, %v3293
      %v3304 = vpop.permute.xlu0 %3303
      %3307 = vset.pattern.permute.xlu0 0
      %3308 = vperm.xlu0 %3307, %v3294
      %v3309 = vpop.permute.xlu0 %3308
      %3312 = vset.pattern.permute.xlu0 0
      %3313 = vperm.xlu0 %3312, %v3295
      %v3314 = vpop.permute.xlu0 %3313
      %v3316 = vmul.f32 %v3171, %v3299
      %v3317 = vmul.f32 %v3172, %v3299
      %v3318 = vmul.f32 %v3173, %v3304
      %v3319 = vmul.f32 %v3174, %v3304
      %v3320 = vmul.f32 %v3175, %v3309
      %v3321 = vmul.f32 %v3176, %v3309
      %v3322 = vmul.f32 %v3177, %v3314
      %v3323 = vmul.f32 %v3178, %v3314
      %3325 = vset.pattern.permute.xlu0 0
      %3326 = vperm.xlu0 %3325, %v3030
      %v3327 = vpop.permute.xlu0 %3326
      %3330 = vset.pattern.permute.xlu0 0
      %3331 = vperm.xlu0 %3330, %v3031
      %v3332 = vpop.permute.xlu0 %3331
      %3335 = vset.pattern.permute.xlu0 0
      %3336 = vperm.xlu0 %3335, %v3032
      %v3337 = vpop.permute.xlu0 %3336
      %3340 = vset.pattern.permute.xlu0 0
      %3341 = vperm.xlu0 %3340, %v3033
      %v3342 = vpop.permute.xlu0 %3341
      %v3344 = vmul.f32 %v3316, %v3327
      %v3345 = vmul.f32 %v3317, %v3327
      %v3346 = vmul.f32 %v3318, %v3332
      %v3347 = vmul.f32 %v3319, %v3332
      %v3348 = vmul.f32 %v3320, %v3337
      %v3349 = vmul.f32 %v3321, %v3337
      %v3350 = vmul.f32 %v3322, %v3342
      %v3351 = vmul.f32 %v3323, %v3342
      %3353 = vset.pattern.permute.xlu0 0
      %3354 = vperm.xlu0 %3353, %v3034
      %v3355 = vpop.permute.xlu0 %3354
      %3358 = vset.pattern.permute.xlu0 0
      %3359 = vperm.xlu0 %3358, %v3035
      %v3360 = vpop.permute.xlu0 %3359
      %3363 = vset.pattern.permute.xlu0 0
      %3364 = vperm.xlu0 %3363, %v3036
      %v3365 = vpop.permute.xlu0 %3364
      %3368 = vset.pattern.permute.xlu0 0
      %3369 = vperm.xlu0 %3368, %v3037
      %v3370 = vpop.permute.xlu0 %3369
      %v3372 = vadd.f32 %v3344, %v3355
      %v3373 = vadd.f32 %v3345, %v3355
      %v3374 = vadd.f32 %v3346, %v3360
      %v3375 = vadd.f32 %v3347, %v3360
      %v3376 = vadd.f32 %v3348, %v3365
      %v3377 = vadd.f32 %v3349, %v3365
      %v3378 = vadd.f32 %v3350, %v3370
      %v3379 = vadd.f32 %v3351, %v3370
      %v3380 = vld [vmem:[%s15] sm:$0xff]
      %v3381 = vld [vmem:[%s15 + $0x8] sm:$0xff]
      %v3382 = vld [vmem:[%s15 + $0x10] sm:$0xff]
      %v3383 = vld [vmem:[%s15 + $0x18] sm:$0xff]
      %v3384 = vld [vmem:[%s15 + $0x20] sm:$0xff]
      %v3385 = vld [vmem:[%s15 + $0x28] sm:$0xff]
      %v3386 = vld [vmem:[%s15 + $0x30] sm:$0xff]
      %v3387 = vld [vmem:[%s15 + $0x38] sm:$0xff]
      %v3388 = vld [vmem:[%s15 + $0x40] sm:$0xff]
      %v3389 = vld [vmem:[%s15 + $0x48] sm:$0xff]
      %v3390 = vld [vmem:[%s15 + $0x50] sm:$0xff]
      %v3391 = vld [vmem:[%s15 + $0x58] sm:$0xff]
      %v3393 = vsel %vm632, %v3380, 0
      %v3396 = vsel %vm632, %v3381, 0
      %v3399 = vsel %vm632, %v3382, 0
      %v3402 = vsel %vm632, %v3383, 0
      %v3405 = vsel %vm632, %v3384, 0
      %v3408 = vsel %vm632, %v3385, 0
      %v3411 = vsel %vm632, %v3386, 0
      %v3414 = vsel %vm632, %v3387, 0
      %v3417 = vsel %vm632, %v3388, 0
      %v3420 = vsel %vm632, %v3389, 0
      %v3423 = vsel %vm632, %v3390, 0
      %v3426 = vsel %vm632, %v3391, 0
      %3428 = vmatprep.subr.mxu0 0.0
      %3429 = vmatpush1.msra.mxu0 0.0
      %3430 = vmatprep.subr.mxu0 0.0
      %3431 = vmatpush1.msra.mxu0 0.0
      %3432 = vmatprep.subr.mxu0 0.0
      %3433 = vmatpush1.msra.mxu0 0.0
      %3434 = vmatprep.subr.mxu0 0.0
      %3435 = vmatpush1.msra.mxu0 0.0
      %3436 = vmatprep.subr.mxu0 0.0
      %3437 = vmatpush1.msra.mxu0 0.0
      %3438 = vmatprep.subr.mxu0 0.0
      %3439 = vmatpush1.msra.mxu0 0.0
      %3440 = vmatprep.subr.mxu0 0.0
      %3441 = vmatpush1.msra.mxu0 0.0
      %3442 = vmatprep.subr.mxu0 0.0
      %3443 = vmatpush1.msra.mxu0 0.0
      %3444 = vmatprep.subr.mxu0 0.0
      %3445 = vmatpush1.msra.mxu0 0.0
      %3446 = vmatprep.subr.mxu0 0.0
      %3447 = vmatpush1.msra.mxu0 0.0
      %3448 = vmatprep.subr.mxu0 0.0
      %3449 = vmatpush1.msra.mxu0 0.0
      %3450 = vmatprep.subr.mxu0 0.0
      %3451 = vmatpush1.msra.mxu0 0.0
      %3452 = vmatprep.subr.mxu0 %v3379
      %3453 = vmatpush1.msra.mxu0 %v3378
      %3454 = vmatprep.subr.mxu0 %v3377
      %3455 = vmatpush1.msra.mxu0 %v3376
      %3456 = vmatprep.subr.mxu0 %v3375
      %3457 = vmatpush1.msra.mxu0 %v3374
      %3458 = vmatprep.subr.mxu0 %v3373
      %3459 = vmatpush1.msra.mxu0 %v3372
      %3460 = vmatprep.subr.mxu0 0.0
      %3461 = vmatpush2.msra.mxu0 0.0
      %3462 = vmatprep.subr.mxu0 0.0
      %3463 = vmatpush2.msra.mxu0 0.0
      %3464 = vmatprep.subr.mxu0 0.0
      %3465 = vmatpush2.msra.mxu0 0.0
      %3466 = vmatprep.subr.mxu0 0.0
      %3467 = vmatpush2.msra.mxu0 0.0
      %3468 = vmatprep.subr.mxu0 0.0
      %3469 = vmatpush2.msra.mxu0 0.0
      %3470 = vmatprep.subr.mxu0 0.0
      %3471 = vmatpush2.msra.mxu0 0.0
      %3472 = vmatprep.subr.mxu0 0.0
      %3473 = vmatpush2.msra.mxu0 0.0
      %3474 = vmatprep.subr.mxu0 0.0
      %3475 = vmatpush2.msra.mxu0 0.0
      %3476 = vmatprep.subr.mxu0 0.0
      %3477 = vmatpush2.msra.mxu0 0.0
      %3478 = vmatprep.subr.mxu0 0.0
      %3479 = vmatpush2.msra.mxu0 0.0
      %3480 = vmatprep.subr.mxu0 0.0
      %3481 = vmatpush2.msra.mxu0 0.0
      %3482 = vmatprep.subr.mxu0 0.0
      %3483 = vmatpush2.msra.mxu0 0.0
      %3484 = vmatprep.subr.mxu0 0.0
      %3485 = vmatpush2.msra.mxu0 0.0
      %3486 = vmatprep.subr.mxu0 0.0
      %3487 = vmatpush2.msra.mxu0 0.0
      %3488 = vmatprep.subr.mxu0 0.0
      %3489 = vmatpush2.msra.mxu0 0.0
      %3490 = vmatprep.subr.mxu0 0.0
      %3491 = vmatpush2.msra.mxu0 0.0
      %3492 = vmatprep.mubr.f32.mxu0 0.0
      %3493 = vmatmul.mubr.f32.gmra.mxu0 %v3393
      %v3494 = vpop.f32.mrf.mxu0
      %v3495 = vadd.f32 0.0, %v3494
      %v3496 = vpop.f32.mrf.mxu0
      %v3497 = vadd.f32 0.0, %v3496
      %3498 = vmatprep.mubr.f32.mxu0 0.0
      %3499 = vmatmul.mubr.f32.gmra.mxu0 %v3396
      %v3500 = vpop.f32.mrf.mxu0
      %v3501 = vadd.f32 0.0, %v3500
      %v3502 = vpop.f32.mrf.mxu0
      %v3503 = vadd.f32 0.0, %v3502
      %3504 = vmatprep.mubr.f32.mxu0 0.0
      %3505 = vmatmul.mubr.f32.gmra.mxu0 %v3399
      %v3506 = vpop.f32.mrf.mxu0
      %v3507 = vadd.f32 0.0, %v3506
      %v3508 = vpop.f32.mrf.mxu0
      %v3509 = vadd.f32 0.0, %v3508
      %3510 = vmatprep.mubr.f32.mxu0 0.0
      %3511 = vmatmul.mubr.f32.gmra.mxu0 %v3402
      %v3512 = vpop.f32.mrf.mxu0
      %v3513 = vadd.f32 0.0, %v3512
      %v3514 = vpop.f32.mrf.mxu0
      %v3515 = vadd.f32 0.0, %v3514
      %3516 = vmatprep.mubr.f32.mxu0 0.0
      %3517 = vmatmul.mubr.f32.gmra.mxu0 %v3405
      %v3518 = vpop.f32.mrf.mxu0
      %v3519 = vadd.f32 0.0, %v3518
      %v3520 = vpop.f32.mrf.mxu0
      %v3521 = vadd.f32 0.0, %v3520
      %3522 = vmatprep.mubr.f32.mxu0 0.0
      %3523 = vmatmul.mubr.f32.gmra.mxu0 %v3408
      %v3524 = vpop.f32.mrf.mxu0
      %v3525 = vadd.f32 0.0, %v3524
      %v3526 = vpop.f32.mrf.mxu0
      %v3527 = vadd.f32 0.0, %v3526
      %3528 = vmatprep.mubr.f32.mxu0 0.0
      %3529 = vmatmul.mubr.f32.gmra.mxu0 %v3411
      %v3530 = vpop.f32.mrf.mxu0
      %v3531 = vadd.f32 0.0, %v3530
      %v3532 = vpop.f32.mrf.mxu0
      %v3533 = vadd.f32 0.0, %v3532
      %3534 = vmatprep.mubr.f32.mxu0 0.0
      %3535 = vmatmul.mubr.f32.gmra.mxu0 %v3414
      %v3536 = vpop.f32.mrf.mxu0
      %v3537 = vadd.f32 0.0, %v3536
      %v3538 = vpop.f32.mrf.mxu0
      %v3539 = vadd.f32 0.0, %v3538
      %3540 = vmatprep.mubr.f32.mxu0 0.0
      %3541 = vmatmul.mubr.f32.gmra.mxu0 %v3417
      %v3542 = vpop.f32.mrf.mxu0
      %v3543 = vadd.f32 0.0, %v3542
      %v3544 = vpop.f32.mrf.mxu0
      %v3545 = vadd.f32 0.0, %v3544
      %3546 = vmatprep.mubr.f32.mxu0 0.0
      %3547 = vmatmul.mubr.f32.gmra.mxu0 %v3420
      %v3548 = vpop.f32.mrf.mxu0
      %v3549 = vadd.f32 0.0, %v3548
      %v3550 = vpop.f32.mrf.mxu0
      %v3551 = vadd.f32 0.0, %v3550
      %3552 = vmatprep.mubr.f32.mxu0 0.0
      %3553 = vmatmul.mubr.f32.gmra.mxu0 %v3423
      %v3554 = vpop.f32.mrf.mxu0
      %v3555 = vadd.f32 0.0, %v3554
      %v3556 = vpop.f32.mrf.mxu0
      %v3557 = vadd.f32 0.0, %v3556
      %3558 = vmatprep.mubr.f32.mxu0 0.0
      %3559 = vmatmul.mubr.f32.gmra.mxu0 %v3426
      %v3560 = vpop.f32.mrf.mxu0
      %v3561 = vadd.f32 0.0, %v3560
      %v3562 = vpop.f32.mrf.mxu0
      %v3563 = vadd.f32 0.0, %v3562
      %3564 = vdwg.mxu0
      %3565 = vxpose.xlu0.b32.start [1/16] %v3495, 128
      %3566 = vxpose.xlu0.b32.cont [2/16] %v3501, 128
      %3567 = vxpose.xlu0.b32.cont [3/16] %v3507, 128
      %3568 = vxpose.xlu0.b32.cont [4/16] %v3513, 128
      %3569 = vxpose.xlu0.b32.cont [5/16] 0.0, 128
      %3570 = vxpose.xlu0.b32.cont [6/16] 0.0, 128
      %3571 = vxpose.xlu0.b32.cont [7/16] 0.0, 128
      %3572 = vxpose.xlu0.b32.cont [8/16] 0.0, 128
      %3573 = vxpose.xlu0.b32.cont [9/16] 0.0, 128
      %3574 = vxpose.xlu0.b32.cont [10/16] 0.0, 128
      %3575 = vxpose.xlu0.b32.cont [11/16] 0.0, 128
      %3576 = vxpose.xlu0.b32.cont [12/16] 0.0, 128
      %3577 = vxpose.xlu0.b32.cont [13/16] 0.0, 128
      %3578 = vxpose.xlu0.b32.cont [14/16] 0.0, 128
      %3579 = vxpose.xlu0.b32.cont [15/16] 0.0, 128
      %3580 = vxpose.xlu0.b32.end [16/16] 0.0, 128
      %v3581 = vpop.trf.xlu0
      %v3582 = vpop.trf.xlu0
      %v3583 = vpop.trf.xlu0
      %v3584 = vpop.trf.xlu0
      %v3585 = vpop.trf.xlu0
      %v3586 = vpop.trf.xlu0
      %v3587 = vpop.trf.xlu0
      %v3588 = vpop.trf.xlu0
      %v3589 = vpop.trf.xlu0
      %v3590 = vpop.trf.xlu0
      %v3591 = vpop.trf.xlu0
      %v3592 = vpop.trf.xlu0
      %v3593 = vpop.trf.xlu0
      %v3594 = vpop.trf.xlu0
      %v3595 = vpop.trf.xlu0
      %v3596 = vpop.trf.xlu0
      %3597 = vxpose.xlu0.b32.start [1/16] %v3497, 128
      %3598 = vxpose.xlu0.b32.cont [2/16] %v3503, 128
      %3599 = vxpose.xlu0.b32.cont [3/16] %v3509, 128
      %3600 = vxpose.xlu0.b32.cont [4/16] %v3515, 128
      %3601 = vxpose.xlu0.b32.cont [5/16] 0.0, 128
      %3602 = vxpose.xlu0.b32.cont [6/16] 0.0, 128
      %3603 = vxpose.xlu0.b32.cont [7/16] 0.0, 128
      %3604 = vxpose.xlu0.b32.cont [8/16] 0.0, 128
      %3605 = vxpose.xlu0.b32.cont [9/16] 0.0, 128
      %3606 = vxpose.xlu0.b32.cont [10/16] 0.0, 128
      %3607 = vxpose.xlu0.b32.cont [11/16] 0.0, 128
      %3608 = vxpose.xlu0.b32.cont [12/16] 0.0, 128
      %3609 = vxpose.xlu0.b32.cont [13/16] 0.0, 128
      %3610 = vxpose.xlu0.b32.cont [14/16] 0.0, 128
      %3611 = vxpose.xlu0.b32.cont [15/16] 0.0, 128
      %3612 = vxpose.xlu0.b32.end [16/16] 0.0, 128
      %v3613 = vpop.trf.xlu0
      %v3614 = vpop.trf.xlu0
      %v3615 = vpop.trf.xlu0
      %v3616 = vpop.trf.xlu0
      %v3617 = vpop.trf.xlu0
      %v3618 = vpop.trf.xlu0
      %v3619 = vpop.trf.xlu0
      %v3620 = vpop.trf.xlu0
      %v3621 = vpop.trf.xlu0
      %v3622 = vpop.trf.xlu0
      %v3623 = vpop.trf.xlu0
      %v3624 = vpop.trf.xlu0
      %v3625 = vpop.trf.xlu0
      %v3626 = vpop.trf.xlu0
      %v3627 = vpop.trf.xlu0
      %v3628 = vpop.trf.xlu0
      %v3630 = vsel %vm632, %v3581, 0
      %v3633 = vsel %vm632, %v3582, 0
      %v3636 = vsel %vm632, %v3583, 0
      %v3639 = vsel %vm632, %v3584, 0
      %v3642 = vsel %vm632, %v3585, 0
      %v3645 = vsel %vm632, %v3586, 0
      %v3648 = vsel %vm632, %v3587, 0
      %v3651 = vsel %vm632, %v3588, 0
      %v3654 = vsel %vm632, %v3589, 0
      %v3657 = vsel %vm632, %v3590, 0
      %v3660 = vsel %vm632, %v3591, 0
      %v3663 = vsel %vm632, %v3592, 0
      %v3666 = vsel %vm632, %v3593, 0
      %v3669 = vsel %vm632, %v3594, 0
      %v3672 = vsel %vm632, %v3595, 0
      %v3675 = vsel %vm632, %v3596, 0
      %v3678 = vsel %vm632, %v3613, 0
      %v3681 = vsel %vm632, %v3614, 0
      %v3684 = vsel %vm632, %v3615, 0
      %v3687 = vsel %vm632, %v3616, 0
      %v3690 = vsel %vm632, %v3617, 0
      %v3693 = vsel %vm632, %v3618, 0
      %v3696 = vsel %vm632, %v3619, 0
      %v3699 = vsel %vm632, %v3620, 0
      %v3702 = vsel %vm632, %v3621, 0
      %v3705 = vsel %vm632, %v3622, 0
      %v3708 = vsel %vm632, %v3623, 0
      %v3711 = vsel %vm632, %v3624, 0
      %v3714 = vsel %vm632, %v3625, 0
      %v3717 = vsel %vm632, %v3626, 0
      %v3720 = vsel %vm632, %v3627, 0
      %v3723 = vsel %vm632, %v3628, 0
      %3725 = vmatprep.subr.mxu0 0.0
      %3726 = vmatpush1.msra.mxu0 0.0
      %3727 = vmatprep.subr.mxu0 0.0
      %3728 = vmatpush1.msra.mxu0 0.0
      %3729 = vmatprep.subr.mxu0 0.0
      %3730 = vmatpush1.msra.mxu0 0.0
      %3731 = vmatprep.subr.mxu0 0.0
      %3732 = vmatpush1.msra.mxu0 0.0
      %3733 = vmatprep.subr.mxu0 0.0
      %3734 = vmatpush1.msra.mxu0 0.0
      %3735 = vmatprep.subr.mxu0 0.0
      %3736 = vmatpush1.msra.mxu0 0.0
      %3737 = vmatprep.subr.mxu0 0.0
      %3738 = vmatpush1.msra.mxu0 0.0
      %3739 = vmatprep.subr.mxu0 0.0
      %3740 = vmatpush1.msra.mxu0 0.0
      %3741 = vmatprep.subr.mxu0 0.0
      %3742 = vmatpush1.msra.mxu0 0.0
      %3743 = vmatprep.subr.mxu0 0.0
      %3744 = vmatpush1.msra.mxu0 0.0
      %3745 = vmatprep.subr.mxu0 0.0
      %3746 = vmatpush1.msra.mxu0 0.0
      %3747 = vmatprep.subr.mxu0 0.0
      %3748 = vmatpush1.msra.mxu0 0.0
      %3749 = vmatprep.subr.mxu0 %v3539
      %3750 = vmatpush1.msra.mxu0 %v3537
      %3751 = vmatprep.subr.mxu0 %v3533
      %3752 = vmatpush1.msra.mxu0 %v3531
      %3753 = vmatprep.subr.mxu0 %v3527
      %3754 = vmatpush1.msra.mxu0 %v3525
      %3755 = vmatprep.subr.mxu0 %v3521
      %3756 = vmatpush1.msra.mxu0 %v3519
      %3757 = vmatprep.subr.mxu0 0.0
      %3758 = vmatpush2.msra.mxu0 0.0
      %3759 = vmatprep.subr.mxu0 0.0
      %3760 = vmatpush2.msra.mxu0 0.0
      %3761 = vmatprep.subr.mxu0 0.0
      %3762 = vmatpush2.msra.mxu0 0.0
      %3763 = vmatprep.subr.mxu0 0.0
      %3764 = vmatpush2.msra.mxu0 0.0
      %3765 = vmatprep.subr.mxu0 0.0
      %3766 = vmatpush2.msra.mxu0 0.0
      %3767 = vmatprep.subr.mxu0 0.0
      %3768 = vmatpush2.msra.mxu0 0.0
      %3769 = vmatprep.subr.mxu0 0.0
      %3770 = vmatpush2.msra.mxu0 0.0
      %3771 = vmatprep.subr.mxu0 0.0
      %3772 = vmatpush2.msra.mxu0 0.0
      %3773 = vmatprep.subr.mxu0 0.0
      %3774 = vmatpush2.msra.mxu0 0.0
      %3775 = vmatprep.subr.mxu0 0.0
      %3776 = vmatpush2.msra.mxu0 0.0
      %3777 = vmatprep.subr.mxu0 0.0
      %3778 = vmatpush2.msra.mxu0 0.0
      %3779 = vmatprep.subr.mxu0 0.0
      %3780 = vmatpush2.msra.mxu0 0.0
      %3781 = vmatprep.subr.mxu0 0.0
      %3782 = vmatpush2.msra.mxu0 0.0
      %3783 = vmatprep.subr.mxu0 0.0
      %3784 = vmatpush2.msra.mxu0 0.0
      %3785 = vmatprep.subr.mxu0 0.0
      %3786 = vmatpush2.msra.mxu0 0.0
      %3787 = vmatprep.subr.mxu0 0.0
      %3788 = vmatpush2.msra.mxu0 0.0
      %3789 = vmatprep.mubr.f32.mxu0 0.0
      %3790 = vmatmul.mubr.f32.gmra.mxu0 %v3630
      %v3791 = vpop.f32.mrf.mxu0
      %v3792 = vadd.f32 0.0, %v3791
      %v3793 = vpop.f32.mrf.mxu0
      %v3794 = vadd.f32 0.0, %v3793
      %3795 = vmatprep.mubr.f32.mxu0 0.0
      %3796 = vmatmul.mubr.f32.gmra.mxu0 %v3633
      %v3797 = vpop.f32.mrf.mxu0
      %v3798 = vadd.f32 0.0, %v3797
      %v3799 = vpop.f32.mrf.mxu0
      %v3800 = vadd.f32 0.0, %v3799
      %3801 = vmatprep.mubr.f32.mxu0 0.0
      %3802 = vmatmul.mubr.f32.gmra.mxu0 %v3636
      %v3803 = vpop.f32.mrf.mxu0
      %v3804 = vadd.f32 0.0, %v3803
      %v3805 = vpop.f32.mrf.mxu0
      %v3806 = vadd.f32 0.0, %v3805
      %3807 = vmatprep.mubr.f32.mxu0 0.0
      %3808 = vmatmul.mubr.f32.gmra.mxu0 %v3639
      %v3809 = vpop.f32.mrf.mxu0
      %v3810 = vadd.f32 0.0, %v3809
      %v3811 = vpop.f32.mrf.mxu0
      %v3812 = vadd.f32 0.0, %v3811
      %3813 = vmatprep.mubr.f32.mxu0 0.0
      %3814 = vmatmul.mubr.f32.gmra.mxu0 %v3642
      %v3815 = vpop.f32.mrf.mxu0
      %v3816 = vadd.f32 0.0, %v3815
      %v3817 = vpop.f32.mrf.mxu0
      %v3818 = vadd.f32 0.0, %v3817
      %3819 = vmatprep.mubr.f32.mxu0 0.0
      %3820 = vmatmul.mubr.f32.gmra.mxu0 %v3645
      %v3821 = vpop.f32.mrf.mxu0
      %v3822 = vadd.f32 0.0, %v3821
      %v3823 = vpop.f32.mrf.mxu0
      %v3824 = vadd.f32 0.0, %v3823
      %3825 = vmatprep.mubr.f32.mxu0 0.0
      %3826 = vmatmul.mubr.f32.gmra.mxu0 %v3648
      %v3827 = vpop.f32.mrf.mxu0
      %v3828 = vadd.f32 0.0, %v3827
      %v3829 = vpop.f32.mrf.mxu0
      %v3830 = vadd.f32 0.0, %v3829
      %3831 = vmatprep.mubr.f32.mxu0 0.0
      %3832 = vmatmul.mubr.f32.gmra.mxu0 %v3651
      %v3833 = vpop.f32.mrf.mxu0
      %v3834 = vadd.f32 0.0, %v3833
      %v3835 = vpop.f32.mrf.mxu0
      %v3836 = vadd.f32 0.0, %v3835
      %3837 = vmatprep.mubr.f32.mxu0 0.0
      %3838 = vmatmul.mubr.f32.gmra.mxu0 %v3654
      %v3839 = vpop.f32.mrf.mxu0
      %v3840 = vadd.f32 0.0, %v3839
      %v3841 = vpop.f32.mrf.mxu0
      %v3842 = vadd.f32 0.0, %v3841
      %3843 = vmatprep.mubr.f32.mxu0 0.0
      %3844 = vmatmul.mubr.f32.gmra.mxu0 %v3657
      %v3845 = vpop.f32.mrf.mxu0
      %v3846 = vadd.f32 0.0, %v3845
      %v3847 = vpop.f32.mrf.mxu0
      %v3848 = vadd.f32 0.0, %v3847
      %3849 = vmatprep.mubr.f32.mxu0 0.0
      %3850 = vmatmul.mubr.f32.gmra.mxu0 %v3660
      %v3851 = vpop.f32.mrf.mxu0
      %v3852 = vadd.f32 0.0, %v3851
      %v3853 = vpop.f32.mrf.mxu0
      %v3854 = vadd.f32 0.0, %v3853
      %3855 = vmatprep.mubr.f32.mxu0 0.0
      %3856 = vmatmul.mubr.f32.gmra.mxu0 %v3663
      %v3857 = vpop.f32.mrf.mxu0
      %v3858 = vadd.f32 0.0, %v3857
      %v3859 = vpop.f32.mrf.mxu0
      %v3860 = vadd.f32 0.0, %v3859
      %3861 = vmatprep.mubr.f32.mxu0 0.0
      %3862 = vmatmul.mubr.f32.gmra.mxu0 %v3666
      %v3863 = vpop.f32.mrf.mxu0
      %v3864 = vadd.f32 0.0, %v3863
      %v3865 = vpop.f32.mrf.mxu0
      %v3866 = vadd.f32 0.0, %v3865
      %3867 = vmatprep.mubr.f32.mxu0 0.0
      %3868 = vmatmul.mubr.f32.gmra.mxu0 %v3669
      %v3869 = vpop.f32.mrf.mxu0
      %v3870 = vadd.f32 0.0, %v3869
      %v3871 = vpop.f32.mrf.mxu0
      %v3872 = vadd.f32 0.0, %v3871
      %3873 = vmatprep.mubr.f32.mxu0 0.0
      %3874 = vmatmul.mubr.f32.gmra.mxu0 %v3672
      %v3875 = vpop.f32.mrf.mxu0
      %v3876 = vadd.f32 0.0, %v3875
      %v3877 = vpop.f32.mrf.mxu0
      %v3878 = vadd.f32 0.0, %v3877
      %3879 = vmatprep.mubr.f32.mxu0 0.0
      %3880 = vmatmul.mubr.f32.gmra.mxu0 %v3675
      %v3881 = vpop.f32.mrf.mxu0
      %v3882 = vadd.f32 0.0, %v3881
      %v3883 = vpop.f32.mrf.mxu0
      %v3884 = vadd.f32 0.0, %v3883
      %3885 = vmatprep.mubr.f32.mxu0 0.0
      %3886 = vmatmul.mubr.f32.gmra.mxu0 %v3678
      %v3887 = vpop.f32.mrf.mxu0
      %v3888 = vadd.f32 0.0, %v3887
      %v3889 = vpop.f32.mrf.mxu0
      %v3890 = vadd.f32 0.0, %v3889
      %3891 = vmatprep.mubr.f32.mxu0 0.0
      %3892 = vmatmul.mubr.f32.gmra.mxu0 %v3681
      %v3893 = vpop.f32.mrf.mxu0
      %v3894 = vadd.f32 0.0, %v3893
      %v3895 = vpop.f32.mrf.mxu0
      %v3896 = vadd.f32 0.0, %v3895
      %3897 = vmatprep.mubr.f32.mxu0 0.0
      %3898 = vmatmul.mubr.f32.gmra.mxu0 %v3684
      %v3899 = vpop.f32.mrf.mxu0
      %v3900 = vadd.f32 0.0, %v3899
      %v3901 = vpop.f32.mrf.mxu0
      %v3902 = vadd.f32 0.0, %v3901
      %3903 = vmatprep.mubr.f32.mxu0 0.0
      %3904 = vmatmul.mubr.f32.gmra.mxu0 %v3687
      %v3905 = vpop.f32.mrf.mxu0
      %v3906 = vadd.f32 0.0, %v3905
      %v3907 = vpop.f32.mrf.mxu0
      %v3908 = vadd.f32 0.0, %v3907
      %3909 = vmatprep.mubr.f32.mxu0 0.0
      %3910 = vmatmul.mubr.f32.gmra.mxu0 %v3690
      %v3911 = vpop.f32.mrf.mxu0
      %v3912 = vadd.f32 0.0, %v3911
      %v3913 = vpop.f32.mrf.mxu0
      %v3914 = vadd.f32 0.0, %v3913
      %3915 = vmatprep.mubr.f32.mxu0 0.0
      %3916 = vmatmul.mubr.f32.gmra.mxu0 %v3693
      %v3917 = vpop.f32.mrf.mxu0
      %v3918 = vadd.f32 0.0, %v3917
      %v3919 = vpop.f32.mrf.mxu0
      %v3920 = vadd.f32 0.0, %v3919
      %3921 = vmatprep.mubr.f32.mxu0 0.0
      %3922 = vmatmul.mubr.f32.gmra.mxu0 %v3696
      %v3923 = vpop.f32.mrf.mxu0
      %v3924 = vadd.f32 0.0, %v3923
      %v3925 = vpop.f32.mrf.mxu0
      %v3926 = vadd.f32 0.0, %v3925
      %3927 = vmatprep.mubr.f32.mxu0 0.0
      %3928 = vmatmul.mubr.f32.gmra.mxu0 %v3699
      %v3929 = vpop.f32.mrf.mxu0
      %v3930 = vadd.f32 0.0, %v3929
      %v3931 = vpop.f32.mrf.mxu0
      %v3932 = vadd.f32 0.0, %v3931
      %3933 = vmatprep.mubr.f32.mxu0 0.0
      %3934 = vmatmul.mubr.f32.gmra.mxu0 %v3702
      %v3935 = vpop.f32.mrf.mxu0
      %v3936 = vadd.f32 0.0, %v3935
      %v3937 = vpop.f32.mrf.mxu0
      %v3938 = vadd.f32 0.0, %v3937
      %3939 = vmatprep.mubr.f32.mxu0 0.0
      %3940 = vmatmul.mubr.f32.gmra.mxu0 %v3705
      %v3941 = vpop.f32.mrf.mxu0
      %v3942 = vadd.f32 0.0, %v3941
      %v3943 = vpop.f32.mrf.mxu0
      %v3944 = vadd.f32 0.0, %v3943
      %3945 = vmatprep.mubr.f32.mxu0 0.0
      %3946 = vmatmul.mubr.f32.gmra.mxu0 %v3708
      %v3947 = vpop.f32.mrf.mxu0
      %v3948 = vadd.f32 0.0, %v3947
      %v3949 = vpop.f32.mrf.mxu0
      %v3950 = vadd.f32 0.0, %v3949
      %3951 = vmatprep.mubr.f32.mxu0 0.0
      %3952 = vmatmul.mubr.f32.gmra.mxu0 %v3711
      %v3953 = vpop.f32.mrf.mxu0
      %v3954 = vadd.f32 0.0, %v3953
      %v3955 = vpop.f32.mrf.mxu0
      %v3956 = vadd.f32 0.0, %v3955
      %3957 = vmatprep.mubr.f32.mxu0 0.0
      %3958 = vmatmul.mubr.f32.gmra.mxu0 %v3714
      %v3959 = vpop.f32.mrf.mxu0
      %v3960 = vadd.f32 0.0, %v3959
      %v3961 = vpop.f32.mrf.mxu0
      %v3962 = vadd.f32 0.0, %v3961
      %3963 = vmatprep.mubr.f32.mxu0 0.0
      %3964 = vmatmul.mubr.f32.gmra.mxu0 %v3717
      %v3965 = vpop.f32.mrf.mxu0
      %v3966 = vadd.f32 0.0, %v3965
      %v3967 = vpop.f32.mrf.mxu0
      %v3968 = vadd.f32 0.0, %v3967
      %3969 = vmatprep.mubr.f32.mxu0 0.0
      %3970 = vmatmul.mubr.f32.gmra.mxu0 %v3720
      %v3971 = vpop.f32.mrf.mxu0
      %v3972 = vadd.f32 0.0, %v3971
      %v3973 = vpop.f32.mrf.mxu0
      %v3974 = vadd.f32 0.0, %v3973
      %3975 = vmatprep.mubr.f32.mxu0 0.0
      %3976 = vmatmul.mubr.f32.gmra.mxu0 %v3723
      %v3977 = vpop.f32.mrf.mxu0
      %v3978 = vadd.f32 0.0, %v3977
      %v3979 = vpop.f32.mrf.mxu0
      %v3980 = vadd.f32 0.0, %v3979
      %3981 = vdwg.mxu0
      %v3982 = vmax.f32 %v3792, %v3794
      %3983 = vmax.xlane.f32.xlu0 %v3982
      %v3984 = vpop.xlane.xlu0 %3983
      %v3985 = vmax.f32 %v3798, %v3800
      %3986 = vmax.xlane.f32.xlu0 %v3985
      %v3987 = vpop.xlane.xlu0 %3986
      %v3988 = vmax.f32 %v3804, %v3806
      %3989 = vmax.xlane.f32.xlu0 %v3988
      %v3990 = vpop.xlane.xlu0 %3989
      %v3991 = vmax.f32 %v3810, %v3812
      %3992 = vmax.xlane.f32.xlu0 %v3991
      %v3993 = vpop.xlane.xlu0 %3992
      %v3994 = vmax.f32 %v3816, %v3818
      %3995 = vmax.xlane.f32.xlu0 %v3994
      %v3996 = vpop.xlane.xlu0 %3995
      %v3997 = vmax.f32 %v3822, %v3824
      %3998 = vmax.xlane.f32.xlu0 %v3997
      %v3999 = vpop.xlane.xlu0 %3998
      %v4000 = vmax.f32 %v3828, %v3830
      %4001 = vmax.xlane.f32.xlu0 %v4000
      %v4002 = vpop.xlane.xlu0 %4001
      %v4003 = vmax.f32 %v3834, %v3836
      %4004 = vmax.xlane.f32.xlu0 %v4003
      %v4005 = vpop.xlane.xlu0 %4004
      %v4006 = vmax.f32 %v3840, %v3842
      %4007 = vmax.xlane.f32.xlu0 %v4006
      %v4008 = vpop.xlane.xlu0 %4007
      %v4009 = vmax.f32 %v3846, %v3848
      %4010 = vmax.xlane.f32.xlu0 %v4009
      %v4011 = vpop.xlane.xlu0 %4010
      %v4012 = vmax.f32 %v3852, %v3854
      %4013 = vmax.xlane.f32.xlu0 %v4012
      %v4014 = vpop.xlane.xlu0 %4013
      %v4015 = vmax.f32 %v3858, %v3860
      %4016 = vmax.xlane.f32.xlu0 %v4015
      %v4017 = vpop.xlane.xlu0 %4016
      %v4018 = vmax.f32 %v3864, %v3866
      %4019 = vmax.xlane.f32.xlu0 %v4018
      %v4020 = vpop.xlane.xlu0 %4019
      %v4021 = vmax.f32 %v3870, %v3872
      %4022 = vmax.xlane.f32.xlu0 %v4021
      %v4023 = vpop.xlane.xlu0 %4022
      %v4024 = vmax.f32 %v3876, %v3878
      %4025 = vmax.xlane.f32.xlu0 %v4024
      %v4026 = vpop.xlane.xlu0 %4025
      %v4027 = vmax.f32 %v3882, %v3884
      %4028 = vmax.xlane.f32.xlu0 %v4027
      %v4029 = vpop.xlane.xlu0 %4028
      %v4030 = vmax.f32 %v3888, %v3890
      %4031 = vmax.xlane.f32.xlu0 %v4030
      %v4032 = vpop.xlane.xlu0 %4031
      %v4033 = vmax.f32 %v3894, %v3896
      %4034 = vmax.xlane.f32.xlu0 %v4033
      %v4035 = vpop.xlane.xlu0 %4034
      %v4036 = vmax.f32 %v3900, %v3902
      %4037 = vmax.xlane.f32.xlu0 %v4036
      %v4038 = vpop.xlane.xlu0 %4037
      %v4039 = vmax.f32 %v3906, %v3908
      %4040 = vmax.xlane.f32.xlu0 %v4039
      %v4041 = vpop.xlane.xlu0 %4040
      %v4042 = vmax.f32 %v3912, %v3914
      %4043 = vmax.xlane.f32.xlu0 %v4042
      %v4044 = vpop.xlane.xlu0 %4043
      %v4045 = vmax.f32 %v3918, %v3920
      %4046 = vmax.xlane.f32.xlu0 %v4045
      %v4047 = vpop.xlane.xlu0 %4046
      %v4048 = vmax.f32 %v3924, %v3926
      %4049 = vmax.xlane.f32.xlu0 %v4048
      %v4050 = vpop.xlane.xlu0 %4049
      %v4051 = vmax.f32 %v3930, %v3932
      %4052 = vmax.xlane.f32.xlu0 %v4051
      %v4053 = vpop.xlane.xlu0 %4052
      %v4054 = vmax.f32 %v3936, %v3938
      %4055 = vmax.xlane.f32.xlu0 %v4054
      %v4056 = vpop.xlane.xlu0 %4055
      %v4057 = vmax.f32 %v3942, %v3944
      %4058 = vmax.xlane.f32.xlu0 %v4057
      %v4059 = vpop.xlane.xlu0 %4058
      %v4060 = vmax.f32 %v3948, %v3950
      %4061 = vmax.xlane.f32.xlu0 %v4060
      %v4062 = vpop.xlane.xlu0 %4061
      %v4063 = vmax.f32 %v3954, %v3956
      %4064 = vmax.xlane.f32.xlu0 %v4063
      %v4065 = vpop.xlane.xlu0 %4064
      %v4066 = vmax.f32 %v3960, %v3962
      %4067 = vmax.xlane.f32.xlu0 %v4066
      %v4068 = vpop.xlane.xlu0 %4067
      %v4069 = vmax.f32 %v3966, %v3968
      %4070 = vmax.xlane.f32.xlu0 %v4069
      %v4071 = vpop.xlane.xlu0 %4070
      %v4072 = vmax.f32 %v3972, %v3974
      %4073 = vmax.xlane.f32.xlu0 %v4072
      %v4074 = vpop.xlane.xlu0 %4073
      %v4075 = vmax.f32 %v3978, %v3980
      %4076 = vmax.xlane.f32.xlu0 %v4075
      %v4077 = vpop.xlane.xlu0 %4076
      %v4078 = vsub.f32 %v3792, %v3984
      %v4079 = vsub.f32 %v3794, %v3984
      %v4080 = vsub.f32 %v3798, %v3987
      %v4081 = vsub.f32 %v3800, %v3987
      %v4082 = vsub.f32 %v3804, %v3990
      %v4083 = vsub.f32 %v3806, %v3990
      %v4084 = vsub.f32 %v3810, %v3993
      %v4085 = vsub.f32 %v3812, %v3993
      %v4086 = vsub.f32 %v3816, %v3996
      %v4087 = vsub.f32 %v3818, %v3996
      %v4088 = vsub.f32 %v3822, %v3999
      %v4089 = vsub.f32 %v3824, %v3999
      %v4090 = vsub.f32 %v3828, %v4002
      %v4091 = vsub.f32 %v3830, %v4002
      %v4092 = vsub.f32 %v3834, %v4005
      %v4093 = vsub.f32 %v3836, %v4005
      %v4094 = vsub.f32 %v3840, %v4008
      %v4095 = vsub.f32 %v3842, %v4008
      %v4096 = vsub.f32 %v3846, %v4011
      %v4097 = vsub.f32 %v3848, %v4011
      %v4098 = vsub.f32 %v3852, %v4014
      %v4099 = vsub.f32 %v3854, %v4014
      %v4100 = vsub.f32 %v3858, %v4017
      %v4101 = vsub.f32 %v3860, %v4017
      %v4102 = vsub.f32 %v3864, %v4020
      %v4103 = vsub.f32 %v3866, %v4020
      %v4104 = vsub.f32 %v3870, %v4023
      %v4105 = vsub.f32 %v3872, %v4023
      %v4106 = vsub.f32 %v3876, %v4026
      %v4107 = vsub.f32 %v3878, %v4026
      %v4108 = vsub.f32 %v3882, %v4029
      %v4109 = vsub.f32 %v3884, %v4029
      %v4110 = vsub.f32 %v3888, %v4032
      %v4111 = vsub.f32 %v3890, %v4032
      %v4112 = vsub.f32 %v3894, %v4035
      %v4113 = vsub.f32 %v3896, %v4035
      %v4114 = vsub.f32 %v3900, %v4038
      %v4115 = vsub.f32 %v3902, %v4038
      %v4116 = vsub.f32 %v3906, %v4041
      %v4117 = vsub.f32 %v3908, %v4041
      %v4118 = vsub.f32 %v3912, %v4044
      %v4119 = vsub.f32 %v3914, %v4044
      %v4120 = vsub.f32 %v3918, %v4047
      %v4121 = vsub.f32 %v3920, %v4047
      %v4122 = vsub.f32 %v3924, %v4050
      %v4123 = vsub.f32 %v3926, %v4050
      %v4124 = vsub.f32 %v3930, %v4053
      %v4125 = vsub.f32 %v3932, %v4053
      %v4126 = vsub.f32 %v3936, %v4056
      %v4127 = vsub.f32 %v3938, %v4056
      %v4128 = vsub.f32 %v3942, %v4059
      %v4129 = vsub.f32 %v3944, %v4059
      %v4130 = vsub.f32 %v3948, %v4062
      %v4131 = vsub.f32 %v3950, %v4062
      %v4132 = vsub.f32 %v3954, %v4065
      %v4133 = vsub.f32 %v3956, %v4065
      %v4134 = vsub.f32 %v3960, %v4068
      %v4135 = vsub.f32 %v3962, %v4068
      %v4136 = vsub.f32 %v3966, %v4071
      %v4137 = vsub.f32 %v3968, %v4071
      %v4138 = vsub.f32 %v3972, %v4074
      %v4139 = vsub.f32 %v3974, %v4074
      %v4140 = vsub.f32 %v3978, %v4077
      %v4141 = vsub.f32 %v3980, %v4077
      %v4142 = vmul.f32 %v4078, 1.442695
      %v4143 = vpow.pop %v4142
      %v4144 = vmul.f32 %v4079, 1.442695
      %v4145 = vpow.pop %v4144
      %v4146 = vmul.f32 %v4080, 1.442695
      %v4147 = vpow.pop %v4146
      %v4148 = vmul.f32 %v4081, 1.442695
      %v4149 = vpow.pop %v4148
      %v4150 = vmul.f32 %v4082, 1.442695
      %v4151 = vpow.pop %v4150
      %v4152 = vmul.f32 %v4083, 1.442695
      %v4153 = vpow.pop %v4152
      %v4154 = vmul.f32 %v4084, 1.442695
      %v4155 = vpow.pop %v4154
      %v4156 = vmul.f32 %v4085, 1.442695
      %v4157 = vpow.pop %v4156
      %v4158 = vmul.f32 %v4086, 1.442695
      %v4159 = vpow.pop %v4158
      %v4160 = vmul.f32 %v4087, 1.442695
      %v4161 = vpow.pop %v4160
      %v4162 = vmul.f32 %v4088, 1.442695
      %v4163 = vpow.pop %v4162
      %v4164 = vmul.f32 %v4089, 1.442695
      %v4165 = vpow.pop %v4164
      %v4166 = vmul.f32 %v4090, 1.442695
      %v4167 = vpow.pop %v4166
      %v4168 = vmul.f32 %v4091, 1.442695
      %v4169 = vpow.pop %v4168
      %v4170 = vmul.f32 %v4092, 1.442695
      %v4171 = vpow.pop %v4170
      %v4172 = vmul.f32 %v4093, 1.442695
      %v4173 = vpow.pop %v4172
      %v4174 = vmul.f32 %v4094, 1.442695
      %v4175 = vpow.pop %v4174
      %v4176 = vmul.f32 %v4095, 1.442695
      %v4177 = vpow.pop %v4176
      %v4178 = vmul.f32 %v4096, 1.442695
      %v4179 = vpow.pop %v4178
      %v4180 = vmul.f32 %v4097, 1.442695
      %v4181 = vpow.pop %v4180
      %v4182 = vmul.f32 %v4098, 1.442695
      %v4183 = vpow.pop %v4182
      %v4184 = vmul.f32 %v4099, 1.442695
      %v4185 = vpow.pop %v4184
      %v4186 = vmul.f32 %v4100, 1.442695
      %v4187 = vpow.pop %v4186
      %v4188 = vmul.f32 %v4101, 1.442695
      %v4189 = vpow.pop %v4188
      %v4190 = vmul.f32 %v4102, 1.442695
      %v4191 = vpow.pop %v4190
      %v4192 = vmul.f32 %v4103, 1.442695
      %v4193 = vpow.pop %v4192
      %v4194 = vmul.f32 %v4104, 1.442695
      %v4195 = vpow.pop %v4194
      %v4196 = vmul.f32 %v4105, 1.442695
      %v4197 = vpow.pop %v4196
      %v4198 = vmul.f32 %v4106, 1.442695
      %v4199 = vpow.pop %v4198
      %v4200 = vmul.f32 %v4107, 1.442695
      %v4201 = vpow.pop %v4200
      %v4202 = vmul.f32 %v4108, 1.442695
      %v4203 = vpow.pop %v4202
      %v4204 = vmul.f32 %v4109, 1.442695
      %v4205 = vpow.pop %v4204
      %v4206 = vmul.f32 %v4110, 1.442695
      %v4207 = vpow.pop %v4206
      %v4208 = vmul.f32 %v4111, 1.442695
      %v4209 = vpow.pop %v4208
      %v4210 = vmul.f32 %v4112, 1.442695
      %v4211 = vpow.pop %v4210
      %v4212 = vmul.f32 %v4113, 1.442695
      %v4213 = vpow.pop %v4212
      %v4214 = vmul.f32 %v4114, 1.442695
      %v4215 = vpow.pop %v4214
      %v4216 = vmul.f32 %v4115, 1.442695
      %v4217 = vpow.pop %v4216
      %v4218 = vmul.f32 %v4116, 1.442695
      %v4219 = vpow.pop %v4218
      %v4220 = vmul.f32 %v4117, 1.442695
      %v4221 = vpow.pop %v4220
      %v4222 = vmul.f32 %v4118, 1.442695
      %v4223 = vpow.pop %v4222
      %v4224 = vmul.f32 %v4119, 1.442695
      %v4225 = vpow.pop %v4224
      %v4226 = vmul.f32 %v4120, 1.442695
      %v4227 = vpow.pop %v4226
      %v4228 = vmul.f32 %v4121, 1.442695
      %v4229 = vpow.pop %v4228
      %v4230 = vmul.f32 %v4122, 1.442695
      %v4231 = vpow.pop %v4230
      %v4232 = vmul.f32 %v4123, 1.442695
      %v4233 = vpow.pop %v4232
      %v4234 = vmul.f32 %v4124, 1.442695
      %v4235 = vpow.pop %v4234
      %v4236 = vmul.f32 %v4125, 1.442695
      %v4237 = vpow.pop %v4236
      %v4238 = vmul.f32 %v4126, 1.442695
      %v4239 = vpow.pop %v4238
      %v4240 = vmul.f32 %v4127, 1.442695
      %v4241 = vpow.pop %v4240
      %v4242 = vmul.f32 %v4128, 1.442695
      %v4243 = vpow.pop %v4242
      %v4244 = vmul.f32 %v4129, 1.442695
      %v4245 = vpow.pop %v4244
      %v4246 = vmul.f32 %v4130, 1.442695
      %v4247 = vpow.pop %v4246
      %v4248 = vmul.f32 %v4131, 1.442695
      %v4249 = vpow.pop %v4248
      %v4250 = vmul.f32 %v4132, 1.442695
      %v4251 = vpow.pop %v4250
      %v4252 = vmul.f32 %v4133, 1.442695
      %v4253 = vpow.pop %v4252
      %v4254 = vmul.f32 %v4134, 1.442695
      %v4255 = vpow.pop %v4254
      %v4256 = vmul.f32 %v4135, 1.442695
      %v4257 = vpow.pop %v4256
      %v4258 = vmul.f32 %v4136, 1.442695
      %v4259 = vpow.pop %v4258
      %v4260 = vmul.f32 %v4137, 1.442695
      %v4261 = vpow.pop %v4260
      %v4262 = vmul.f32 %v4138, 1.442695
      %v4263 = vpow.pop %v4262
      %v4264 = vmul.f32 %v4139, 1.442695
      %v4265 = vpow.pop %v4264
      %v4266 = vmul.f32 %v4140, 1.442695
      %v4267 = vpow.pop %v4266
      %v4268 = vmul.f32 %v4141, 1.442695
      %v4269 = vpow.pop %v4268
      %v4270 = vadd.f32 %v4143, %v4145
      %4271 = vadd.xlane.f32.xlu0 %v4270
      %v4272 = vpop.xlane.xlu0 %4271
      %v4273 = vadd.f32 %v4147, %v4149
      %4274 = vadd.xlane.f32.xlu0 %v4273
      %v4275 = vpop.xlane.xlu0 %4274
      %v4276 = vadd.f32 %v4151, %v4153
      %4277 = vadd.xlane.f32.xlu0 %v4276
      %v4278 = vpop.xlane.xlu0 %4277
      %v4279 = vadd.f32 %v4155, %v4157
      %4280 = vadd.xlane.f32.xlu0 %v4279
      %v4281 = vpop.xlane.xlu0 %4280
      %v4282 = vadd.f32 %v4159, %v4161
      %4283 = vadd.xlane.f32.xlu0 %v4282
      %v4284 = vpop.xlane.xlu0 %4283
      %v4285 = vadd.f32 %v4163, %v4165
      %4286 = vadd.xlane.f32.xlu0 %v4285
      %v4287 = vpop.xlane.xlu0 %4286
      %v4288 = vadd.f32 %v4167, %v4169
      %4289 = vadd.xlane.f32.xlu0 %v4288
      %v4290 = vpop.xlane.xlu0 %4289
      %v4291 = vadd.f32 %v4171, %v4173
      %4292 = vadd.xlane.f32.xlu0 %v4291
      %v4293 = vpop.xlane.xlu0 %4292
      %v4294 = vadd.f32 %v4175, %v4177
      %4295 = vadd.xlane.f32.xlu0 %v4294
      %v4296 = vpop.xlane.xlu0 %4295
      %v4297 = vadd.f32 %v4179, %v4181
      %4298 = vadd.xlane.f32.xlu0 %v4297
      %v4299 = vpop.xlane.xlu0 %4298
      %v4300 = vadd.f32 %v4183, %v4185
      %4301 = vadd.xlane.f32.xlu0 %v4300
      %v4302 = vpop.xlane.xlu0 %4301
      %v4303 = vadd.f32 %v4187, %v4189
      %4304 = vadd.xlane.f32.xlu0 %v4303
      %v4305 = vpop.xlane.xlu0 %4304
      %v4306 = vadd.f32 %v4191, %v4193
      %4307 = vadd.xlane.f32.xlu0 %v4306
      %v4308 = vpop.xlane.xlu0 %4307
      %v4309 = vadd.f32 %v4195, %v4197
      %4310 = vadd.xlane.f32.xlu0 %v4309
      %v4311 = vpop.xlane.xlu0 %4310
      %v4312 = vadd.f32 %v4199, %v4201
      %4313 = vadd.xlane.f32.xlu0 %v4312
      %v4314 = vpop.xlane.xlu0 %4313
      %v4315 = vadd.f32 %v4203, %v4205
      %4316 = vadd.xlane.f32.xlu0 %v4315
      %v4317 = vpop.xlane.xlu0 %4316
      %v4318 = vadd.f32 %v4207, %v4209
      %4319 = vadd.xlane.f32.xlu0 %v4318
      %v4320 = vpop.xlane.xlu0 %4319
      %v4321 = vadd.f32 %v4211, %v4213
      %4322 = vadd.xlane.f32.xlu0 %v4321
      %v4323 = vpop.xlane.xlu0 %4322
      %v4324 = vadd.f32 %v4215, %v4217
      %4325 = vadd.xlane.f32.xlu0 %v4324
      %v4326 = vpop.xlane.xlu0 %4325
      %v4327 = vadd.f32 %v4219, %v4221
      %4328 = vadd.xlane.f32.xlu0 %v4327
      %v4329 = vpop.xlane.xlu0 %4328
      %v4330 = vadd.f32 %v4223, %v4225
      %4331 = vadd.xlane.f32.xlu0 %v4330
      %v4332 = vpop.xlane.xlu0 %4331
      %v4333 = vadd.f32 %v4227, %v4229
      %4334 = vadd.xlane.f32.xlu0 %v4333
      %v4335 = vpop.xlane.xlu0 %4334
      %v4336 = vadd.f32 %v4231, %v4233
      %4337 = vadd.xlane.f32.xlu0 %v4336
      %v4338 = vpop.xlane.xlu0 %4337
      %v4339 = vadd.f32 %v4235, %v4237
      %4340 = vadd.xlane.f32.xlu0 %v4339
      %v4341 = vpop.xlane.xlu0 %4340
      %v4342 = vadd.f32 %v4239, %v4241
      %4343 = vadd.xlane.f32.xlu0 %v4342
      %v4344 = vpop.xlane.xlu0 %4343
      %v4345 = vadd.f32 %v4243, %v4245
      %4346 = vadd.xlane.f32.xlu0 %v4345
      %v4347 = vpop.xlane.xlu0 %4346
      %v4348 = vadd.f32 %v4247, %v4249
      %4349 = vadd.xlane.f32.xlu0 %v4348
      %v4350 = vpop.xlane.xlu0 %4349
      %v4351 = vadd.f32 %v4251, %v4253
      %4352 = vadd.xlane.f32.xlu0 %v4351
      %v4353 = vpop.xlane.xlu0 %4352
      %v4354 = vadd.f32 %v4255, %v4257
      %4355 = vadd.xlane.f32.xlu0 %v4354
      %v4356 = vpop.xlane.xlu0 %4355
      %v4357 = vadd.f32 %v4259, %v4261
      %4358 = vadd.xlane.f32.xlu0 %v4357
      %v4359 = vpop.xlane.xlu0 %4358
      %v4360 = vadd.f32 %v4263, %v4265
      %4361 = vadd.xlane.f32.xlu0 %v4360
      %v4362 = vpop.xlane.xlu0 %4361
      %v4363 = vadd.f32 %v4267, %v4269
      %4364 = vadd.xlane.f32.xlu0 %v4363
      %v4365 = vpop.xlane.xlu0 %4364
      %v4366 = vrcp.pop %v4272
      %v4367 = vmul.f32 %v4143, %v4366
      %v4368 = vmul.f32 %v4145, %v4366
      %v4369 = vrcp.pop %v4275
      %v4370 = vmul.f32 %v4147, %v4369
      %v4371 = vmul.f32 %v4149, %v4369
      %v4372 = vrcp.pop %v4278
      %v4373 = vmul.f32 %v4151, %v4372
      %v4374 = vmul.f32 %v4153, %v4372
      %v4375 = vrcp.pop %v4281
      %v4376 = vmul.f32 %v4155, %v4375
      %v4377 = vmul.f32 %v4157, %v4375
      %v4378 = vrcp.pop %v4284
      %v4379 = vmul.f32 %v4159, %v4378
      %v4380 = vmul.f32 %v4161, %v4378
      %v4381 = vrcp.pop %v4287
      %v4382 = vmul.f32 %v4163, %v4381
      %v4383 = vmul.f32 %v4165, %v4381
      %v4384 = vrcp.pop %v4290
      %v4385 = vmul.f32 %v4167, %v4384
      %v4386 = vmul.f32 %v4169, %v4384
      %v4387 = vrcp.pop %v4293
      %v4388 = vmul.f32 %v4171, %v4387
      %v4389 = vmul.f32 %v4173, %v4387
      %v4390 = vrcp.pop %v4296
      %v4391 = vmul.f32 %v4175, %v4390
      %v4392 = vmul.f32 %v4177, %v4390
      %v4393 = vrcp.pop %v4299
      %v4394 = vmul.f32 %v4179, %v4393
      %v4395 = vmul.f32 %v4181, %v4393
      %v4396 = vrcp.pop %v4302
      %v4397 = vmul.f32 %v4183, %v4396
      %v4398 = vmul.f32 %v4185, %v4396
      %v4399 = vrcp.pop %v4305
      %v4400 = vmul.f32 %v4187, %v4399
      %v4401 = vmul.f32 %v4189, %v4399
      %v4402 = vrcp.pop %v4308
      %v4403 = vmul.f32 %v4191, %v4402
      %v4404 = vmul.f32 %v4193, %v4402
      %v4405 = vrcp.pop %v4311
      %v4406 = vmul.f32 %v4195, %v4405
      %v4407 = vmul.f32 %v4197, %v4405
      %v4408 = vrcp.pop %v4314
      %v4409 = vmul.f32 %v4199, %v4408
      %v4410 = vmul.f32 %v4201, %v4408
      %v4411 = vrcp.pop %v4317
      %v4412 = vmul.f32 %v4203, %v4411
      %v4413 = vmul.f32 %v4205, %v4411
      %v4414 = vrcp.pop %v4320
      %v4415 = vmul.f32 %v4207, %v4414
      %v4416 = vmul.f32 %v4209, %v4414
      %v4417 = vrcp.pop %v4323
      %v4418 = vmul.f32 %v4211, %v4417
      %v4419 = vmul.f32 %v4213, %v4417
      %v4420 = vrcp.pop %v4326
      %v4421 = vmul.f32 %v4215, %v4420
      %v4422 = vmul.f32 %v4217, %v4420
      %v4423 = vrcp.pop %v4329
      %v4424 = vmul.f32 %v4219, %v4423
      %v4425 = vmul.f32 %v4221, %v4423
      %v4426 = vrcp.pop %v4332
      %v4427 = vmul.f32 %v4223, %v4426
      %v4428 = vmul.f32 %v4225, %v4426
      %v4429 = vrcp.pop %v4335
      %v4430 = vmul.f32 %v4227, %v4429
      %v4431 = vmul.f32 %v4229, %v4429
      %v4432 = vrcp.pop %v4338
      %v4433 = vmul.f32 %v4231, %v4432
      %v4434 = vmul.f32 %v4233, %v4432
      %v4435 = vrcp.pop %v4341
      %v4436 = vmul.f32 %v4235, %v4435
      %v4437 = vmul.f32 %v4237, %v4435
      %v4438 = vrcp.pop %v4344
      %v4439 = vmul.f32 %v4239, %v4438
      %v4440 = vmul.f32 %v4241, %v4438
      %v4441 = vrcp.pop %v4347
      %v4442 = vmul.f32 %v4243, %v4441
      %v4443 = vmul.f32 %v4245, %v4441
      %v4444 = vrcp.pop %v4350
      %v4445 = vmul.f32 %v4247, %v4444
      %v4446 = vmul.f32 %v4249, %v4444
      %v4447 = vrcp.pop %v4353
      %v4448 = vmul.f32 %v4251, %v4447
      %v4449 = vmul.f32 %v4253, %v4447
      %v4450 = vrcp.pop %v4356
      %v4451 = vmul.f32 %v4255, %v4450
      %v4452 = vmul.f32 %v4257, %v4450
      %v4453 = vrcp.pop %v4359
      %v4454 = vmul.f32 %v4259, %v4453
      %v4455 = vmul.f32 %v4261, %v4453
      %v4456 = vrcp.pop %v4362
      %v4457 = vmul.f32 %v4263, %v4456
      %v4458 = vmul.f32 %v4265, %v4456
      %v4459 = vrcp.pop %v4365
      %v4460 = vmul.f32 %v4267, %v4459
      %v4461 = vmul.f32 %v4269, %v4459
      %4462 = vmatprep.subr.mxu0 %v4413
      %4463 = vmatpush1.xpose.msra.mxu0 %v4412
      %4464 = vmatprep.subr.mxu0 %v4410
      %4465 = vmatpush1.xpose.msra.mxu0 %v4409
      %4466 = vmatprep.subr.mxu0 %v4407
      %4467 = vmatpush1.xpose.msra.mxu0 %v4406
      %4468 = vmatprep.subr.mxu0 %v4404
      %4469 = vmatpush1.xpose.msra.mxu0 %v4403
      %4470 = vmatprep.subr.mxu0 %v4401
      %4471 = vmatpush1.xpose.msra.mxu0 %v4400
      %4472 = vmatprep.subr.mxu0 %v4398
      %4473 = vmatpush1.xpose.msra.mxu0 %v4397
      %4474 = vmatprep.subr.mxu0 %v4395
      %4475 = vmatpush1.xpose.msra.mxu0 %v4394
      %4476 = vmatprep.subr.mxu0 %v4392
      %4477 = vmatpush1.xpose.msra.mxu0 %v4391
      %4478 = vmatprep.subr.mxu0 %v4389
      %4479 = vmatpush1.xpose.msra.mxu0 %v4388
      %4480 = vmatprep.subr.mxu0 %v4386
      %4481 = vmatpush1.xpose.msra.mxu0 %v4385
      %4482 = vmatprep.subr.mxu0 %v4383
      %4483 = vmatpush1.xpose.msra.mxu0 %v4382
      %4484 = vmatprep.subr.mxu0 %v4380
      %4485 = vmatpush1.xpose.msra.mxu0 %v4379
      %4486 = vmatprep.subr.mxu0 %v4377
      %4487 = vmatpush1.xpose.msra.mxu0 %v4376
      %4488 = vmatprep.subr.mxu0 %v4374
      %4489 = vmatpush1.xpose.msra.mxu0 %v4373
      %4490 = vmatprep.subr.mxu0 %v4371
      %4491 = vmatpush1.xpose.msra.mxu0 %v4370
      %4492 = vmatprep.subr.mxu0 %v4368
      %4493 = vmatpush1.xpose.msra.mxu0 %v4367
      %4494 = vmatprep.subr.mxu0 %v4461
      %4495 = vmatpush2.xpose.msra.mxu0 %v4460
      %4496 = vmatprep.subr.mxu0 %v4458
      %4497 = vmatpush2.xpose.msra.mxu0 %v4457
      %4498 = vmatprep.subr.mxu0 %v4455
      %4499 = vmatpush2.xpose.msra.mxu0 %v4454
      %4500 = vmatprep.subr.mxu0 %v4452
      %4501 = vmatpush2.xpose.msra.mxu0 %v4451
      %4502 = vmatprep.subr.mxu0 %v4449
      %4503 = vmatpush2.xpose.msra.mxu0 %v4448
      %4504 = vmatprep.subr.mxu0 %v4446
      %4505 = vmatpush2.xpose.msra.mxu0 %v4445
      %4506 = vmatprep.subr.mxu0 %v4443
      %4507 = vmatpush2.xpose.msra.mxu0 %v4442
      %4508 = vmatprep.subr.mxu0 %v4440
      %4509 = vmatpush2.xpose.msra.mxu0 %v4439
      %4510 = vmatprep.subr.mxu0 %v4437
      %4511 = vmatpush2.xpose.msra.mxu0 %v4436
      %4512 = vmatprep.subr.mxu0 %v4434
      %4513 = vmatpush2.xpose.msra.mxu0 %v4433
      %4514 = vmatprep.subr.mxu0 %v4431
      %4515 = vmatpush2.xpose.msra.mxu0 %v4430
      %4516 = vmatprep.subr.mxu0 %v4428
      %4517 = vmatpush2.xpose.msra.mxu0 %v4427
      %4518 = vmatprep.subr.mxu0 %v4425
      %4519 = vmatpush2.xpose.msra.mxu0 %v4424
      %4520 = vmatprep.subr.mxu0 %v4422
      %4521 = vmatpush2.xpose.msra.mxu0 %v4421
      %4522 = vmatprep.subr.mxu0 %v4419
      %4523 = vmatpush2.xpose.msra.mxu0 %v4418
      %4524 = vmatprep.subr.mxu0 %v4416
      %4525 = vmatpush2.xpose.msra.mxu0 %v4415
      %4526 = vmatprep.mubr.f32.mxu0 %v3545
      %4527 = vmatmul.mubr.f32.gmra.mxu0 %v3543
      %v4528 = vpop.f32.mrf.mxu0
      %v4529 = vadd.f32 0.0, %v4528
      %v4530 = vpop.f32.mrf.mxu0
      %v4531 = vadd.f32 0.0, %v4530
      %4532 = vmatprep.mubr.f32.mxu0 %v3551
      %4533 = vmatmul.mubr.f32.gmra.mxu0 %v3549
      %v4534 = vpop.f32.mrf.mxu0
      %v4535 = vadd.f32 0.0, %v4534
      %v4536 = vpop.f32.mrf.mxu0
      %v4537 = vadd.f32 0.0, %v4536
      %4538 = vmatprep.mubr.f32.mxu0 %v3557
      %4539 = vmatmul.mubr.f32.gmra.mxu0 %v3555
      %v4540 = vpop.f32.mrf.mxu0
      %v4541 = vadd.f32 0.0, %v4540
      %v4542 = vpop.f32.mrf.mxu0
      %v4543 = vadd.f32 0.0, %v4542
      %4544 = vmatprep.mubr.f32.mxu0 %v3563
      %4545 = vmatmul.mubr.f32.gmra.mxu0 %v3561
      %v4546 = vpop.f32.mrf.mxu0
      %v4547 = vadd.f32 0.0, %v4546
      %v4548 = vpop.f32.mrf.mxu0
      %v4549 = vadd.f32 0.0, %v4548
      %4550 = vdwg.mxu0
      %v4551 = vld [vmem:[%s16] sm:$0xff]
      %v4552 = vld [vmem:[%s16 + $0x8] sm:$0xff]
      %v4553 = vld [vmem:[%s16 + $0x10] sm:$0xff]
      %v4554 = vld [vmem:[%s16 + $0x18] sm:$0xff]
      %v4555 = vld [vmem:[%s17] sm:$0xff]
      %v4556 = vld [vmem:[%s17 + $0x8] sm:$0xff]
      %v4557 = vld [vmem:[%s17 + $0x10] sm:$0xff]
      %v4558 = vld [vmem:[%s17 + $0x18] sm:$0xff]
      %4560 = vset.pattern.permute.xlu0 0
      %4561 = vperm.xlu0 %4560, %v4555
      %v4562 = vpop.permute.xlu0 %4561
      %4565 = vset.pattern.permute.xlu0 0
      %4566 = vperm.xlu0 %4565, %v4556
      %v4567 = vpop.permute.xlu0 %4566
      %4570 = vset.pattern.permute.xlu0 0
      %4571 = vperm.xlu0 %4570, %v4557
      %v4572 = vpop.permute.xlu0 %4571
      %4575 = vset.pattern.permute.xlu0 0
      %4576 = vperm.xlu0 %4575, %v4558
      %v4577 = vpop.permute.xlu0 %4576
      %v4580 = vsel %vm632, %v4551, 0
      %v4583 = vsel %vm632, %v4552, 0
      %v4586 = vsel %vm632, %v4553, 0
      %v4589 = vsel %vm632, %v4554, 0
      %4591 = vmatprep.subr.mxu0 0.0
      %4592 = vmatpush1.msra.mxu0 0.0
      %4593 = vmatprep.subr.mxu0 0.0
      %4594 = vmatpush1.msra.mxu0 0.0
      %4595 = vmatprep.subr.mxu0 0.0
      %4596 = vmatpush1.msra.mxu0 0.0
      %4597 = vmatprep.subr.mxu0 0.0
      %4598 = vmatpush1.msra.mxu0 0.0
      %4599 = vmatprep.subr.mxu0 0.0
      %4600 = vmatpush1.msra.mxu0 0.0
      %4601 = vmatprep.subr.mxu0 0.0
      %4602 = vmatpush1.msra.mxu0 0.0
      %4603 = vmatprep.subr.mxu0 0.0
      %4604 = vmatpush1.msra.mxu0 0.0
      %4605 = vmatprep.subr.mxu0 0.0
      %4606 = vmatpush1.msra.mxu0 0.0
      %4607 = vmatprep.subr.mxu0 0.0
      %4608 = vmatpush1.msra.mxu0 0.0
      %4609 = vmatprep.subr.mxu0 0.0
      %4610 = vmatpush1.msra.mxu0 0.0
      %4611 = vmatprep.subr.mxu0 0.0
      %4612 = vmatpush1.msra.mxu0 0.0
      %4613 = vmatprep.subr.mxu0 0.0
      %4614 = vmatpush1.msra.mxu0 0.0
      %4615 = vmatprep.subr.mxu0 %v4549
      %4616 = vmatpush1.msra.mxu0 %v4547
      %4617 = vmatprep.subr.mxu0 %v4543
      %4618 = vmatpush1.msra.mxu0 %v4541
      %4619 = vmatprep.subr.mxu0 %v4537
      %4620 = vmatpush1.msra.mxu0 %v4535
      %4621 = vmatprep.subr.mxu0 %v4531
      %4622 = vmatpush1.msra.mxu0 %v4529
      %4623 = vmatprep.subr.mxu0 0.0
      %4624 = vmatpush2.msra.mxu0 0.0
      %4625 = vmatprep.subr.mxu0 0.0
      %4626 = vmatpush2.msra.mxu0 0.0
      %4627 = vmatprep.subr.mxu0 0.0
      %4628 = vmatpush2.msra.mxu0 0.0
      %4629 = vmatprep.subr.mxu0 0.0
      %4630 = vmatpush2.msra.mxu0 0.0
      %4631 = vmatprep.subr.mxu0 0.0
      %4632 = vmatpush2.msra.mxu0 0.0
      %4633 = vmatprep.subr.mxu0 0.0
      %4634 = vmatpush2.msra.mxu0 0.0
      %4635 = vmatprep.subr.mxu0 0.0
      %4636 = vmatpush2.msra.mxu0 0.0
      %4637 = vmatprep.subr.mxu0 0.0
      %4638 = vmatpush2.msra.mxu0 0.0
      %4639 = vmatprep.subr.mxu0 0.0
      %4640 = vmatpush2.msra.mxu0 0.0
      %4641 = vmatprep.subr.mxu0 0.0
      %4642 = vmatpush2.msra.mxu0 0.0
      %4643 = vmatprep.subr.mxu0 0.0
      %4644 = vmatpush2.msra.mxu0 0.0
      %4645 = vmatprep.subr.mxu0 0.0
      %4646 = vmatpush2.msra.mxu0 0.0
      %4647 = vmatprep.subr.mxu0 0.0
      %4648 = vmatpush2.msra.mxu0 0.0
      %4649 = vmatprep.subr.mxu0 0.0
      %4650 = vmatpush2.msra.mxu0 0.0
      %4651 = vmatprep.subr.mxu0 0.0
      %4652 = vmatpush2.msra.mxu0 0.0
      %4653 = vmatprep.subr.mxu0 0.0
      %4654 = vmatpush2.msra.mxu0 0.0
      %4655 = vmatprep.mubr.f32.mxu0 0.0
      %4656 = vmatmul.mubr.f32.gmra.mxu0 %v4580
      %v4657 = vpop.f32.mrf.mxu0
      %v4658 = vadd.f32 %v4562, %v4657
      %v4659 = vpop.f32.mrf.mxu0
      %v4660 = vadd.f32 %v4562, %v4659
      %4661 = vmatprep.mubr.f32.mxu0 0.0
      %4662 = vmatmul.mubr.f32.gmra.mxu0 %v4583
      %v4663 = vpop.f32.mrf.mxu0
      %v4664 = vadd.f32 %v4567, %v4663
      %v4665 = vpop.f32.mrf.mxu0
      %v4666 = vadd.f32 %v4567, %v4665
      %4667 = vmatprep.mubr.f32.mxu0 0.0
      %4668 = vmatmul.mubr.f32.gmra.mxu0 %v4586
      %v4669 = vpop.f32.mrf.mxu0
      %v4670 = vadd.f32 %v4572, %v4669
      %v4671 = vpop.f32.mrf.mxu0
      %v4672 = vadd.f32 %v4572, %v4671
      %4673 = vmatprep.mubr.f32.mxu0 0.0
      %4674 = vmatmul.mubr.f32.gmra.mxu0 %v4589
      %v4675 = vpop.f32.mrf.mxu0
      %v4676 = vadd.f32 %v4577, %v4675
      %v4677 = vpop.f32.mrf.mxu0
      %v4678 = vadd.f32 %v4577, %v4677
      %4679 = vdwg.mxu0
      %v4680 = vadd.f32 %v4658, %v3018
      %v4681 = vadd.f32 %v4660, %v3019
      %v4682 = vadd.f32 %v4664, %v3020
      %v4683 = vadd.f32 %v4666, %v3021
      %v4684 = vadd.f32 %v4670, %v3022
      %v4685 = vadd.f32 %v4672, %v3023
      %v4686 = vadd.f32 %v4676, %v3024
      %v4687 = vadd.f32 %v4678, %v3025
      %4688 = vst [vmem:[%s595] sm:$0xff] %v4680
      %4689 = vst [vmem:[%s595 + $0x8] sm:$0xff] %v4681
      %4690 = vst [vmem:[%s595 + $0x10] sm:$0xff] %v4682
      %4691 = vst [vmem:[%s595 + $0x18] sm:$0xff] %v4683
      %4692 = vst [vmem:[%s595 + $0x20] sm:$0xff] %v4684
      %4693 = vst [vmem:[%s595 + $0x28] sm:$0xff] %v4685
      %4694 = vst [vmem:[%s595 + $0x30] sm:$0xff] %v4686
      %4695 = vst [vmem:[%s595 + $0x38] sm:$0xff] %v4687
      %p4696 = scmp.lt.s32.totalorder %s29, 1
      %s4697 = scalar_select %p4696, %s29, 1
      %s4698 = smul.addr %s4697, 8
      %s4699 = smul.addr %s4698, 8
      %s4700 = scalar_lea.vmem %s18, %s4699
      // Predicated region
      $region93: #{resnet_block_with_attn_forward.1} parent=91 // pred_check
        %p4701 = pneg %p435
      $region94: #{resnet_block_with_attn_forward.1} parent=91 // pred_check_branch
        %4703 = sbr.rel (%p4701) target = $region96
      $region95: #{resnet_block_with_attn_forward.1} parent=91 // pred_region
        _
      $region96: #{resnet_block_with_attn_forward.1} parent=91 // pred_fallthru
        _
    $region92: #{resnet_block_with_attn_forward.1} parent=5 // pred_fallthru
      _
    %p4704 = scmp.le.s32.totalorder 2, %s24
    // Predicated region
    $region97: #{resnet_block_with_attn_forward.1} parent=5 // pred_check
      %p4705 = pneg %p4704
    $region98: #{resnet_block_with_attn_forward.1} parent=5 // pred_check_branch
      %4707 = sbr.rel (%p4705) target = $region100
    $region99: #{resnet_block_with_attn_forward.1} parent=5 // pred_region
      %s4708 = ssub.s32 %s24, 2
      // Predicated region
      $region101: #{resnet_block_with_attn_forward.1} parent=99 // pred_check
        %p4709 = pneg %p441
      $region102: #{resnet_block_with_attn_forward.1} parent=99 // pred_check_branch
        %4711 = sbr.rel (%p4709) target = $region104
      $region103: #{resnet_block_with_attn_forward.1} parent=99 // pred_region
        %p4712 = scmp.lt.s32.totalorder %s30, 1
        %s4713 = scalar_select %p4712, %s30, 1
        %s4714 = smul.addr %s4713, 8
        %s4715 = smul.addr %s4714, 8
        %s4716 = scalar_lea.vmem %s18, %s4715
      $region104: #{resnet_block_with_attn_forward.1} parent=99 // pred_fallthru
        _
    $region100: #{resnet_block_with_attn_forward.1} parent=5 // pred_fallthru
      _
  $region6: #{resnet_block_with_attn_forward.1} parent=0 // loop_footer
    %s28 = sadd.s32 1, %s24
  $region7: #{resnet_block_with_attn_forward.1} parent=0 // loop_footer_branch
    %23 = sbr.rel target = $region3
  $region8: #{resnet_block_with_attn_forward.1} parent=0 // loop_exit
    _

</llo_original>
